<compile_context>
chip_gen: v5e
topology: v5e:2x2
jax: 0.10.0
libtpu: 0.0.40
codegen_flags: <defaults>
</compile_context>

<pallas_src>
import jax
import jax.numpy as jnp
from jax import lax
from jax.experimental import pallas as pl
from jax.experimental.pallas import tpu as pltpu


def _ceil_to(x, m):
    return ((x + m - 1) // m) * m


# ----------------------------------------------------------------------------
# Fused kernel (one batch tile): conv1x1+ReLU -> flatten -> MLP -> L2 normalize
# ----------------------------------------------------------------------------
def fused_embedd_kernel(x_ref, cwt_ref, cb_ref,
                        w1s_ref, b1_ref,
                        w2t_ref, b2_ref,
                        w3t_ref, b3_ref,
                        w4t_ref, b4_ref,
                        a_ref,
                        o_ref,
                        conv2_ref):
    # x_ref    : (S, TB, C)   input tile, rows ordered (spatial, batch), lanes = C_in
    # cwt_ref  : (C, CO)      1x1 conv weight, (c_in, c_out)
    # cb_ref   : (1, CO)      conv bias
    # w1s_ref  : (S*CO, N1)   fc1 weight, rows permuted to lane order (s, co)
    # w2t/w3t/w4t : (in, out) pre-transposed fc weights (VMEM-resident)
    # b*_ref   : (1, out)     biases
    # a_ref    : (3,) SMEM    PReLU slopes
    # o_ref    : (TB, out)    normalized embeddings for this batch tile
    # conv2_ref: (TB, S*CO)   lane-dense scratch for the flattened conv output
    f32 = jnp.float32
    S = x_ref.shape[0]
    CO = cwt_ref.shape[1]

    cw = cwt_ref[...]          # hoisted: the SAME RHS for all S conv dots
    cb = cb_ref[...]

    # ---- 1x1 conv + bias + ReLU, weight-stationary over spatial positions ----
    # Each step is a dense (TB,128)@(128,64) MXU dot; the result lands in lane
    # block [s*64, (s+1)*64) of the (TB, 4096) scratch so fc1 below is a single
    # lane-dense matmul with NO in-kernel relayout of the conv output.
    for s in range(S):                                          # static unroll
        ys = jnp.dot(x_ref[s], cw, preferred_element_type=f32)  # (TB, CO)
        conv2_ref[:, s * CO:(s + 1) * CO] = jnp.maximum(ys + cb, 0.0)

    def prelu(v, a):
        return jnp.where(v >= 0.0, v, a * v)

    # ---- flatten(1) + Linear(4096,128): ONE (TB,4096)@(4096,128) matmul ----
    h = jnp.dot(conv2_ref[...], w1s_ref[...], preferred_element_type=f32)
    h = prelu(h + b1_ref[...], a_ref[0])                                           # (TB, 128)
    h = prelu(jnp.dot(h, w2t_ref[...], preferred_element_type=f32) + b2_ref[...],
              a_ref[1])                                                             # (TB, 128)
    h = prelu(jnp.dot(h, w3t_ref[...], preferred_element_type=f32) + b3_ref[...],
              a_ref[2])                                                             # (TB, 256)
    h = jnp.dot(h, w4t_ref[...], preferred_element_type=f32) + b4_ref[...]          # (TB, out)

    # F.normalize(p=2, dim=1): x / max(||x||,1e-12) == x * rsqrt(max(||x||^2,1e-24))
    ss = jnp.sum(h * h, axis=1, keepdims=True)
    o_ref[...] = h * lax.rsqrt(jnp.maximum(ss, 1e-24))


# ----------------------------------------------------------------------------
# One-time parameter preparation (all weight transposes/permutes happen here,
# NOT in the per-forward path).
# ----------------------------------------------------------------------------
def prepare_params(params):
    f32 = jnp.float32
    c_out, c_in = 64, 128
    w1 = params["w1"].astype(f32)                       # (128, 4096), col = co*S + s
    n1 = w1.shape[0]
    S = w1.shape[1] // c_out
    # w1s[s*64 + co, j] = W1[j, co*S + s] -> matches the lane order the conv
    # stage writes, so fc1 is a single (TB, 4096) @ (4096, 128) matmul.
    w1s = jnp.transpose(w1.reshape(n1, c_out, S), (2, 1, 0)).reshape(S * c_out, n1)
    return {
        "cwt": params["conv_w"].reshape(c_out, c_in).T.astype(f32),   # (128, 64)
        "cb": params["conv_b"].reshape(1, c_out).astype(f32),
        "w1s": w1s,                                                   # (4096, 128)
        "b1": params["b1"].reshape(1, -1).astype(f32),
        "w2t": params["w2"].T.astype(f32),
        "b2": params["b2"].reshape(1, -1).astype(f32),
        "w3t": params["w3"].T.astype(f32),
        "b3": params["b3"].reshape(1, -1).astype(f32),
        "w4t": params["w4"].T.astype(f32),
        "b4": params["b4"].reshape(1, -1).astype(f32),
        "a": jnp.concatenate([params["a1"].reshape(1),
                              params["a2"].reshape(1),
                              params["a3"].reshape(1)]).astype(f32),  # (3,)
    }


# ----------------------------------------------------------------------------
# Forward wrapper: batch-tiled grid, weights VMEM-resident, one pallas_call.
# ----------------------------------------------------------------------------
def shallow_embedd_net_pallas(x_nchw, prep, tb_max=256):
    # tb_max=256 is safe on v5e/v6e/v7x; on v6e (128 MiB VMEM) 512-1024 amortise
    # the per-grid-step overhead further (raise vmem_limit_bytes accordingly).
    B, C, H, W = x_nchw.shape
    S = H * W
    CO = prep["cwt"].shape[1]
    N1 = prep["w1s"].shape[1]
    nflat = prep["w1s"].shape[0]                  # S * CO
    out_dim = prep["w4t"].shape[1]

    TB = min(tb_max, _ceil_to(B, 8))              # batch-tile rows (multiple of 8)
    BP = _ceil_to(B, TB)                          # padded batch
    grid = (BP // TB,)

    # NCHW -> (S, B, C) so each spatial slice x[s] is a dense (TB, C) MXU LHS.
    # (Padded rows carry relu(conv_bias) garbage through the MLP; they are
    #  discarded by the final [:B] slice and never written anywhere persistent.)
    xt = jnp.transpose(x_nchw.reshape(B, C, S), (2, 0, 1)).astype(jnp.float32)
    if BP != B:
        xt = jnp.pad(xt, ((0, 0), (0, BP - B), (0, 0)))

    def _resident(shape):                          # VMEM-resident weight spec
        nd = len(shape)
        return pl.BlockSpec(shape, lambda i, _nd=nd: (0,) * _nd)

    in_specs = [
        pl.BlockSpec((S, TB, C), lambda i: (0, i, 0)),        # x tile (pipelined)
        _resident(prep["cwt"].shape), _resident(prep["cb"].shape),
        _resident(prep["w1s"].shape), _resident(prep["b1"].shape),
        _resident(prep["w2t"].shape), _resident(prep["b2"].shape),
        _resident(prep["w3t"].shape), _resident(prep["b3"].shape),
        _resident(prep["w4t"].shape), _resident(prep["b4"].shape),
        pl.BlockSpec(memory_space=pltpu.MemorySpace.SMEM),    # PReLU slopes (3,)
    ]

    fl_row = (S * C * CO + nflat * N1
              + prep["w2t"].shape[0] * prep["w2t"].shape[1]
              + prep["w3t"].shape[0] * prep["w3t"].shape[1]
              + prep["w4t"].shape[0] * prep["w4t"].shape[1])
    weight_bytes = sum(int(v.size) * 4 for v in prep.values())
    cost = pl.CostEstimate(
        flops=2 * BP * fl_row,
        transcendentals=BP,
        bytes_accessed=int(xt.size) * 4 + weight_bytes + BP * out_dim * 4,
    )

    out = pl.pallas_call(
        fused_embedd_kernel,
        out_shape=jax.ShapeDtypeStruct((BP, out_dim), jnp.float32),
        grid=grid,
        in_specs=in_specs,
        out_specs=pl.BlockSpec((TB, out_dim), lambda i: (i, 0)),
        scratch_shapes=[pltpu.VMEM((TB, nflat), jnp.float32)],
        compiler_params=pltpu.CompilerParams(
            dimension_semantics=("parallel",),          # megacore split on v7x
            vmem_limit_bytes=48 * 1024 * 1024,          # > v5e's 16 MiB default, < v7x's 64 MiB phys
        ),
        cost_estimate=cost,
    )(xt, prep["cwt"], prep["cb"],
      prep["w1s"], prep["b1"],
      prep["w2t"], prep["b2"],
      prep["w3t"], prep["b3"],
      prep["w4t"], prep["b4"],
      prep["a"])

    return out[:B]


# ----------------------------------------------------------------------------
# Pure-JAX reference (mirrors the PyTorch forward exactly, original layouts)
# ----------------------------------------------------------------------------
def shallow_embedd_net_reference(x_nchw, params):
    B = x_nchw.shape[0]
    cw = params["conv_w"].reshape(64, 128)
    y = jnp.einsum("oc,bchw->bohw", cw, x_nchw) \
        + params["conv_b"][None, :, None, None]
    y = jnp.maximum(y, 0.0)
    h = y.reshape(B, -1)

    def prelu(v, a):
        return jnp.where(v >= 0.0, v, a * v)

    h = prelu(h @ params["w1"].T + params["b1"], params["a1"])
    h = prelu(h @ params["w2"].T + params["b2"], params["a2"])
    h = prelu(h @ params["w3"].T + params["b3"], params["a3"])
    h = h @ params["w4"].T + params["b4"]
    n = jnp.sqrt(jnp.sum(h * h, axis=1, keepdims=True))
    return h / jnp.maximum(n, 1e-12)


# ----------------------------------------------------------------------------
# Deterministic parameter construction (synthetic, matches module __init__)
# ----------------------------------------------------------------------------
def make_params(key, output_dim):
    ks = jax.random.split(key, 12)
    f32 = jnp.float32

    def w(k, shape, scale=0.02):
        return (scale * jax.random.normal(k, shape)).astype(f32)

    return {
        "conv_w": w(ks[0], (64, 128, 1, 1)),
        "conv_b": w(ks[1], (64,)),
        "w1": w(ks[2], (128, 4096)),
        "b1": w(ks[3], (128,)),
        "a1": jnp.full((1,), 0.25, f32),        # PReLU default init
        "w2": w(ks[4], (128, 128)),
        "b2": w(ks[5], (128,)),
        "a2": jnp.full((1,), 0.25, f32),
        "w3": w(ks[6], (256, 128)),
        "b3": w(ks[7], (256,)),
        "a3": jnp.full((1,), 0.25, f32),
        "w4": w(ks[8], (output_dim, 256)),
        "b4": w(ks[9], (output_dim,)),
    }


if __name__ == "__main__":
    key = jax.random.PRNGKey(0)
    k_x, k_p = jax.random.split(key)

    # Architecture forces C_in=128 and H*W=64 (flatten -> 4096); batch kept small.
    B, C, H, W = 2, 128, 8, 8
    OUTPUT_DIM = 128

    x = jax.random.normal(k_x, (B, C, H, W), dtype=jnp.float32)
    params = make_params(k_p, OUTPUT_DIM)

    prep = prepare_params(params)                     # one-time weight layout work
    fwd = jax.jit(shallow_embedd_net_pallas)

    out = jax.block_until_ready(fwd(x, prep))

    ref = jax.block_until_ready(shallow_embedd_net_reference(x, params))
    assert out.shape == (B, OUTPUT_DIM), out.shape
    assert jnp.allclose(out, ref, rtol=1e-4, atol=1e-4), \
        float(jnp.max(jnp.abs(out - ref)))

    print("KERNEL_OK")
</pallas_src>

<mosaic_0001>
module attributes {stable_mosaic.version = 11 : i64} {
  func.func @fused_embedd_kernel(%arg0: i32, %arg1: memref<64x8x128xf32, #tpu.memory_space<vmem>>, %arg2: memref<128x64xf32, #tpu.memory_space<vmem>>, %arg3: memref<1x64xf32, #tpu.memory_space<vmem>>, %arg4: memref<4096x128xf32, #tpu.memory_space<vmem>>, %arg5: memref<1x128xf32, #tpu.memory_space<vmem>>, %arg6: memref<128x128xf32, #tpu.memory_space<vmem>>, %arg7: memref<1x128xf32, #tpu.memory_space<vmem>>, %arg8: memref<128x256xf32, #tpu.memory_space<vmem>>, %arg9: memref<1x256xf32, #tpu.memory_space<vmem>>, %arg10: memref<256x128xf32, #tpu.memory_space<vmem>>, %arg11: memref<1x128xf32, #tpu.memory_space<vmem>>, %arg12: memref<3xf32, #tpu.memory_space<smem>>, %arg13: memref<8x128xf32, #tpu.memory_space<vmem>>, %arg14: memref<8x4096xf32, #tpu.memory_space<vmem>>) attributes {dimension_semantics = [#tpu.dimension_semantics<parallel>], iteration_bounds = array<i64: 1>, scalar_prefetch = 0 : i64, scratch_operands = 1 : i64, tpu.core_type = #tpu.core_type<tc>, window_params = [{transform_indices = @transform_0, window_bounds = array<i64: 64, 8, 128>}, {pipeline_mode = #tpu.pipeline_mode<synchronous>, transform_indices = @transform_1, window_bounds = array<i64: 128, 64>}, {pipeline_mode = #tpu.pipeline_mode<synchronous>, transform_indices = @transform_2, window_bounds = array<i64: 1, 64>}, {pipeline_mode = #tpu.pipeline_mode<synchronous>, transform_indices = @transform_3, window_bounds = array<i64: 4096, 128>}, {pipeline_mode = #tpu.pipeline_mode<synchronous>, transform_indices = @transform_4, window_bounds = array<i64: 1, 128>}, {pipeline_mode = #tpu.pipeline_mode<synchronous>, transform_indices = @transform_5, window_bounds = array<i64: 128, 128>}, {pipeline_mode = #tpu.pipeline_mode<synchronous>, transform_indices = @transform_6, window_bounds = array<i64: 1, 128>}, {pipeline_mode = #tpu.pipeline_mode<synchronous>, transform_indices = @transform_7, window_bounds = array<i64: 128, 256>}, {pipeline_mode = #tpu.pipeline_mode<synchronous>, transform_indices = @transform_8, window_bounds = array<i64: 1, 256>}, {pipeline_mode = #tpu.pipeline_mode<synchronous>, transform_indices = @transform_9, window_bounds = array<i64: 256, 128>}, {pipeline_mode = #tpu.pipeline_mode<synchronous>, transform_indices = @transform_10, window_bounds = array<i64: 1, 128>}, {transform_indices = @transform_11, window_bounds = array<i64: 3>}, {transform_indices = @transform_12, window_bounds = array<i64: 8, 128>}]} {
    %c0 = arith.constant 0 : index
    %c0_0 = arith.constant 0 : index
    %0 = vector.load %arg2[%c0, %c0_0] : memref<128x64xf32, #tpu.memory_space<vmem>>, vector<128x64xf32>
    %c0_1 = arith.constant 0 : index
    %c0_2 = arith.constant 0 : index
    %1 = vector.load %arg3[%c0_1, %c0_2] : memref<1x64xf32, #tpu.memory_space<vmem>>, vector<1x64xf32>
    %c0_3 = arith.constant 0 : index
    %c0_4 = arith.constant 0 : index
    %c0_5 = arith.constant 0 : index
    %2 = vector.load %arg1[%c0_3, %c0_4, %c0_5] : memref<64x8x128xf32, #tpu.memory_space<vmem>>, vector<1x8x128xf32>
    %3 = vector.shape_cast %2 : vector<1x8x128xf32> to vector<8x128xf32>
    %cst = arith.constant dense<0.000000e+00> : vector<8x64xf32>
    %4 = tpu.matmul %3, %0, %cst {dimension_numbers = #tpu.dot_dimension_numbers<[1], [0], [0], [1], [0, 0, 1, 1], [], []>} : vector<8x128xf32>, vector<128x64xf32>, vector<8x64xf32> -> vector<8x64xf32>
    %5 = vector.broadcast %1 : vector<1x64xf32> to vector<8x64xf32>
    %6 = arith.addf %4, %5 : vector<8x64xf32>
    %cst_6 = arith.constant 0.000000e+00 : f32
    %7 = vector.broadcast %cst_6 : f32 to vector<8x64xf32>
    %8 = arith.maximumf %6, %7 : vector<8x64xf32>
    %c0_7 = arith.constant 0 : index
    %c0_8 = arith.constant 0 : index
    %9 = vector.load %arg14[%c0_7, %c0_8] : memref<8x4096xf32, #tpu.memory_space<vmem>>, vector<8x64xf32>
    tpu.vector_store %arg14[%c0_7, %c0_8], %8 {strides = array<i32>} : memref<8x4096xf32, #tpu.memory_space<vmem>>, vector<8x64xf32>,
    %c1 = arith.constant 1 : index
    %c0_9 = arith.constant 0 : index
    %c0_10 = arith.constant 0 : index
    %10 = vector.load %arg1[%c1, %c0_9, %c0_10] : memref<64x8x128xf32, #tpu.memory_space<vmem>>, vector<1x8x128xf32>
    %11 = vector.shape_cast %10 : vector<1x8x128xf32> to vector<8x128xf32>
    %cst_11 = arith.constant dense<0.000000e+00> : vector<8x64xf32>
    %12 = tpu.matmul %11, %0, %cst_11 {dimension_numbers = #tpu.dot_dimension_numbers<[1], [0], [0], [1], [0, 0, 1, 1], [], []>} : vector<8x128xf32>, vector<128x64xf32>, vector<8x64xf32> -> vector<8x64xf32>
    %13 = vector.broadcast %1 : vector<1x64xf32> to vector<8x64xf32>
    %14 = arith.addf %12, %13 : vector<8x64xf32>
    %cst_12 = arith.constant 0.000000e+00 : f32
    %15 = vector.broadcast %cst_12 : f32 to vector<8x64xf32>
    %16 = arith.maximumf %14, %15 : vector<8x64xf32>
    %c0_13 = arith.constant 0 : index
    %c64 = arith.constant 64 : index
    %17 = vector.load %arg14[%c0_13, %c64] : memref<8x4096xf32, #tpu.memory_space<vmem>>, vector<8x64xf32>
    tpu.vector_store %arg14[%c0_13, %c64], %16 {strides = array<i32>} : memref<8x4096xf32, #tpu.memory_space<vmem>>, vector<8x64xf32>,
    %c2 = arith.constant 2 : index
    %c0_14 = arith.constant 0 : index
    %c0_15 = arith.constant 0 : index
    %18 = vector.load %arg1[%c2, %c0_14, %c0_15] : memref<64x8x128xf32, #tpu.memory_space<vmem>>, vector<1x8x128xf32>
    %19 = vector.shape_cast %18 : vector<1x8x128xf32> to vector<8x128xf32>
    %cst_16 = arith.constant dense<0.000000e+00> : vector<8x64xf32>
    %20 = tpu.matmul %19, %0, %cst_16 {dimension_numbers = #tpu.dot_dimension_numbers<[1], [0], [0], [1], [0, 0, 1, 1], [], []>} : vector<8x128xf32>, vector<128x64xf32>, vector<8x64xf32> -> vector<8x64xf32>
    %21 = vector.broadcast %1 : vector<1x64xf32> to vector<8x64xf32>
    %22 = arith.addf %20, %21 : vector<8x64xf32>
    %cst_17 = arith.constant 0.000000e+00 : f32
    %23 = vector.broadcast %cst_17 : f32 to vector<8x64xf32>
    %24 = arith.maximumf %22, %23 : vector<8x64xf32>
    %c0_18 = arith.constant 0 : index
    %c128 = arith.constant 128 : index
    %25 = vector.load %arg14[%c0_18, %c128] : memref<8x4096xf32, #tpu.memory_space<vmem>>, vector<8x64xf32>
    tpu.vector_store %arg14[%c0_18, %c128], %24 {strides = array<i32>} : memref<8x4096xf32, #tpu.memory_space<vmem>>, vector<8x64xf32>,
    %c3 = arith.constant 3 : index
    %c0_19 = arith.constant 0 : index
    %c0_20 = arith.constant 0 : index
    %26 = vector.load %arg1[%c3, %c0_19, %c0_20] : memref<64x8x128xf32, #tpu.memory_space<vmem>>, vector<1x8x128xf32>
    %27 = vector.shape_cast %26 : vector<1x8x128xf32> to vector<8x128xf32>
    %cst_21 = arith.constant dense<0.000000e+00> : vector<8x64xf32>
    %28 = tpu.matmul %27, %0, %cst_21 {dimension_numbers = #tpu.dot_dimension_numbers<[1], [0], [0], [1], [0, 0, 1, 1], [], []>} : vector<8x128xf32>, vector<128x64xf32>, vector<8x64xf32> -> vector<8x64xf32>
    %29 = vector.broadcast %1 : vector<1x64xf32> to vector<8x64xf32>
    %30 = arith.addf %28, %29 : vector<8x64xf32>
    %cst_22 = arith.constant 0.000000e+00 : f32
    %31 = vector.broadcast %cst_22 : f32 to vector<8x64xf32>
    %32 = arith.maximumf %30, %31 : vector<8x64xf32>
    %c0_23 = arith.constant 0 : index
    %c192 = arith.constant 192 : index
    %33 = vector.load %arg14[%c0_23, %c192] : memref<8x4096xf32, #tpu.memory_space<vmem>>, vector<8x64xf32>
    tpu.vector_store %arg14[%c0_23, %c192], %32 {strides = array<i32>} : memref<8x4096xf32, #tpu.memory_space<vmem>>, vector<8x64xf32>,
    %c4 = arith.constant 4 : index
    %c0_24 = arith.constant 0 : index
    %c0_25 = arith.constant 0 : index
    %34 = vector.load %arg1[%c4, %c0_24, %c0_25] : memref<64x8x128xf32, #tpu.memory_space<vmem>>, vector<1x8x128xf32>
    %35 = vector.shape_cast %34 : vector<1x8x128xf32> to vector<8x128xf32>
    %cst_26 = arith.constant dense<0.000000e+00> : vector<8x64xf32>
    %36 = tpu.matmul %35, %0, %cst_26 {dimension_numbers = #tpu.dot_dimension_numbers<[1], [0], [0], [1], [0, 0, 1, 1], [], []>} : vector<8x128xf32>, vector<128x64xf32>, vector<8x64xf32> -> vector<8x64xf32>
    %37 = vector.broadcast %1 : vector<1x64xf32> to vector<8x64xf32>
    %38 = arith.addf %36, %37 : vector<8x64xf32>
    %cst_27 = arith.constant 0.000000e+00 : f32
    %39 = vector.broadcast %cst_27 : f32 to vector<8x64xf32>
    %40 = arith.maximumf %38, %39 : vector<8x64xf32>
    %c0_28 = arith.constant 0 : index
    %c256 = arith.constant 256 : index
    %41 = vector.load %arg14[%c0_28, %c256] : memref<8x4096xf32, #tpu.memory_space<vmem>>, vector<8x64xf32>
    tpu.vector_store %arg14[%c0_28, %c256], %40 {strides = array<i32>} : memref<8x4096xf32, #tpu.memory_space<vmem>>, vector<8x64xf32>,
    %c5 = arith.constant 5 : index
    %c0_29 = arith.constant 0 : index
    %c0_30 = arith.constant 0 : index
    %42 = vector.load %arg1[%c5, %c0_29, %c0_30] : memref<64x8x128xf32, #tpu.memory_space<vmem>>, vector<1x8x128xf32>
    %43 = vector.shape_cast %42 : vector<1x8x128xf32> to vector<8x128xf32>
    %cst_31 = arith.constant dense<0.000000e+00> : vector<8x64xf32>
    %44 = tpu.matmul %43, %0, %cst_31 {dimension_numbers = #tpu.dot_dimension_numbers<[1], [0], [0], [1], [0, 0, 1, 1], [], []>} : vector<8x128xf32>, vector<128x64xf32>, vector<8x64xf32> -> vector<8x64xf32>
    %45 = vector.broadcast %1 : vector<1x64xf32> to vector<8x64xf32>
    %46 = arith.addf %44, %45 : vector<8x64xf32>
    %cst_32 = arith.constant 0.000000e+00 : f32
    %47 = vector.broadcast %cst_32 : f32 to vector<8x64xf32>
    %48 = arith.maximumf %46, %47 : vector<8x64xf32>
    %c0_33 = arith.constant 0 : index
    %c320 = arith.constant 320 : index
    %49 = vector.load %arg14[%c0_33, %c320] : memref<8x4096xf32, #tpu.memory_space<vmem>>, vector<8x64xf32>
    tpu.vector_store %arg14[%c0_33, %c320], %48 {strides = array<i32>} : memref<8x4096xf32, #tpu.memory_space<vmem>>, vector<8x64xf32>,
    %c6 = arith.constant 6 : index
    %c0_34 = arith.constant 0 : index
    %c0_35 = arith.constant 0 : index
    %50 = vector.load %arg1[%c6, %c0_34, %c0_35] : memref<64x8x128xf32, #tpu.memory_space<vmem>>, vector<1x8x128xf32>
    %51 = vector.shape_cast %50 : vector<1x8x128xf32> to vector<8x128xf32>
    %cst_36 = arith.constant dense<0.000000e+00> : vector<8x64xf32>
    %52 = tpu.matmul %51, %0, %cst_36 {dimension_numbers = #tpu.dot_dimension_numbers<[1], [0], [0], [1], [0, 0, 1, 1], [], []>} : vector<8x128xf32>, vector<128x64xf32>, vector<8x64xf32> -> vector<8x64xf32>
    %53 = vector.broadcast %1 : vector<1x64xf32> to vector<8x64xf32>
    %54 = arith.addf %52, %53 : vector<8x64xf32>
    %cst_37 = arith.constant 0.000000e+00 : f32
    %55 = vector.broadcast %cst_37 : f32 to vector<8x64xf32>
    %56 = arith.maximumf %54, %55 : vector<8x64xf32>
    %c0_38 = arith.constant 0 : index
    %c384 = arith.constant 384 : index
    %57 = vector.load %arg14[%c0_38, %c384] : memref<8x4096xf32, #tpu.memory_space<vmem>>, vector<8x64xf32>
    tpu.vector_store %arg14[%c0_38, %c384], %56 {strides = array<i32>} : memref<8x4096xf32, #tpu.memory_space<vmem>>, vector<8x64xf32>,
    %c7 = arith.constant 7 : index
    %c0_39 = arith.constant 0 : index
    %c0_40 = arith.constant 0 : index
    %58 = vector.load %arg1[%c7, %c0_39, %c0_40] : memref<64x8x128xf32, #tpu.memory_space<vmem>>, vector<1x8x128xf32>
    %59 = vector.shape_cast %58 : vector<1x8x128xf32> to vector<8x128xf32>
    %cst_41 = arith.constant dense<0.000000e+00> : vector<8x64xf32>
    %60 = tpu.matmul %59, %0, %cst_41 {dimension_numbers = #tpu.dot_dimension_numbers<[1], [0], [0], [1], [0, 0, 1, 1], [], []>} : vector<8x128xf32>, vector<128x64xf32>, vector<8x64xf32> -> vector<8x64xf32>
    %61 = vector.broadcast %1 : vector<1x64xf32> to vector<8x64xf32>
    %62 = arith.addf %60, %61 : vector<8x64xf32>
    %cst_42 = arith.constant 0.000000e+00 : f32
    %63 = vector.broadcast %cst_42 : f32 to vector<8x64xf32>
    %64 = arith.maximumf %62, %63 : vector<8x64xf32>
    %c0_43 = arith.constant 0 : index
    %c448 = arith.constant 448 : index
    %65 = vector.load %arg14[%c0_43, %c448] : memref<8x4096xf32, #tpu.memory_space<vmem>>, vector<8x64xf32>
    tpu.vector_store %arg14[%c0_43, %c448], %64 {strides = array<i32>} : memref<8x4096xf32, #tpu.memory_space<vmem>>, vector<8x64xf32>,
    %c8 = arith.constant 8 : index
    %c0_44 = arith.constant 0 : index
    %c0_45 = arith.constant 0 : index
    %66 = vector.load %arg1[%c8, %c0_44, %c0_45] : memref<64x8x128xf32, #tpu.memory_space<vmem>>, vector<1x8x128xf32>
    %67 = vector.shape_cast %66 : vector<1x8x128xf32> to vector<8x128xf32>
    %cst_46 = arith.constant dense<0.000000e+00> : vector<8x64xf32>
    %68 = tpu.matmul %67, %0, %cst_46 {dimension_numbers = #tpu.dot_dimension_numbers<[1], [0], [0], [1], [0, 0, 1, 1], [], []>} : vector<8x128xf32>, vector<128x64xf32>, vector<8x64xf32> -> vector<8x64xf32>
    %69 = vector.broadcast %1 : vector<1x64xf32> to vector<8x64xf32>
    %70 = arith.addf %68, %69 : vector<8x64xf32>
    %cst_47 = arith.constant 0.000000e+00 : f32
    %71 = vector.broadcast %cst_47 : f32 to vector<8x64xf32>
    %72 = arith.maximumf %70, %71 : vector<8x64xf32>
    %c0_48 = arith.constant 0 : index
    %c512 = arith.constant 512 : index
    %73 = vector.load %arg14[%c0_48, %c512] : memref<8x4096xf32, #tpu.memory_space<vmem>>, vector<8x64xf32>
    tpu.vector_store %arg14[%c0_48, %c512], %72 {strides = array<i32>} : memref<8x4096xf32, #tpu.memory_space<vmem>>, vector<8x64xf32>,
    %c9 = arith.constant 9 : index
    %c0_49 = arith.constant 0 : index
    %c0_50 = arith.constant 0 : index
    %74 = vector.load %arg1[%c9, %c0_49, %c0_50] : memref<64x8x128xf32, #tpu.memory_space<vmem>>, vector<1x8x128xf32>
    %75 = vector.shape_cast %74 : vector<1x8x128xf32> to vector<8x128xf32>
    %cst_51 = arith.constant dense<0.000000e+00> : vector<8x64xf32>
    %76 = tpu.matmul %75, %0, %cst_51 {dimension_numbers = #tpu.dot_dimension_numbers<[1], [0], [0], [1], [0, 0, 1, 1], [], []>} : vector<8x128xf32>, vector<128x64xf32>, vector<8x64xf32> -> vector<8x64xf32>
    %77 = vector.broadcast %1 : vector<1x64xf32> to vector<8x64xf32>
    %78 = arith.addf %76, %77 : vector<8x64xf32>
    %cst_52 = arith.constant 0.000000e+00 : f32
    %79 = vector.broadcast %cst_52 : f32 to vector<8x64xf32>
    %80 = arith.maximumf %78, %79 : vector<8x64xf32>
    %c0_53 = arith.constant 0 : index
    %c576 = arith.constant 576 : index
    %81 = vector.load %arg14[%c0_53, %c576] : memref<8x4096xf32, #tpu.memory_space<vmem>>, vector<8x64xf32>
    tpu.vector_store %arg14[%c0_53, %c576], %80 {strides = array<i32>} : memref<8x4096xf32, #tpu.memory_space<vmem>>, vector<8x64xf32>,
    %c10 = arith.constant 10 : index
    %c0_54 = arith.constant 0 : index
    %c0_55 = arith.constant 0 : index
    %82 = vector.load %arg1[%c10, %c0_54, %c0_55] : memref<64x8x128xf32, #tpu.memory_space<vmem>>, vector<1x8x128xf32>
    %83 = vector.shape_cast %82 : vector<1x8x128xf32> to vector<8x128xf32>
    %cst_56 = arith.constant dense<0.000000e+00> : vector<8x64xf32>
    %84 = tpu.matmul %83, %0, %cst_56 {dimension_numbers = #tpu.dot_dimension_numbers<[1], [0], [0], [1], [0, 0, 1, 1], [], []>} : vector<8x128xf32>, vector<128x64xf32>, vector<8x64xf32> -> vector<8x64xf32>
    %85 = vector.broadcast %1 : vector<1x64xf32> to vector<8x64xf32>
    %86 = arith.addf %84, %85 : vector<8x64xf32>
    %cst_57 = arith.constant 0.000000e+00 : f32
    %87 = vector.broadcast %cst_57 : f32 to vector<8x64xf32>
    %88 = arith.maximumf %86, %87 : vector<8x64xf32>
    %c0_58 = arith.constant 0 : index
    %c640 = arith.constant 640 : index
    %89 = vector.load %arg14[%c0_58, %c640] : memref<8x4096xf32, #tpu.memory_space<vmem>>, vector<8x64xf32>
    tpu.vector_store %arg14[%c0_58, %c640], %88 {strides = array<i32>} : memref<8x4096xf32, #tpu.memory_space<vmem>>, vector<8x64xf32>,
    %c11 = arith.constant 11 : index
    %c0_59 = arith.constant 0 : index
    %c0_60 = arith.constant 0 : index
    %90 = vector.load %arg1[%c11, %c0_59, %c0_60] : memref<64x8x128xf32, #tpu.memory_space<vmem>>, vector<1x8x128xf32>
    %91 = vector.shape_cast %90 : vector<1x8x128xf32> to vector<8x128xf32>
    %cst_61 = arith.constant dense<0.000000e+00> : vector<8x64xf32>
    %92 = tpu.matmul %91, %0, %cst_61 {dimension_numbers = #tpu.dot_dimension_numbers<[1], [0], [0], [1], [0, 0, 1, 1], [], []>} : vector<8x128xf32>, vector<128x64xf32>, vector<8x64xf32> -> vector<8x64xf32>
    %93 = vector.broadcast %1 : vector<1x64xf32> to vector<8x64xf32>
    %94 = arith.addf %92, %93 : vector<8x64xf32>
    %cst_62 = arith.constant 0.000000e+00 : f32
    %95 = vector.broadcast %cst_62 : f32 to vector<8x64xf32>
    %96 = arith.maximumf %94, %95 : vector<8x64xf32>
    %c0_63 = arith.constant 0 : index
    %c704 = arith.constant 704 : index
    %97 = vector.load %arg14[%c0_63, %c704] : memref<8x4096xf32, #tpu.memory_space<vmem>>, vector<8x64xf32>
    tpu.vector_store %arg14[%c0_63, %c704], %96 {strides = array<i32>} : memref<8x4096xf32, #tpu.memory_space<vmem>>, vector<8x64xf32>,
    %c12 = arith.constant 12 : index
    %c0_64 = arith.constant 0 : index
    %c0_65 = arith.constant 0 : index
    %98 = vector.load %arg1[%c12, %c0_64, %c0_65] : memref<64x8x128xf32, #tpu.memory_space<vmem>>, vector<1x8x128xf32>
    %99 = vector.shape_cast %98 : vector<1x8x128xf32> to vector<8x128xf32>
    %cst_66 = arith.constant dense<0.000000e+00> : vector<8x64xf32>
    %100 = tpu.matmul %99, %0, %cst_66 {dimension_numbers = #tpu.dot_dimension_numbers<[1], [0], [0], [1], [0, 0, 1, 1], [], []>} : vector<8x128xf32>, vector<128x64xf32>, vector<8x64xf32> -> vector<8x64xf32>
    %101 = vector.broadcast %1 : vector<1x64xf32> to vector<8x64xf32>
    %102 = arith.addf %100, %101 : vector<8x64xf32>
    %cst_67 = arith.constant 0.000000e+00 : f32
    %103 = vector.broadcast %cst_67 : f32 to vector<8x64xf32>
    %104 = arith.maximumf %102, %103 : vector<8x64xf32>
    %c0_68 = arith.constant 0 : index
    %c768 = arith.constant 768 : index
    %105 = vector.load %arg14[%c0_68, %c768] : memref<8x4096xf32, #tpu.memory_space<vmem>>, vector<8x64xf32>
    tpu.vector_store %arg14[%c0_68, %c768], %104 {strides = array<i32>} : memref<8x4096xf32, #tpu.memory_space<vmem>>, vector<8x64xf32>,
    %c13 = arith.constant 13 : index
    %c0_69 = arith.constant 0 : index
    %c0_70 = arith.constant 0 : index
    %106 = vector.load %arg1[%c13, %c0_69, %c0_70] : memref<64x8x128xf32, #tpu.memory_space<vmem>>, vector<1x8x128xf32>
    %107 = vector.shape_cast %106 : vector<1x8x128xf32> to vector<8x128xf32>
    %cst_71 = arith.constant dense<0.000000e+00> : vector<8x64xf32>
    %108 = tpu.matmul %107, %0, %cst_71 {dimension_numbers = #tpu.dot_dimension_numbers<[1], [0], [0], [1], [0, 0, 1, 1], [], []>} : vector<8x128xf32>, vector<128x64xf32>, vector<8x64xf32> -> vector<8x64xf32>
    %109 = vector.broadcast %1 : vector<1x64xf32> to vector<8x64xf32>
    %110 = arith.addf %108, %109 : vector<8x64xf32>
    %cst_72 = arith.constant 0.000000e+00 : f32
    %111 = vector.broadcast %cst_72 : f32 to vector<8x64xf32>
    %112 = arith.maximumf %110, %111 : vector<8x64xf32>
    %c0_73 = arith.constant 0 : index
    %c832 = arith.constant 832 : index
    %113 = vector.load %arg14[%c0_73, %c832] : memref<8x4096xf32, #tpu.memory_space<vmem>>, vector<8x64xf32>
    tpu.vector_store %arg14[%c0_73, %c832], %112 {strides = array<i32>} : memref<8x4096xf32, #tpu.memory_space<vmem>>, vector<8x64xf32>,
    %c14 = arith.constant 14 : index
    %c0_74 = arith.constant 0 : index
    %c0_75 = arith.constant 0 : index
    %114 = vector.load %arg1[%c14, %c0_74, %c0_75] : memref<64x8x128xf32, #tpu.memory_space<vmem>>, vector<1x8x128xf32>
    %115 = vector.shape_cast %114 : vector<1x8x128xf32> to vector<8x128xf32>
    %cst_76 = arith.constant dense<0.000000e+00> : vector<8x64xf32>
    %116 = tpu.matmul %115, %0, %cst_76 {dimension_numbers = #tpu.dot_dimension_numbers<[1], [0], [0], [1], [0, 0, 1, 1], [], []>} : vector<8x128xf32>, vector<128x64xf32>, vector<8x64xf32> -> vector<8x64xf32>
    %117 = vector.broadcast %1 : vector<1x64xf32> to vector<8x64xf32>
    %118 = arith.addf %116, %117 : vector<8x64xf32>
    %cst_77 = arith.constant 0.000000e+00 : f32
    %119 = vector.broadcast %cst_77 : f32 to vector<8x64xf32>
    %120 = arith.maximumf %118, %119 : vector<8x64xf32>
    %c0_78 = arith.constant 0 : index
    %c896 = arith.constant 896 : index
    %121 = vector.load %arg14[%c0_78, %c896] : memref<8x4096xf32, #tpu.memory_space<vmem>>, vector<8x64xf32>
    tpu.vector_store %arg14[%c0_78, %c896], %120 {strides = array<i32>} : memref<8x4096xf32, #tpu.memory_space<vmem>>, vector<8x64xf32>,
    %c15 = arith.constant 15 : index
    %c0_79 = arith.constant 0 : index
    %c0_80 = arith.constant 0 : index
    %122 = vector.load %arg1[%c15, %c0_79, %c0_80] : memref<64x8x128xf32, #tpu.memory_space<vmem>>, vector<1x8x128xf32>
    %123 = vector.shape_cast %122 : vector<1x8x128xf32> to vector<8x128xf32>
    %cst_81 = arith.constant dense<0.000000e+00> : vector<8x64xf32>
    %124 = tpu.matmul %123, %0, %cst_81 {dimension_numbers = #tpu.dot_dimension_numbers<[1], [0], [0], [1], [0, 0, 1, 1], [], []>} : vector<8x128xf32>, vector<128x64xf32>, vector<8x64xf32> -> vector<8x64xf32>
    %125 = vector.broadcast %1 : vector<1x64xf32> to vector<8x64xf32>
    %126 = arith.addf %124, %125 : vector<8x64xf32>
    %cst_82 = arith.constant 0.000000e+00 : f32
    %127 = vector.broadcast %cst_82 : f32 to vector<8x64xf32>
    %128 = arith.maximumf %126, %127 : vector<8x64xf32>
    %c0_83 = arith.constant 0 : index
    %c960 = arith.constant 960 : index
    %129 = vector.load %arg14[%c0_83, %c960] : memref<8x4096xf32, #tpu.memory_space<vmem>>, vector<8x64xf32>
    tpu.vector_store %arg14[%c0_83, %c960], %128 {strides = array<i32>} : memref<8x4096xf32, #tpu.memory_space<vmem>>, vector<8x64xf32>,
    %c16 = arith.constant 16 : index
    %c0_84 = arith.constant 0 : index
    %c0_85 = arith.constant 0 : index
    %130 = vector.load %arg1[%c16, %c0_84, %c0_85] : memref<64x8x128xf32, #tpu.memory_space<vmem>>, vector<1x8x128xf32>
    %131 = vector.shape_cast %130 : vector<1x8x128xf32> to vector<8x128xf32>
    %cst_86 = arith.constant dense<0.000000e+00> : vector<8x64xf32>
    %132 = tpu.matmul %131, %0, %cst_86 {dimension_numbers = #tpu.dot_dimension_numbers<[1], [0], [0], [1], [0, 0, 1, 1], [], []>} : vector<8x128xf32>, vector<128x64xf32>, vector<8x64xf32> -> vector<8x64xf32>
    %133 = vector.broadcast %1 : vector<1x64xf32> to vector<8x64xf32>
    %134 = arith.addf %132, %133 : vector<8x64xf32>
    %cst_87 = arith.constant 0.000000e+00 : f32
    %135 = vector.broadcast %cst_87 : f32 to vector<8x64xf32>
    %136 = arith.maximumf %134, %135 : vector<8x64xf32>
    %c0_88 = arith.constant 0 : index
    %c1024 = arith.constant 1024 : index
    %137 = vector.load %arg14[%c0_88, %c1024] : memref<8x4096xf32, #tpu.memory_space<vmem>>, vector<8x64xf32>
    tpu.vector_store %arg14[%c0_88, %c1024], %136 {strides = array<i32>} : memref<8x4096xf32, #tpu.memory_space<vmem>>, vector<8x64xf32>,
    %c17 = arith.constant 17 : index
    %c0_89 = arith.constant 0 : index
    %c0_90 = arith.constant 0 : index
    %138 = vector.load %arg1[%c17, %c0_89, %c0_90] : memref<64x8x128xf32, #tpu.memory_space<vmem>>, vector<1x8x128xf32>
    %139 = vector.shape_cast %138 : vector<1x8x128xf32> to vector<8x128xf32>
    %cst_91 = arith.constant dense<0.000000e+00> : vector<8x64xf32>
    %140 = tpu.matmul %139, %0, %cst_91 {dimension_numbers = #tpu.dot_dimension_numbers<[1], [0], [0], [1], [0, 0, 1, 1], [], []>} : vector<8x128xf32>, vector<128x64xf32>, vector<8x64xf32> -> vector<8x64xf32>
    %141 = vector.broadcast %1 : vector<1x64xf32> to vector<8x64xf32>
    %142 = arith.addf %140, %141 : vector<8x64xf32>
    %cst_92 = arith.constant 0.000000e+00 : f32
    %143 = vector.broadcast %cst_92 : f32 to vector<8x64xf32>
    %144 = arith.maximumf %142, %143 : vector<8x64xf32>
    %c0_93 = arith.constant 0 : index
    %c1088 = arith.constant 1088 : index
    %145 = vector.load %arg14[%c0_93, %c1088] : memref<8x4096xf32, #tpu.memory_space<vmem>>, vector<8x64xf32>
    tpu.vector_store %arg14[%c0_93, %c1088], %144 {strides = array<i32>} : memref<8x4096xf32, #tpu.memory_space<vmem>>, vector<8x64xf32>,
    %c18 = arith.constant 18 : index
    %c0_94 = arith.constant 0 : index
    %c0_95 = arith.constant 0 : index
    %146 = vector.load %arg1[%c18, %c0_94, %c0_95] : memref<64x8x128xf32, #tpu.memory_space<vmem>>, vector<1x8x128xf32>
    %147 = vector.shape_cast %146 : vector<1x8x128xf32> to vector<8x128xf32>
    %cst_96 = arith.constant dense<0.000000e+00> : vector<8x64xf32>
    %148 = tpu.matmul %147, %0, %cst_96 {dimension_numbers = #tpu.dot_dimension_numbers<[1], [0], [0], [1], [0, 0, 1, 1], [], []>} : vector<8x128xf32>, vector<128x64xf32>, vector<8x64xf32> -> vector<8x64xf32>
    %149 = vector.broadcast %1 : vector<1x64xf32> to vector<8x64xf32>
    %150 = arith.addf %148, %149 : vector<8x64xf32>
    %cst_97 = arith.constant 0.000000e+00 : f32
    %151 = vector.broadcast %cst_97 : f32 to vector<8x64xf32>
    %152 = arith.maximumf %150, %151 : vector<8x64xf32>
    %c0_98 = arith.constant 0 : index
    %c1152 = arith.constant 1152 : index
    %153 = vector.load %arg14[%c0_98, %c1152] : memref<8x4096xf32, #tpu.memory_space<vmem>>, vector<8x64xf32>
    tpu.vector_store %arg14[%c0_98, %c1152], %152 {strides = array<i32>} : memref<8x4096xf32, #tpu.memory_space<vmem>>, vector<8x64xf32>,
    %c19 = arith.constant 19 : index
    %c0_99 = arith.constant 0 : index
    %c0_100 = arith.constant 0 : index
    %154 = vector.load %arg1[%c19, %c0_99, %c0_100] : memref<64x8x128xf32, #tpu.memory_space<vmem>>, vector<1x8x128xf32>
    %155 = vector.shape_cast %154 : vector<1x8x128xf32> to vector<8x128xf32>
    %cst_101 = arith.constant dense<0.000000e+00> : vector<8x64xf32>
    %156 = tpu.matmul %155, %0, %cst_101 {dimension_numbers = #tpu.dot_dimension_numbers<[1], [0], [0], [1], [0, 0, 1, 1], [], []>} : vector<8x128xf32>, vector<128x64xf32>, vector<8x64xf32> -> vector<8x64xf32>
    %157 = vector.broadcast %1 : vector<1x64xf32> to vector<8x64xf32>
    %158 = arith.addf %156, %157 : vector<8x64xf32>
    %cst_102 = arith.constant 0.000000e+00 : f32
    %159 = vector.broadcast %cst_102 : f32 to vector<8x64xf32>
    %160 = arith.maximumf %158, %159 : vector<8x64xf32>
    %c0_103 = arith.constant 0 : index
    %c1216 = arith.constant 1216 : index
    %161 = vector.load %arg14[%c0_103, %c1216] : memref<8x4096xf32, #tpu.memory_space<vmem>>, vector<8x64xf32>
    tpu.vector_store %arg14[%c0_103, %c1216], %160 {strides = array<i32>} : memref<8x4096xf32, #tpu.memory_space<vmem>>, vector<8x64xf32>,
    %c20 = arith.constant 20 : index
    %c0_104 = arith.constant 0 : index
    %c0_105 = arith.constant 0 : index
    %162 = vector.load %arg1[%c20, %c0_104, %c0_105] : memref<64x8x128xf32, #tpu.memory_space<vmem>>, vector<1x8x128xf32>
    %163 = vector.shape_cast %162 : vector<1x8x128xf32> to vector<8x128xf32>
    %cst_106 = arith.constant dense<0.000000e+00> : vector<8x64xf32>
    %164 = tpu.matmul %163, %0, %cst_106 {dimension_numbers = #tpu.dot_dimension_numbers<[1], [0], [0], [1], [0, 0, 1, 1], [], []>} : vector<8x128xf32>, vector<128x64xf32>, vector<8x64xf32> -> vector<8x64xf32>
    %165 = vector.broadcast %1 : vector<1x64xf32> to vector<8x64xf32>
    %166 = arith.addf %164, %165 : vector<8x64xf32>
    %cst_107 = arith.constant 0.000000e+00 : f32
    %167 = vector.broadcast %cst_107 : f32 to vector<8x64xf32>
    %168 = arith.maximumf %166, %167 : vector<8x64xf32>
    %c0_108 = arith.constant 0 : index
    %c1280 = arith.constant 1280 : index
    %169 = vector.load %arg14[%c0_108, %c1280] : memref<8x4096xf32, #tpu.memory_space<vmem>>, vector<8x64xf32>
    tpu.vector_store %arg14[%c0_108, %c1280], %168 {strides = array<i32>} : memref<8x4096xf32, #tpu.memory_space<vmem>>, vector<8x64xf32>,
    %c21 = arith.constant 21 : index
    %c0_109 = arith.constant 0 : index
    %c0_110 = arith.constant 0 : index
    %170 = vector.load %arg1[%c21, %c0_109, %c0_110] : memref<64x8x128xf32, #tpu.memory_space<vmem>>, vector<1x8x128xf32>
    %171 = vector.shape_cast %170 : vector<1x8x128xf32> to vector<8x128xf32>
    %cst_111 = arith.constant dense<0.000000e+00> : vector<8x64xf32>
    %172 = tpu.matmul %171, %0, %cst_111 {dimension_numbers = #tpu.dot_dimension_numbers<[1], [0], [0], [1], [0, 0, 1, 1], [], []>} : vector<8x128xf32>, vector<128x64xf32>, vector<8x64xf32> -> vector<8x64xf32>
    %173 = vector.broadcast %1 : vector<1x64xf32> to vector<8x64xf32>
    %174 = arith.addf %172, %173 : vector<8x64xf32>
    %cst_112 = arith.constant 0.000000e+00 : f32
    %175 = vector.broadcast %cst_112 : f32 to vector<8x64xf32>
    %176 = arith.maximumf %174, %175 : vector<8x64xf32>
    %c0_113 = arith.constant 0 : index
    %c1344 = arith.constant 1344 : index
    %177 = vector.load %arg14[%c0_113, %c1344] : memref<8x4096xf32, #tpu.memory_space<vmem>>, vector<8x64xf32>
    tpu.vector_store %arg14[%c0_113, %c1344], %176 {strides = array<i32>} : memref<8x4096xf32, #tpu.memory_space<vmem>>, vector<8x64xf32>,
    %c22 = arith.constant 22 : index
    %c0_114 = arith.constant 0 : index
    %c0_115 = arith.constant 0 : index
    %178 = vector.load %arg1[%c22, %c0_114, %c0_115] : memref<64x8x128xf32, #tpu.memory_space<vmem>>, vector<1x8x128xf32>
    %179 = vector.shape_cast %178 : vector<1x8x128xf32> to vector<8x128xf32>
    %cst_116 = arith.constant dense<0.000000e+00> : vector<8x64xf32>
    %180 = tpu.matmul %179, %0, %cst_116 {dimension_numbers = #tpu.dot_dimension_numbers<[1], [0], [0], [1], [0, 0, 1, 1], [], []>} : vector<8x128xf32>, vector<128x64xf32>, vector<8x64xf32> -> vector<8x64xf32>
    %181 = vector.broadcast %1 : vector<1x64xf32> to vector<8x64xf32>
    %182 = arith.addf %180, %181 : vector<8x64xf32>
    %cst_117 = arith.constant 0.000000e+00 : f32
    %183 = vector.broadcast %cst_117 : f32 to vector<8x64xf32>
    %184 = arith.maximumf %182, %183 : vector<8x64xf32>
    %c0_118 = arith.constant 0 : index
    %c1408 = arith.constant 1408 : index
    %185 = vector.load %arg14[%c0_118, %c1408] : memref<8x4096xf32, #tpu.memory_space<vmem>>, vector<8x64xf32>
    tpu.vector_store %arg14[%c0_118, %c1408], %184 {strides = array<i32>} : memref<8x4096xf32, #tpu.memory_space<vmem>>, vector<8x64xf32>,
    %c23 = arith.constant 23 : index
    %c0_119 = arith.constant 0 : index
    %c0_120 = arith.constant 0 : index
    %186 = vector.load %arg1[%c23, %c0_119, %c0_120] : memref<64x8x128xf32, #tpu.memory_space<vmem>>, vector<1x8x128xf32>
    %187 = vector.shape_cast %186 : vector<1x8x128xf32> to vector<8x128xf32>
    %cst_121 = arith.constant dense<0.000000e+00> : vector<8x64xf32>
    %188 = tpu.matmul %187, %0, %cst_121 {dimension_numbers = #tpu.dot_dimension_numbers<[1], [0], [0], [1], [0, 0, 1, 1], [], []>} : vector<8x128xf32>, vector<128x64xf32>, vector<8x64xf32> -> vector<8x64xf32>
    %189 = vector.broadcast %1 : vector<1x64xf32> to vector<8x64xf32>
    %190 = arith.addf %188, %189 : vector<8x64xf32>
    %cst_122 = arith.constant 0.000000e+00 : f32
    %191 = vector.broadcast %cst_122 : f32 to vector<8x64xf32>
    %192 = arith.maximumf %190, %191 : vector<8x64xf32>
    %c0_123 = arith.constant 0 : index
    %c1472 = arith.constant 1472 : index
    %193 = vector.load %arg14[%c0_123, %c1472] : memref<8x4096xf32, #tpu.memory_space<vmem>>, vector<8x64xf32>
    tpu.vector_store %arg14[%c0_123, %c1472], %192 {strides = array<i32>} : memref<8x4096xf32, #tpu.memory_space<vmem>>, vector<8x64xf32>,
    %c24 = arith.constant 24 : index
    %c0_124 = arith.constant 0 : index
    %c0_125 = arith.constant 0 : index
    %194 = vector.load %arg1[%c24, %c0_124, %c0_125] : memref<64x8x128xf32, #tpu.memory_space<vmem>>, vector<1x8x128xf32>
    %195 = vector.shape_cast %194 : vector<1x8x128xf32> to vector<8x128xf32>
    %cst_126 = arith.constant dense<0.000000e+00> : vector<8x64xf32>
    %196 = tpu.matmul %195, %0, %cst_126 {dimension_numbers = #tpu.dot_dimension_numbers<[1], [0], [0], [1], [0, 0, 1, 1], [], []>} : vector<8x128xf32>, vector<128x64xf32>, vector<8x64xf32> -> vector<8x64xf32>
    %197 = vector.broadcast %1 : vector<1x64xf32> to vector<8x64xf32>
    %198 = arith.addf %196, %197 : vector<8x64xf32>
    %cst_127 = arith.constant 0.000000e+00 : f32
    %199 = vector.broadcast %cst_127 : f32 to vector<8x64xf32>
    %200 = arith.maximumf %198, %199 : vector<8x64xf32>
    %c0_128 = arith.constant 0 : index
    %c1536 = arith.constant 1536 : index
    %201 = vector.load %arg14[%c0_128, %c1536] : memref<8x4096xf32, #tpu.memory_space<vmem>>, vector<8x64xf32>
    tpu.vector_store %arg14[%c0_128, %c1536], %200 {strides = array<i32>} : memref<8x4096xf32, #tpu.memory_space<vmem>>, vector<8x64xf32>,
    %c25 = arith.constant 25 : index
    %c0_129 = arith.constant 0 : index
    %c0_130 = arith.constant 0 : index
    %202 = vector.load %arg1[%c25, %c0_129, %c0_130] : memref<64x8x128xf32, #tpu.memory_space<vmem>>, vector<1x8x128xf32>
    %203 = vector.shape_cast %202 : vector<1x8x128xf32> to vector<8x128xf32>
    %cst_131 = arith.constant dense<0.000000e+00> : vector<8x64xf32>
    %204 = tpu.matmul %203, %0, %cst_131 {dimension_numbers = #tpu.dot_dimension_numbers<[1], [0], [0], [1], [0, 0, 1, 1], [], []>} : vector<8x128xf32>, vector<128x64xf32>, vector<8x64xf32> -> vector<8x64xf32>
    %205 = vector.broadcast %1 : vector<1x64xf32> to vector<8x64xf32>
    %206 = arith.addf %204, %205 : vector<8x64xf32>
    %cst_132 = arith.constant 0.000000e+00 : f32
    %207 = vector.broadcast %cst_132 : f32 to vector<8x64xf32>
    %208 = arith.maximumf %206, %207 : vector<8x64xf32>
    %c0_133 = arith.constant 0 : index
    %c1600 = arith.constant 1600 : index
    %209 = vector.load %arg14[%c0_133, %c1600] : memref<8x4096xf32, #tpu.memory_space<vmem>>, vector<8x64xf32>
    tpu.vector_store %arg14[%c0_133, %c1600], %208 {strides = array<i32>} : memref<8x4096xf32, #tpu.memory_space<vmem>>, vector<8x64xf32>,
    %c26 = arith.constant 26 : index
    %c0_134 = arith.constant 0 : index
    %c0_135 = arith.constant 0 : index
    %210 = vector.load %arg1[%c26, %c0_134, %c0_135] : memref<64x8x128xf32, #tpu.memory_space<vmem>>, vector<1x8x128xf32>
    %211 = vector.shape_cast %210 : vector<1x8x128xf32> to vector<8x128xf32>
    %cst_136 = arith.constant dense<0.000000e+00> : vector<8x64xf32>
    %212 = tpu.matmul %211, %0, %cst_136 {dimension_numbers = #tpu.dot_dimension_numbers<[1], [0], [0], [1], [0, 0, 1, 1], [], []>} : vector<8x128xf32>, vector<128x64xf32>, vector<8x64xf32> -> vector<8x64xf32>
    %213 = vector.broadcast %1 : vector<1x64xf32> to vector<8x64xf32>
    %214 = arith.addf %212, %213 : vector<8x64xf32>
    %cst_137 = arith.constant 0.000000e+00 : f32
    %215 = vector.broadcast %cst_137 : f32 to vector<8x64xf32>
    %216 = arith.maximumf %214, %215 : vector<8x64xf32>
    %c0_138 = arith.constant 0 : index
    %c1664 = arith.constant 1664 : index
    %217 = vector.load %arg14[%c0_138, %c1664] : memref<8x4096xf32, #tpu.memory_space<vmem>>, vector<8x64xf32>
    tpu.vector_store %arg14[%c0_138, %c1664], %216 {strides = array<i32>} : memref<8x4096xf32, #tpu.memory_space<vmem>>, vector<8x64xf32>,
    %c27 = arith.constant 27 : index
    %c0_139 = arith.constant 0 : index
    %c0_140 = arith.constant 0 : index
    %218 = vector.load %arg1[%c27, %c0_139, %c0_140] : memref<64x8x128xf32, #tpu.memory_space<vmem>>, vector<1x8x128xf32>
    %219 = vector.shape_cast %218 : vector<1x8x128xf32> to vector<8x128xf32>
    %cst_141 = arith.constant dense<0.000000e+00> : vector<8x64xf32>
    %220 = tpu.matmul %219, %0, %cst_141 {dimension_numbers = #tpu.dot_dimension_numbers<[1], [0], [0], [1], [0, 0, 1, 1], [], []>} : vector<8x128xf32>, vector<128x64xf32>, vector<8x64xf32> -> vector<8x64xf32>
    %221 = vector.broadcast %1 : vector<1x64xf32> to vector<8x64xf32>
    %222 = arith.addf %220, %221 : vector<8x64xf32>
    %cst_142 = arith.constant 0.000000e+00 : f32
    %223 = vector.broadcast %cst_142 : f32 to vector<8x64xf32>
    %224 = arith.maximumf %222, %223 : vector<8x64xf32>
    %c0_143 = arith.constant 0 : index
    %c1728 = arith.constant 1728 : index
    %225 = vector.load %arg14[%c0_143, %c1728] : memref<8x4096xf32, #tpu.memory_space<vmem>>, vector<8x64xf32>
    tpu.vector_store %arg14[%c0_143, %c1728], %224 {strides = array<i32>} : memref<8x4096xf32, #tpu.memory_space<vmem>>, vector<8x64xf32>,
    %c28 = arith.constant 28 : index
    %c0_144 = arith.constant 0 : index
    %c0_145 = arith.constant 0 : index
    %226 = vector.load %arg1[%c28, %c0_144, %c0_145] : memref<64x8x128xf32, #tpu.memory_space<vmem>>, vector<1x8x128xf32>
    %227 = vector.shape_cast %226 : vector<1x8x128xf32> to vector<8x128xf32>
    %cst_146 = arith.constant dense<0.000000e+00> : vector<8x64xf32>
    %228 = tpu.matmul %227, %0, %cst_146 {dimension_numbers = #tpu.dot_dimension_numbers<[1], [0], [0], [1], [0, 0, 1, 1], [], []>} : vector<8x128xf32>, vector<128x64xf32>, vector<8x64xf32> -> vector<8x64xf32>
    %229 = vector.broadcast %1 : vector<1x64xf32> to vector<8x64xf32>
    %230 = arith.addf %228, %229 : vector<8x64xf32>
    %cst_147 = arith.constant 0.000000e+00 : f32
    %231 = vector.broadcast %cst_147 : f32 to vector<8x64xf32>
    %232 = arith.maximumf %230, %231 : vector<8x64xf32>
    %c0_148 = arith.constant 0 : index
    %c1792 = arith.constant 1792 : index
    %233 = vector.load %arg14[%c0_148, %c1792] : memref<8x4096xf32, #tpu.memory_space<vmem>>, vector<8x64xf32>
    tpu.vector_store %arg14[%c0_148, %c1792], %232 {strides = array<i32>} : memref<8x4096xf32, #tpu.memory_space<vmem>>, vector<8x64xf32>,
    %c29 = arith.constant 29 : index
    %c0_149 = arith.constant 0 : index
    %c0_150 = arith.constant 0 : index
    %234 = vector.load %arg1[%c29, %c0_149, %c0_150] : memref<64x8x128xf32, #tpu.memory_space<vmem>>, vector<1x8x128xf32>
    %235 = vector.shape_cast %234 : vector<1x8x128xf32> to vector<8x128xf32>
    %cst_151 = arith.constant dense<0.000000e+00> : vector<8x64xf32>
    %236 = tpu.matmul %235, %0, %cst_151 {dimension_numbers = #tpu.dot_dimension_numbers<[1], [0], [0], [1], [0, 0, 1, 1], [], []>} : vector<8x128xf32>, vector<128x64xf32>, vector<8x64xf32> -> vector<8x64xf32>
    %237 = vector.broadcast %1 : vector<1x64xf32> to vector<8x64xf32>
    %238 = arith.addf %236, %237 : vector<8x64xf32>
    %cst_152 = arith.constant 0.000000e+00 : f32
    %239 = vector.broadcast %cst_152 : f32 to vector<8x64xf32>
    %240 = arith.maximumf %238, %239 : vector<8x64xf32>
    %c0_153 = arith.constant 0 : index
    %c1856 = arith.constant 1856 : index
    %241 = vector.load %arg14[%c0_153, %c1856] : memref<8x4096xf32, #tpu.memory_space<vmem>>, vector<8x64xf32>
    tpu.vector_store %arg14[%c0_153, %c1856], %240 {strides = array<i32>} : memref<8x4096xf32, #tpu.memory_space<vmem>>, vector<8x64xf32>,
    %c30 = arith.constant 30 : index
    %c0_154 = arith.constant 0 : index
    %c0_155 = arith.constant 0 : index
    %242 = vector.load %arg1[%c30, %c0_154, %c0_155] : memref<64x8x128xf32, #tpu.memory_space<vmem>>, vector<1x8x128xf32>
    %243 = vector.shape_cast %242 : vector<1x8x128xf32> to vector<8x128xf32>
    %cst_156 = arith.constant dense<0.000000e+00> : vector<8x64xf32>
    %244 = tpu.matmul %243, %0, %cst_156 {dimension_numbers = #tpu.dot_dimension_numbers<[1], [0], [0], [1], [0, 0, 1, 1], [], []>} : vector<8x128xf32>, vector<128x64xf32>, vector<8x64xf32> -> vector<8x64xf32>
    %245 = vector.broadcast %1 : vector<1x64xf32> to vector<8x64xf32>
    %246 = arith.addf %244, %245 : vector<8x64xf32>
    %cst_157 = arith.constant 0.000000e+00 : f32
    %247 = vector.broadcast %cst_157 : f32 to vector<8x64xf32>
    %248 = arith.maximumf %246, %247 : vector<8x64xf32>
    %c0_158 = arith.constant 0 : index
    %c1920 = arith.constant 1920 : index
    %249 = vector.load %arg14[%c0_158, %c1920] : memref<8x4096xf32, #tpu.memory_space<vmem>>, vector<8x64xf32>
    tpu.vector_store %arg14[%c0_158, %c1920], %248 {strides = array<i32>} : memref<8x4096xf32, #tpu.memory_space<vmem>>, vector<8x64xf32>,
    %c31 = arith.constant 31 : index
    %c0_159 = arith.constant 0 : index
    %c0_160 = arith.constant 0 : index
    %250 = vector.load %arg1[%c31, %c0_159, %c0_160] : memref<64x8x128xf32, #tpu.memory_space<vmem>>, vector<1x8x128xf32>
    %251 = vector.shape_cast %250 : vector<1x8x128xf32> to vector<8x128xf32>
    %cst_161 = arith.constant dense<0.000000e+00> : vector<8x64xf32>
    %252 = tpu.matmul %251, %0, %cst_161 {dimension_numbers = #tpu.dot_dimension_numbers<[1], [0], [0], [1], [0, 0, 1, 1], [], []>} : vector<8x128xf32>, vector<128x64xf32>, vector<8x64xf32> -> vector<8x64xf32>
    %253 = vector.broadcast %1 : vector<1x64xf32> to vector<8x64xf32>
    %254 = arith.addf %252, %253 : vector<8x64xf32>
    %cst_162 = arith.constant 0.000000e+00 : f32
    %255 = vector.broadcast %cst_162 : f32 to vector<8x64xf32>
    %256 = arith.maximumf %254, %255 : vector<8x64xf32>
    %c0_163 = arith.constant 0 : index
    %c1984 = arith.constant 1984 : index
    %257 = vector.load %arg14[%c0_163, %c1984] : memref<8x4096xf32, #tpu.memory_space<vmem>>, vector<8x64xf32>
    tpu.vector_store %arg14[%c0_163, %c1984], %256 {strides = array<i32>} : memref<8x4096xf32, #tpu.memory_space<vmem>>, vector<8x64xf32>,
    %c32 = arith.constant 32 : index
    %c0_164 = arith.constant 0 : index
    %c0_165 = arith.constant 0 : index
    %258 = vector.load %arg1[%c32, %c0_164, %c0_165] : memref<64x8x128xf32, #tpu.memory_space<vmem>>, vector<1x8x128xf32>
    %259 = vector.shape_cast %258 : vector<1x8x128xf32> to vector<8x128xf32>
    %cst_166 = arith.constant dense<0.000000e+00> : vector<8x64xf32>
    %260 = tpu.matmul %259, %0, %cst_166 {dimension_numbers = #tpu.dot_dimension_numbers<[1], [0], [0], [1], [0, 0, 1, 1], [], []>} : vector<8x128xf32>, vector<128x64xf32>, vector<8x64xf32> -> vector<8x64xf32>
    %261 = vector.broadcast %1 : vector<1x64xf32> to vector<8x64xf32>
    %262 = arith.addf %260, %261 : vector<8x64xf32>
    %cst_167 = arith.constant 0.000000e+00 : f32
    %263 = vector.broadcast %cst_167 : f32 to vector<8x64xf32>
    %264 = arith.maximumf %262, %263 : vector<8x64xf32>
    %c0_168 = arith.constant 0 : index
    %c2048 = arith.constant 2048 : index
    %265 = vector.load %arg14[%c0_168, %c2048] : memref<8x4096xf32, #tpu.memory_space<vmem>>, vector<8x64xf32>
    tpu.vector_store %arg14[%c0_168, %c2048], %264 {strides = array<i32>} : memref<8x4096xf32, #tpu.memory_space<vmem>>, vector<8x64xf32>,
    %c33 = arith.constant 33 : index
    %c0_169 = arith.constant 0 : index
    %c0_170 = arith.constant 0 : index
    %266 = vector.load %arg1[%c33, %c0_169, %c0_170] : memref<64x8x128xf32, #tpu.memory_space<vmem>>, vector<1x8x128xf32>
    %267 = vector.shape_cast %266 : vector<1x8x128xf32> to vector<8x128xf32>
    %cst_171 = arith.constant dense<0.000000e+00> : vector<8x64xf32>
    %268 = tpu.matmul %267, %0, %cst_171 {dimension_numbers = #tpu.dot_dimension_numbers<[1], [0], [0], [1], [0, 0, 1, 1], [], []>} : vector<8x128xf32>, vector<128x64xf32>, vector<8x64xf32> -> vector<8x64xf32>
    %269 = vector.broadcast %1 : vector<1x64xf32> to vector<8x64xf32>
    %270 = arith.addf %268, %269 : vector<8x64xf32>
    %cst_172 = arith.constant 0.000000e+00 : f32
    %271 = vector.broadcast %cst_172 : f32 to vector<8x64xf32>
    %272 = arith.maximumf %270, %271 : vector<8x64xf32>
    %c0_173 = arith.constant 0 : index
    %c2112 = arith.constant 2112 : index
    %273 = vector.load %arg14[%c0_173, %c2112] : memref<8x4096xf32, #tpu.memory_space<vmem>>, vector<8x64xf32>
    tpu.vector_store %arg14[%c0_173, %c2112], %272 {strides = array<i32>} : memref<8x4096xf32, #tpu.memory_space<vmem>>, vector<8x64xf32>,
    %c34 = arith.constant 34 : index
    %c0_174 = arith.constant 0 : index
    %c0_175 = arith.constant 0 : index
    %274 = vector.load %arg1[%c34, %c0_174, %c0_175] : memref<64x8x128xf32, #tpu.memory_space<vmem>>, vector<1x8x128xf32>
    %275 = vector.shape_cast %274 : vector<1x8x128xf32> to vector<8x128xf32>
    %cst_176 = arith.constant dense<0.000000e+00> : vector<8x64xf32>
    %276 = tpu.matmul %275, %0, %cst_176 {dimension_numbers = #tpu.dot_dimension_numbers<[1], [0], [0], [1], [0, 0, 1, 1], [], []>} : vector<8x128xf32>, vector<128x64xf32>, vector<8x64xf32> -> vector<8x64xf32>
    %277 = vector.broadcast %1 : vector<1x64xf32> to vector<8x64xf32>
    %278 = arith.addf %276, %277 : vector<8x64xf32>
    %cst_177 = arith.constant 0.000000e+00 : f32
    %279 = vector.broadcast %cst_177 : f32 to vector<8x64xf32>
    %280 = arith.maximumf %278, %279 : vector<8x64xf32>
    %c0_178 = arith.constant 0 : index
    %c2176 = arith.constant 2176 : index
    %281 = vector.load %arg14[%c0_178, %c2176] : memref<8x4096xf32, #tpu.memory_space<vmem>>, vector<8x64xf32>
    tpu.vector_store %arg14[%c0_178, %c2176], %280 {strides = array<i32>} : memref<8x4096xf32, #tpu.memory_space<vmem>>, vector<8x64xf32>,
    %c35 = arith.constant 35 : index
    %c0_179 = arith.constant 0 : index
    %c0_180 = arith.constant 0 : index
    %282 = vector.load %arg1[%c35, %c0_179, %c0_180] : memref<64x8x128xf32, #tpu.memory_space<vmem>>, vector<1x8x128xf32>
    %283 = vector.shape_cast %282 : vector<1x8x128xf32> to vector<8x128xf32>
    %cst_181 = arith.constant dense<0.000000e+00> : vector<8x64xf32>
    %284 = tpu.matmul %283, %0, %cst_181 {dimension_numbers = #tpu.dot_dimension_numbers<[1], [0], [0], [1], [0, 0, 1, 1], [], []>} : vector<8x128xf32>, vector<128x64xf32>, vector<8x64xf32> -> vector<8x64xf32>
    %285 = vector.broadcast %1 : vector<1x64xf32> to vector<8x64xf32>
    %286 = arith.addf %284, %285 : vector<8x64xf32>
    %cst_182 = arith.constant 0.000000e+00 : f32
    %287 = vector.broadcast %cst_182 : f32 to vector<8x64xf32>
    %288 = arith.maximumf %286, %287 : vector<8x64xf32>
    %c0_183 = arith.constant 0 : index
    %c2240 = arith.constant 2240 : index
    %289 = vector.load %arg14[%c0_183, %c2240] : memref<8x4096xf32, #tpu.memory_space<vmem>>, vector<8x64xf32>
    tpu.vector_store %arg14[%c0_183, %c2240], %288 {strides = array<i32>} : memref<8x4096xf32, #tpu.memory_space<vmem>>, vector<8x64xf32>,
    %c36 = arith.constant 36 : index
    %c0_184 = arith.constant 0 : index
    %c0_185 = arith.constant 0 : index
    %290 = vector.load %arg1[%c36, %c0_184, %c0_185] : memref<64x8x128xf32, #tpu.memory_space<vmem>>, vector<1x8x128xf32>
    %291 = vector.shape_cast %290 : vector<1x8x128xf32> to vector<8x128xf32>
    %cst_186 = arith.constant dense<0.000000e+00> : vector<8x64xf32>
    %292 = tpu.matmul %291, %0, %cst_186 {dimension_numbers = #tpu.dot_dimension_numbers<[1], [0], [0], [1], [0, 0, 1, 1], [], []>} : vector<8x128xf32>, vector<128x64xf32>, vector<8x64xf32> -> vector<8x64xf32>
    %293 = vector.broadcast %1 : vector<1x64xf32> to vector<8x64xf32>
    %294 = arith.addf %292, %293 : vector<8x64xf32>
    %cst_187 = arith.constant 0.000000e+00 : f32
    %295 = vector.broadcast %cst_187 : f32 to vector<8x64xf32>
    %296 = arith.maximumf %294, %295 : vector<8x64xf32>
    %c0_188 = arith.constant 0 : index
    %c2304 = arith.constant 2304 : index
    %297 = vector.load %arg14[%c0_188, %c2304] : memref<8x4096xf32, #tpu.memory_space<vmem>>, vector<8x64xf32>
    tpu.vector_store %arg14[%c0_188, %c2304], %296 {strides = array<i32>} : memref<8x4096xf32, #tpu.memory_space<vmem>>, vector<8x64xf32>,
    %c37 = arith.constant 37 : index
    %c0_189 = arith.constant 0 : index
    %c0_190 = arith.constant 0 : index
    %298 = vector.load %arg1[%c37, %c0_189, %c0_190] : memref<64x8x128xf32, #tpu.memory_space<vmem>>, vector<1x8x128xf32>
    %299 = vector.shape_cast %298 : vector<1x8x128xf32> to vector<8x128xf32>
    %cst_191 = arith.constant dense<0.000000e+00> : vector<8x64xf32>
    %300 = tpu.matmul %299, %0, %cst_191 {dimension_numbers = #tpu.dot_dimension_numbers<[1], [0], [0], [1], [0, 0, 1, 1], [], []>} : vector<8x128xf32>, vector<128x64xf32>, vector<8x64xf32> -> vector<8x64xf32>
    %301 = vector.broadcast %1 : vector<1x64xf32> to vector<8x64xf32>
    %302 = arith.addf %300, %301 : vector<8x64xf32>
    %cst_192 = arith.constant 0.000000e+00 : f32
    %303 = vector.broadcast %cst_192 : f32 to vector<8x64xf32>
    %304 = arith.maximumf %302, %303 : vector<8x64xf32>
    %c0_193 = arith.constant 0 : index
    %c2368 = arith.constant 2368 : index
    %305 = vector.load %arg14[%c0_193, %c2368] : memref<8x4096xf32, #tpu.memory_space<vmem>>, vector<8x64xf32>
    tpu.vector_store %arg14[%c0_193, %c2368], %304 {strides = array<i32>} : memref<8x4096xf32, #tpu.memory_space<vmem>>, vector<8x64xf32>,
    %c38 = arith.constant 38 : index
    %c0_194 = arith.constant 0 : index
    %c0_195 = arith.constant 0 : index
    %306 = vector.load %arg1[%c38, %c0_194, %c0_195] : memref<64x8x128xf32, #tpu.memory_space<vmem>>, vector<1x8x128xf32>
    %307 = vector.shape_cast %306 : vector<1x8x128xf32> to vector<8x128xf32>
    %cst_196 = arith.constant dense<0.000000e+00> : vector<8x64xf32>
    %308 = tpu.matmul %307, %0, %cst_196 {dimension_numbers = #tpu.dot_dimension_numbers<[1], [0], [0], [1], [0, 0, 1, 1], [], []>} : vector<8x128xf32>, vector<128x64xf32>, vector<8x64xf32> -> vector<8x64xf32>
    %309 = vector.broadcast %1 : vector<1x64xf32> to vector<8x64xf32>
    %310 = arith.addf %308, %309 : vector<8x64xf32>
    %cst_197 = arith.constant 0.000000e+00 : f32
    %311 = vector.broadcast %cst_197 : f32 to vector<8x64xf32>
    %312 = arith.maximumf %310, %311 : vector<8x64xf32>
    %c0_198 = arith.constant 0 : index
    %c2432 = arith.constant 2432 : index
    %313 = vector.load %arg14[%c0_198, %c2432] : memref<8x4096xf32, #tpu.memory_space<vmem>>, vector<8x64xf32>
    tpu.vector_store %arg14[%c0_198, %c2432], %312 {strides = array<i32>} : memref<8x4096xf32, #tpu.memory_space<vmem>>, vector<8x64xf32>,
    %c39 = arith.constant 39 : index
    %c0_199 = arith.constant 0 : index
    %c0_200 = arith.constant 0 : index
    %314 = vector.load %arg1[%c39, %c0_199, %c0_200] : memref<64x8x128xf32, #tpu.memory_space<vmem>>, vector<1x8x128xf32>
    %315 = vector.shape_cast %314 : vector<1x8x128xf32> to vector<8x128xf32>
    %cst_201 = arith.constant dense<0.000000e+00> : vector<8x64xf32>
    %316 = tpu.matmul %315, %0, %cst_201 {dimension_numbers = #tpu.dot_dimension_numbers<[1], [0], [0], [1], [0, 0, 1, 1], [], []>} : vector<8x128xf32>, vector<128x64xf32>, vector<8x64xf32> -> vector<8x64xf32>
    %317 = vector.broadcast %1 : vector<1x64xf32> to vector<8x64xf32>
    %318 = arith.addf %316, %317 : vector<8x64xf32>
    %cst_202 = arith.constant 0.000000e+00 : f32
    %319 = vector.broadcast %cst_202 : f32 to vector<8x64xf32>
    %320 = arith.maximumf %318, %319 : vector<8x64xf32>
    %c0_203 = arith.constant 0 : index
    %c2496 = arith.constant 2496 : index
    %321 = vector.load %arg14[%c0_203, %c2496] : memref<8x4096xf32, #tpu.memory_space<vmem>>, vector<8x64xf32>
    tpu.vector_store %arg14[%c0_203, %c2496], %320 {strides = array<i32>} : memref<8x4096xf32, #tpu.memory_space<vmem>>, vector<8x64xf32>,
    %c40 = arith.constant 40 : index
    %c0_204 = arith.constant 0 : index
    %c0_205 = arith.constant 0 : index
    %322 = vector.load %arg1[%c40, %c0_204, %c0_205] : memref<64x8x128xf32, #tpu.memory_space<vmem>>, vector<1x8x128xf32>
    %323 = vector.shape_cast %322 : vector<1x8x128xf32> to vector<8x128xf32>
    %cst_206 = arith.constant dense<0.000000e+00> : vector<8x64xf32>
    %324 = tpu.matmul %323, %0, %cst_206 {dimension_numbers = #tpu.dot_dimension_numbers<[1], [0], [0], [1], [0, 0, 1, 1], [], []>} : vector<8x128xf32>, vector<128x64xf32>, vector<8x64xf32> -> vector<8x64xf32>
    %325 = vector.broadcast %1 : vector<1x64xf32> to vector<8x64xf32>
    %326 = arith.addf %324, %325 : vector<8x64xf32>
    %cst_207 = arith.constant 0.000000e+00 : f32
    %327 = vector.broadcast %cst_207 : f32 to vector<8x64xf32>
    %328 = arith.maximumf %326, %327 : vector<8x64xf32>
    %c0_208 = arith.constant 0 : index
    %c2560 = arith.constant 2560 : index
    %329 = vector.load %arg14[%c0_208, %c2560] : memref<8x4096xf32, #tpu.memory_space<vmem>>, vector<8x64xf32>
    tpu.vector_store %arg14[%c0_208, %c2560], %328 {strides = array<i32>} : memref<8x4096xf32, #tpu.memory_space<vmem>>, vector<8x64xf32>,
    %c41 = arith.constant 41 : index
    %c0_209 = arith.constant 0 : index
    %c0_210 = arith.constant 0 : index
    %330 = vector.load %arg1[%c41, %c0_209, %c0_210] : memref<64x8x128xf32, #tpu.memory_space<vmem>>, vector<1x8x128xf32>
    %331 = vector.shape_cast %330 : vector<1x8x128xf32> to vector<8x128xf32>
    %cst_211 = arith.constant dense<0.000000e+00> : vector<8x64xf32>
    %332 = tpu.matmul %331, %0, %cst_211 {dimension_numbers = #tpu.dot_dimension_numbers<[1], [0], [0], [1], [0, 0, 1, 1], [], []>} : vector<8x128xf32>, vector<128x64xf32>, vector<8x64xf32> -> vector<8x64xf32>
    %333 = vector.broadcast %1 : vector<1x64xf32> to vector<8x64xf32>
    %334 = arith.addf %332, %333 : vector<8x64xf32>
    %cst_212 = arith.constant 0.000000e+00 : f32
    %335 = vector.broadcast %cst_212 : f32 to vector<8x64xf32>
    %336 = arith.maximumf %334, %335 : vector<8x64xf32>
    %c0_213 = arith.constant 0 : index
    %c2624 = arith.constant 2624 : index
    %337 = vector.load %arg14[%c0_213, %c2624] : memref<8x4096xf32, #tpu.memory_space<vmem>>, vector<8x64xf32>
    tpu.vector_store %arg14[%c0_213, %c2624], %336 {strides = array<i32>} : memref<8x4096xf32, #tpu.memory_space<vmem>>, vector<8x64xf32>,
    %c42 = arith.constant 42 : index
    %c0_214 = arith.constant 0 : index
    %c0_215 = arith.constant 0 : index
    %338 = vector.load %arg1[%c42, %c0_214, %c0_215] : memref<64x8x128xf32, #tpu.memory_space<vmem>>, vector<1x8x128xf32>
    %339 = vector.shape_cast %338 : vector<1x8x128xf32> to vector<8x128xf32>
    %cst_216 = arith.constant dense<0.000000e+00> : vector<8x64xf32>
    %340 = tpu.matmul %339, %0, %cst_216 {dimension_numbers = #tpu.dot_dimension_numbers<[1], [0], [0], [1], [0, 0, 1, 1], [], []>} : vector<8x128xf32>, vector<128x64xf32>, vector<8x64xf32> -> vector<8x64xf32>
    %341 = vector.broadcast %1 : vector<1x64xf32> to vector<8x64xf32>
    %342 = arith.addf %340, %341 : vector<8x64xf32>
    %cst_217 = arith.constant 0.000000e+00 : f32
    %343 = vector.broadcast %cst_217 : f32 to vector<8x64xf32>
    %344 = arith.maximumf %342, %343 : vector<8x64xf32>
    %c0_218 = arith.constant 0 : index
    %c2688 = arith.constant 2688 : index
    %345 = vector.load %arg14[%c0_218, %c2688] : memref<8x4096xf32, #tpu.memory_space<vmem>>, vector<8x64xf32>
    tpu.vector_store %arg14[%c0_218, %c2688], %344 {strides = array<i32>} : memref<8x4096xf32, #tpu.memory_space<vmem>>, vector<8x64xf32>,
    %c43 = arith.constant 43 : index
    %c0_219 = arith.constant 0 : index
    %c0_220 = arith.constant 0 : index
    %346 = vector.load %arg1[%c43, %c0_219, %c0_220] : memref<64x8x128xf32, #tpu.memory_space<vmem>>, vector<1x8x128xf32>
    %347 = vector.shape_cast %346 : vector<1x8x128xf32> to vector<8x128xf32>
    %cst_221 = arith.constant dense<0.000000e+00> : vector<8x64xf32>
    %348 = tpu.matmul %347, %0, %cst_221 {dimension_numbers = #tpu.dot_dimension_numbers<[1], [0], [0], [1], [0, 0, 1, 1], [], []>} : vector<8x128xf32>, vector<128x64xf32>, vector<8x64xf32> -> vector<8x64xf32>
    %349 = vector.broadcast %1 : vector<1x64xf32> to vector<8x64xf32>
    %350 = arith.addf %348, %349 : vector<8x64xf32>
    %cst_222 = arith.constant 0.000000e+00 : f32
    %351 = vector.broadcast %cst_222 : f32 to vector<8x64xf32>
    %352 = arith.maximumf %350, %351 : vector<8x64xf32>
    %c0_223 = arith.constant 0 : index
    %c2752 = arith.constant 2752 : index
    %353 = vector.load %arg14[%c0_223, %c2752] : memref<8x4096xf32, #tpu.memory_space<vmem>>, vector<8x64xf32>
    tpu.vector_store %arg14[%c0_223, %c2752], %352 {strides = array<i32>} : memref<8x4096xf32, #tpu.memory_space<vmem>>, vector<8x64xf32>,
    %c44 = arith.constant 44 : index
    %c0_224 = arith.constant 0 : index
    %c0_225 = arith.constant 0 : index
    %354 = vector.load %arg1[%c44, %c0_224, %c0_225] : memref<64x8x128xf32, #tpu.memory_space<vmem>>, vector<1x8x128xf32>
    %355 = vector.shape_cast %354 : vector<1x8x128xf32> to vector<8x128xf32>
    %cst_226 = arith.constant dense<0.000000e+00> : vector<8x64xf32>
    %356 = tpu.matmul %355, %0, %cst_226 {dimension_numbers = #tpu.dot_dimension_numbers<[1], [0], [0], [1], [0, 0, 1, 1], [], []>} : vector<8x128xf32>, vector<128x64xf32>, vector<8x64xf32> -> vector<8x64xf32>
    %357 = vector.broadcast %1 : vector<1x64xf32> to vector<8x64xf32>
    %358 = arith.addf %356, %357 : vector<8x64xf32>
    %cst_227 = arith.constant 0.000000e+00 : f32
    %359 = vector.broadcast %cst_227 : f32 to vector<8x64xf32>
    %360 = arith.maximumf %358, %359 : vector<8x64xf32>
    %c0_228 = arith.constant 0 : index
    %c2816 = arith.constant 2816 : index
    %361 = vector.load %arg14[%c0_228, %c2816] : memref<8x4096xf32, #tpu.memory_space<vmem>>, vector<8x64xf32>
    tpu.vector_store %arg14[%c0_228, %c2816], %360 {strides = array<i32>} : memref<8x4096xf32, #tpu.memory_space<vmem>>, vector<8x64xf32>,
    %c45 = arith.constant 45 : index
    %c0_229 = arith.constant 0 : index
    %c0_230 = arith.constant 0 : index
    %362 = vector.load %arg1[%c45, %c0_229, %c0_230] : memref<64x8x128xf32, #tpu.memory_space<vmem>>, vector<1x8x128xf32>
    %363 = vector.shape_cast %362 : vector<1x8x128xf32> to vector<8x128xf32>
    %cst_231 = arith.constant dense<0.000000e+00> : vector<8x64xf32>
    %364 = tpu.matmul %363, %0, %cst_231 {dimension_numbers = #tpu.dot_dimension_numbers<[1], [0], [0], [1], [0, 0, 1, 1], [], []>} : vector<8x128xf32>, vector<128x64xf32>, vector<8x64xf32> -> vector<8x64xf32>
    %365 = vector.broadcast %1 : vector<1x64xf32> to vector<8x64xf32>
    %366 = arith.addf %364, %365 : vector<8x64xf32>
    %cst_232 = arith.constant 0.000000e+00 : f32
    %367 = vector.broadcast %cst_232 : f32 to vector<8x64xf32>
    %368 = arith.maximumf %366, %367 : vector<8x64xf32>
    %c0_233 = arith.constant 0 : index
    %c2880 = arith.constant 2880 : index
    %369 = vector.load %arg14[%c0_233, %c2880] : memref<8x4096xf32, #tpu.memory_space<vmem>>, vector<8x64xf32>
    tpu.vector_store %arg14[%c0_233, %c2880], %368 {strides = array<i32>} : memref<8x4096xf32, #tpu.memory_space<vmem>>, vector<8x64xf32>,
    %c46 = arith.constant 46 : index
    %c0_234 = arith.constant 0 : index
    %c0_235 = arith.constant 0 : index
    %370 = vector.load %arg1[%c46, %c0_234, %c0_235] : memref<64x8x128xf32, #tpu.memory_space<vmem>>, vector<1x8x128xf32>
    %371 = vector.shape_cast %370 : vector<1x8x128xf32> to vector<8x128xf32>
    %cst_236 = arith.constant dense<0.000000e+00> : vector<8x64xf32>
    %372 = tpu.matmul %371, %0, %cst_236 {dimension_numbers = #tpu.dot_dimension_numbers<[1], [0], [0], [1], [0, 0, 1, 1], [], []>} : vector<8x128xf32>, vector<128x64xf32>, vector<8x64xf32> -> vector<8x64xf32>
    %373 = vector.broadcast %1 : vector<1x64xf32> to vector<8x64xf32>
    %374 = arith.addf %372, %373 : vector<8x64xf32>
    %cst_237 = arith.constant 0.000000e+00 : f32
    %375 = vector.broadcast %cst_237 : f32 to vector<8x64xf32>
    %376 = arith.maximumf %374, %375 : vector<8x64xf32>
    %c0_238 = arith.constant 0 : index
    %c2944 = arith.constant 2944 : index
    %377 = vector.load %arg14[%c0_238, %c2944] : memref<8x4096xf32, #tpu.memory_space<vmem>>, vector<8x64xf32>
    tpu.vector_store %arg14[%c0_238, %c2944], %376 {strides = array<i32>} : memref<8x4096xf32, #tpu.memory_space<vmem>>, vector<8x64xf32>,
    %c47 = arith.constant 47 : index
    %c0_239 = arith.constant 0 : index
    %c0_240 = arith.constant 0 : index
    %378 = vector.load %arg1[%c47, %c0_239, %c0_240] : memref<64x8x128xf32, #tpu.memory_space<vmem>>, vector<1x8x128xf32>
    %379 = vector.shape_cast %378 : vector<1x8x128xf32> to vector<8x128xf32>
    %cst_241 = arith.constant dense<0.000000e+00> : vector<8x64xf32>
    %380 = tpu.matmul %379, %0, %cst_241 {dimension_numbers = #tpu.dot_dimension_numbers<[1], [0], [0], [1], [0, 0, 1, 1], [], []>} : vector<8x128xf32>, vector<128x64xf32>, vector<8x64xf32> -> vector<8x64xf32>
    %381 = vector.broadcast %1 : vector<1x64xf32> to vector<8x64xf32>
    %382 = arith.addf %380, %381 : vector<8x64xf32>
    %cst_242 = arith.constant 0.000000e+00 : f32
    %383 = vector.broadcast %cst_242 : f32 to vector<8x64xf32>
    %384 = arith.maximumf %382, %383 : vector<8x64xf32>
    %c0_243 = arith.constant 0 : index
    %c3008 = arith.constant 3008 : index
    %385 = vector.load %arg14[%c0_243, %c3008] : memref<8x4096xf32, #tpu.memory_space<vmem>>, vector<8x64xf32>
    tpu.vector_store %arg14[%c0_243, %c3008], %384 {strides = array<i32>} : memref<8x4096xf32, #tpu.memory_space<vmem>>, vector<8x64xf32>,
    %c48 = arith.constant 48 : index
    %c0_244 = arith.constant 0 : index
    %c0_245 = arith.constant 0 : index
    %386 = vector.load %arg1[%c48, %c0_244, %c0_245] : memref<64x8x128xf32, #tpu.memory_space<vmem>>, vector<1x8x128xf32>
    %387 = vector.shape_cast %386 : vector<1x8x128xf32> to vector<8x128xf32>
    %cst_246 = arith.constant dense<0.000000e+00> : vector<8x64xf32>
    %388 = tpu.matmul %387, %0, %cst_246 {dimension_numbers = #tpu.dot_dimension_numbers<[1], [0], [0], [1], [0, 0, 1, 1], [], []>} : vector<8x128xf32>, vector<128x64xf32>, vector<8x64xf32> -> vector<8x64xf32>
    %389 = vector.broadcast %1 : vector<1x64xf32> to vector<8x64xf32>
    %390 = arith.addf %388, %389 : vector<8x64xf32>
    %cst_247 = arith.constant 0.000000e+00 : f32
    %391 = vector.broadcast %cst_247 : f32 to vector<8x64xf32>
    %392 = arith.maximumf %390, %391 : vector<8x64xf32>
    %c0_248 = arith.constant 0 : index
    %c3072 = arith.constant 3072 : index
    %393 = vector.load %arg14[%c0_248, %c3072] : memref<8x4096xf32, #tpu.memory_space<vmem>>, vector<8x64xf32>
    tpu.vector_store %arg14[%c0_248, %c3072], %392 {strides = array<i32>} : memref<8x4096xf32, #tpu.memory_space<vmem>>, vector<8x64xf32>,
    %c49 = arith.constant 49 : index
    %c0_249 = arith.constant 0 : index
    %c0_250 = arith.constant 0 : index
    %394 = vector.load %arg1[%c49, %c0_249, %c0_250] : memref<64x8x128xf32, #tpu.memory_space<vmem>>, vector<1x8x128xf32>
    %395 = vector.shape_cast %394 : vector<1x8x128xf32> to vector<8x128xf32>
    %cst_251 = arith.constant dense<0.000000e+00> : vector<8x64xf32>
    %396 = tpu.matmul %395, %0, %cst_251 {dimension_numbers = #tpu.dot_dimension_numbers<[1], [0], [0], [1], [0, 0, 1, 1], [], []>} : vector<8x128xf32>, vector<128x64xf32>, vector<8x64xf32> -> vector<8x64xf32>
    %397 = vector.broadcast %1 : vector<1x64xf32> to vector<8x64xf32>
    %398 = arith.addf %396, %397 : vector<8x64xf32>
    %cst_252 = arith.constant 0.000000e+00 : f32
    %399 = vector.broadcast %cst_252 : f32 to vector<8x64xf32>
    %400 = arith.maximumf %398, %399 : vector<8x64xf32>
    %c0_253 = arith.constant 0 : index
    %c3136 = arith.constant 3136 : index
    %401 = vector.load %arg14[%c0_253, %c3136] : memref<8x4096xf32, #tpu.memory_space<vmem>>, vector<8x64xf32>
    tpu.vector_store %arg14[%c0_253, %c3136], %400 {strides = array<i32>} : memref<8x4096xf32, #tpu.memory_space<vmem>>, vector<8x64xf32>,
    %c50 = arith.constant 50 : index
    %c0_254 = arith.constant 0 : index
    %c0_255 = arith.constant 0 : index
    %402 = vector.load %arg1[%c50, %c0_254, %c0_255] : memref<64x8x128xf32, #tpu.memory_space<vmem>>, vector<1x8x128xf32>
    %403 = vector.shape_cast %402 : vector<1x8x128xf32> to vector<8x128xf32>
    %cst_256 = arith.constant dense<0.000000e+00> : vector<8x64xf32>
    %404 = tpu.matmul %403, %0, %cst_256 {dimension_numbers = #tpu.dot_dimension_numbers<[1], [0], [0], [1], [0, 0, 1, 1], [], []>} : vector<8x128xf32>, vector<128x64xf32>, vector<8x64xf32> -> vector<8x64xf32>
    %405 = vector.broadcast %1 : vector<1x64xf32> to vector<8x64xf32>
    %406 = arith.addf %404, %405 : vector<8x64xf32>
    %cst_257 = arith.constant 0.000000e+00 : f32
    %407 = vector.broadcast %cst_257 : f32 to vector<8x64xf32>
    %408 = arith.maximumf %406, %407 : vector<8x64xf32>
    %c0_258 = arith.constant 0 : index
    %c3200 = arith.constant 3200 : index
    %409 = vector.load %arg14[%c0_258, %c3200] : memref<8x4096xf32, #tpu.memory_space<vmem>>, vector<8x64xf32>
    tpu.vector_store %arg14[%c0_258, %c3200], %408 {strides = array<i32>} : memref<8x4096xf32, #tpu.memory_space<vmem>>, vector<8x64xf32>,
    %c51 = arith.constant 51 : index
    %c0_259 = arith.constant 0 : index
    %c0_260 = arith.constant 0 : index
    %410 = vector.load %arg1[%c51, %c0_259, %c0_260] : memref<64x8x128xf32, #tpu.memory_space<vmem>>, vector<1x8x128xf32>
    %411 = vector.shape_cast %410 : vector<1x8x128xf32> to vector<8x128xf32>
    %cst_261 = arith.constant dense<0.000000e+00> : vector<8x64xf32>
    %412 = tpu.matmul %411, %0, %cst_261 {dimension_numbers = #tpu.dot_dimension_numbers<[1], [0], [0], [1], [0, 0, 1, 1], [], []>} : vector<8x128xf32>, vector<128x64xf32>, vector<8x64xf32> -> vector<8x64xf32>
    %413 = vector.broadcast %1 : vector<1x64xf32> to vector<8x64xf32>
    %414 = arith.addf %412, %413 : vector<8x64xf32>
    %cst_262 = arith.constant 0.000000e+00 : f32
    %415 = vector.broadcast %cst_262 : f32 to vector<8x64xf32>
    %416 = arith.maximumf %414, %415 : vector<8x64xf32>
    %c0_263 = arith.constant 0 : index
    %c3264 = arith.constant 3264 : index
    %417 = vector.load %arg14[%c0_263, %c3264] : memref<8x4096xf32, #tpu.memory_space<vmem>>, vector<8x64xf32>
    tpu.vector_store %arg14[%c0_263, %c3264], %416 {strides = array<i32>} : memref<8x4096xf32, #tpu.memory_space<vmem>>, vector<8x64xf32>,
    %c52 = arith.constant 52 : index
    %c0_264 = arith.constant 0 : index
    %c0_265 = arith.constant 0 : index
    %418 = vector.load %arg1[%c52, %c0_264, %c0_265] : memref<64x8x128xf32, #tpu.memory_space<vmem>>, vector<1x8x128xf32>
    %419 = vector.shape_cast %418 : vector<1x8x128xf32> to vector<8x128xf32>
    %cst_266 = arith.constant dense<0.000000e+00> : vector<8x64xf32>
    %420 = tpu.matmul %419, %0, %cst_266 {dimension_numbers = #tpu.dot_dimension_numbers<[1], [0], [0], [1], [0, 0, 1, 1], [], []>} : vector<8x128xf32>, vector<128x64xf32>, vector<8x64xf32> -> vector<8x64xf32>
    %421 = vector.broadcast %1 : vector<1x64xf32> to vector<8x64xf32>
    %422 = arith.addf %420, %421 : vector<8x64xf32>
    %cst_267 = arith.constant 0.000000e+00 : f32
    %423 = vector.broadcast %cst_267 : f32 to vector<8x64xf32>
    %424 = arith.maximumf %422, %423 : vector<8x64xf32>
    %c0_268 = arith.constant 0 : index
    %c3328 = arith.constant 3328 : index
    %425 = vector.load %arg14[%c0_268, %c3328] : memref<8x4096xf32, #tpu.memory_space<vmem>>, vector<8x64xf32>
    tpu.vector_store %arg14[%c0_268, %c3328], %424 {strides = array<i32>} : memref<8x4096xf32, #tpu.memory_space<vmem>>, vector<8x64xf32>,
    %c53 = arith.constant 53 : index
    %c0_269 = arith.constant 0 : index
    %c0_270 = arith.constant 0 : index
    %426 = vector.load %arg1[%c53, %c0_269, %c0_270] : memref<64x8x128xf32, #tpu.memory_space<vmem>>, vector<1x8x128xf32>
    %427 = vector.shape_cast %426 : vector<1x8x128xf32> to vector<8x128xf32>
    %cst_271 = arith.constant dense<0.000000e+00> : vector<8x64xf32>
    %428 = tpu.matmul %427, %0, %cst_271 {dimension_numbers = #tpu.dot_dimension_numbers<[1], [0], [0], [1], [0, 0, 1, 1], [], []>} : vector<8x128xf32>, vector<128x64xf32>, vector<8x64xf32> -> vector<8x64xf32>
    %429 = vector.broadcast %1 : vector<1x64xf32> to vector<8x64xf32>
    %430 = arith.addf %428, %429 : vector<8x64xf32>
    %cst_272 = arith.constant 0.000000e+00 : f32
    %431 = vector.broadcast %cst_272 : f32 to vector<8x64xf32>
    %432 = arith.maximumf %430, %431 : vector<8x64xf32>
    %c0_273 = arith.constant 0 : index
    %c3392 = arith.constant 3392 : index
    %433 = vector.load %arg14[%c0_273, %c3392] : memref<8x4096xf32, #tpu.memory_space<vmem>>, vector<8x64xf32>
    tpu.vector_store %arg14[%c0_273, %c3392], %432 {strides = array<i32>} : memref<8x4096xf32, #tpu.memory_space<vmem>>, vector<8x64xf32>,
    %c54 = arith.constant 54 : index
    %c0_274 = arith.constant 0 : index
    %c0_275 = arith.constant 0 : index
    %434 = vector.load %arg1[%c54, %c0_274, %c0_275] : memref<64x8x128xf32, #tpu.memory_space<vmem>>, vector<1x8x128xf32>
    %435 = vector.shape_cast %434 : vector<1x8x128xf32> to vector<8x128xf32>
    %cst_276 = arith.constant dense<0.000000e+00> : vector<8x64xf32>
    %436 = tpu.matmul %435, %0, %cst_276 {dimension_numbers = #tpu.dot_dimension_numbers<[1], [0], [0], [1], [0, 0, 1, 1], [], []>} : vector<8x128xf32>, vector<128x64xf32>, vector<8x64xf32> -> vector<8x64xf32>
    %437 = vector.broadcast %1 : vector<1x64xf32> to vector<8x64xf32>
    %438 = arith.addf %436, %437 : vector<8x64xf32>
    %cst_277 = arith.constant 0.000000e+00 : f32
    %439 = vector.broadcast %cst_277 : f32 to vector<8x64xf32>
    %440 = arith.maximumf %438, %439 : vector<8x64xf32>
    %c0_278 = arith.constant 0 : index
    %c3456 = arith.constant 3456 : index
    %441 = vector.load %arg14[%c0_278, %c3456] : memref<8x4096xf32, #tpu.memory_space<vmem>>, vector<8x64xf32>
    tpu.vector_store %arg14[%c0_278, %c3456], %440 {strides = array<i32>} : memref<8x4096xf32, #tpu.memory_space<vmem>>, vector<8x64xf32>,
    %c55 = arith.constant 55 : index
    %c0_279 = arith.constant 0 : index
    %c0_280 = arith.constant 0 : index
    %442 = vector.load %arg1[%c55, %c0_279, %c0_280] : memref<64x8x128xf32, #tpu.memory_space<vmem>>, vector<1x8x128xf32>
    %443 = vector.shape_cast %442 : vector<1x8x128xf32> to vector<8x128xf32>
    %cst_281 = arith.constant dense<0.000000e+00> : vector<8x64xf32>
    %444 = tpu.matmul %443, %0, %cst_281 {dimension_numbers = #tpu.dot_dimension_numbers<[1], [0], [0], [1], [0, 0, 1, 1], [], []>} : vector<8x128xf32>, vector<128x64xf32>, vector<8x64xf32> -> vector<8x64xf32>
    %445 = vector.broadcast %1 : vector<1x64xf32> to vector<8x64xf32>
    %446 = arith.addf %444, %445 : vector<8x64xf32>
    %cst_282 = arith.constant 0.000000e+00 : f32
    %447 = vector.broadcast %cst_282 : f32 to vector<8x64xf32>
    %448 = arith.maximumf %446, %447 : vector<8x64xf32>
    %c0_283 = arith.constant 0 : index
    %c3520 = arith.constant 3520 : index
    %449 = vector.load %arg14[%c0_283, %c3520] : memref<8x4096xf32, #tpu.memory_space<vmem>>, vector<8x64xf32>
    tpu.vector_store %arg14[%c0_283, %c3520], %448 {strides = array<i32>} : memref<8x4096xf32, #tpu.memory_space<vmem>>, vector<8x64xf32>,
    %c56 = arith.constant 56 : index
    %c0_284 = arith.constant 0 : index
    %c0_285 = arith.constant 0 : index
    %450 = vector.load %arg1[%c56, %c0_284, %c0_285] : memref<64x8x128xf32, #tpu.memory_space<vmem>>, vector<1x8x128xf32>
    %451 = vector.shape_cast %450 : vector<1x8x128xf32> to vector<8x128xf32>
    %cst_286 = arith.constant dense<0.000000e+00> : vector<8x64xf32>
    %452 = tpu.matmul %451, %0, %cst_286 {dimension_numbers = #tpu.dot_dimension_numbers<[1], [0], [0], [1], [0, 0, 1, 1], [], []>} : vector<8x128xf32>, vector<128x64xf32>, vector<8x64xf32> -> vector<8x64xf32>
    %453 = vector.broadcast %1 : vector<1x64xf32> to vector<8x64xf32>
    %454 = arith.addf %452, %453 : vector<8x64xf32>
    %cst_287 = arith.constant 0.000000e+00 : f32
    %455 = vector.broadcast %cst_287 : f32 to vector<8x64xf32>
    %456 = arith.maximumf %454, %455 : vector<8x64xf32>
    %c0_288 = arith.constant 0 : index
    %c3584 = arith.constant 3584 : index
    %457 = vector.load %arg14[%c0_288, %c3584] : memref<8x4096xf32, #tpu.memory_space<vmem>>, vector<8x64xf32>
    tpu.vector_store %arg14[%c0_288, %c3584], %456 {strides = array<i32>} : memref<8x4096xf32, #tpu.memory_space<vmem>>, vector<8x64xf32>,
    %c57 = arith.constant 57 : index
    %c0_289 = arith.constant 0 : index
    %c0_290 = arith.constant 0 : index
    %458 = vector.load %arg1[%c57, %c0_289, %c0_290] : memref<64x8x128xf32, #tpu.memory_space<vmem>>, vector<1x8x128xf32>
    %459 = vector.shape_cast %458 : vector<1x8x128xf32> to vector<8x128xf32>
    %cst_291 = arith.constant dense<0.000000e+00> : vector<8x64xf32>
    %460 = tpu.matmul %459, %0, %cst_291 {dimension_numbers = #tpu.dot_dimension_numbers<[1], [0], [0], [1], [0, 0, 1, 1], [], []>} : vector<8x128xf32>, vector<128x64xf32>, vector<8x64xf32> -> vector<8x64xf32>
    %461 = vector.broadcast %1 : vector<1x64xf32> to vector<8x64xf32>
    %462 = arith.addf %460, %461 : vector<8x64xf32>
    %cst_292 = arith.constant 0.000000e+00 : f32
    %463 = vector.broadcast %cst_292 : f32 to vector<8x64xf32>
    %464 = arith.maximumf %462, %463 : vector<8x64xf32>
    %c0_293 = arith.constant 0 : index
    %c3648 = arith.constant 3648 : index
    %465 = vector.load %arg14[%c0_293, %c3648] : memref<8x4096xf32, #tpu.memory_space<vmem>>, vector<8x64xf32>
    tpu.vector_store %arg14[%c0_293, %c3648], %464 {strides = array<i32>} : memref<8x4096xf32, #tpu.memory_space<vmem>>, vector<8x64xf32>,
    %c58 = arith.constant 58 : index
    %c0_294 = arith.constant 0 : index
    %c0_295 = arith.constant 0 : index
    %466 = vector.load %arg1[%c58, %c0_294, %c0_295] : memref<64x8x128xf32, #tpu.memory_space<vmem>>, vector<1x8x128xf32>
    %467 = vector.shape_cast %466 : vector<1x8x128xf32> to vector<8x128xf32>
    %cst_296 = arith.constant dense<0.000000e+00> : vector<8x64xf32>
    %468 = tpu.matmul %467, %0, %cst_296 {dimension_numbers = #tpu.dot_dimension_numbers<[1], [0], [0], [1], [0, 0, 1, 1], [], []>} : vector<8x128xf32>, vector<128x64xf32>, vector<8x64xf32> -> vector<8x64xf32>
    %469 = vector.broadcast %1 : vector<1x64xf32> to vector<8x64xf32>
    %470 = arith.addf %468, %469 : vector<8x64xf32>
    %cst_297 = arith.constant 0.000000e+00 : f32
    %471 = vector.broadcast %cst_297 : f32 to vector<8x64xf32>
    %472 = arith.maximumf %470, %471 : vector<8x64xf32>
    %c0_298 = arith.constant 0 : index
    %c3712 = arith.constant 3712 : index
    %473 = vector.load %arg14[%c0_298, %c3712] : memref<8x4096xf32, #tpu.memory_space<vmem>>, vector<8x64xf32>
    tpu.vector_store %arg14[%c0_298, %c3712], %472 {strides = array<i32>} : memref<8x4096xf32, #tpu.memory_space<vmem>>, vector<8x64xf32>,
    %c59 = arith.constant 59 : index
    %c0_299 = arith.constant 0 : index
    %c0_300 = arith.constant 0 : index
    %474 = vector.load %arg1[%c59, %c0_299, %c0_300] : memref<64x8x128xf32, #tpu.memory_space<vmem>>, vector<1x8x128xf32>
    %475 = vector.shape_cast %474 : vector<1x8x128xf32> to vector<8x128xf32>
    %cst_301 = arith.constant dense<0.000000e+00> : vector<8x64xf32>
    %476 = tpu.matmul %475, %0, %cst_301 {dimension_numbers = #tpu.dot_dimension_numbers<[1], [0], [0], [1], [0, 0, 1, 1], [], []>} : vector<8x128xf32>, vector<128x64xf32>, vector<8x64xf32> -> vector<8x64xf32>
    %477 = vector.broadcast %1 : vector<1x64xf32> to vector<8x64xf32>
    %478 = arith.addf %476, %477 : vector<8x64xf32>
    %cst_302 = arith.constant 0.000000e+00 : f32
    %479 = vector.broadcast %cst_302 : f32 to vector<8x64xf32>
    %480 = arith.maximumf %478, %479 : vector<8x64xf32>
    %c0_303 = arith.constant 0 : index
    %c3776 = arith.constant 3776 : index
    %481 = vector.load %arg14[%c0_303, %c3776] : memref<8x4096xf32, #tpu.memory_space<vmem>>, vector<8x64xf32>
    tpu.vector_store %arg14[%c0_303, %c3776], %480 {strides = array<i32>} : memref<8x4096xf32, #tpu.memory_space<vmem>>, vector<8x64xf32>,
    %c60 = arith.constant 60 : index
    %c0_304 = arith.constant 0 : index
    %c0_305 = arith.constant 0 : index
    %482 = vector.load %arg1[%c60, %c0_304, %c0_305] : memref<64x8x128xf32, #tpu.memory_space<vmem>>, vector<1x8x128xf32>
    %483 = vector.shape_cast %482 : vector<1x8x128xf32> to vector<8x128xf32>
    %cst_306 = arith.constant dense<0.000000e+00> : vector<8x64xf32>
    %484 = tpu.matmul %483, %0, %cst_306 {dimension_numbers = #tpu.dot_dimension_numbers<[1], [0], [0], [1], [0, 0, 1, 1], [], []>} : vector<8x128xf32>, vector<128x64xf32>, vector<8x64xf32> -> vector<8x64xf32>
    %485 = vector.broadcast %1 : vector<1x64xf32> to vector<8x64xf32>
    %486 = arith.addf %484, %485 : vector<8x64xf32>
    %cst_307 = arith.constant 0.000000e+00 : f32
    %487 = vector.broadcast %cst_307 : f32 to vector<8x64xf32>
    %488 = arith.maximumf %486, %487 : vector<8x64xf32>
    %c0_308 = arith.constant 0 : index
    %c3840 = arith.constant 3840 : index
    %489 = vector.load %arg14[%c0_308, %c3840] : memref<8x4096xf32, #tpu.memory_space<vmem>>, vector<8x64xf32>
    tpu.vector_store %arg14[%c0_308, %c3840], %488 {strides = array<i32>} : memref<8x4096xf32, #tpu.memory_space<vmem>>, vector<8x64xf32>,
    %c61 = arith.constant 61 : index
    %c0_309 = arith.constant 0 : index
    %c0_310 = arith.constant 0 : index
    %490 = vector.load %arg1[%c61, %c0_309, %c0_310] : memref<64x8x128xf32, #tpu.memory_space<vmem>>, vector<1x8x128xf32>
    %491 = vector.shape_cast %490 : vector<1x8x128xf32> to vector<8x128xf32>
    %cst_311 = arith.constant dense<0.000000e+00> : vector<8x64xf32>
    %492 = tpu.matmul %491, %0, %cst_311 {dimension_numbers = #tpu.dot_dimension_numbers<[1], [0], [0], [1], [0, 0, 1, 1], [], []>} : vector<8x128xf32>, vector<128x64xf32>, vector<8x64xf32> -> vector<8x64xf32>
    %493 = vector.broadcast %1 : vector<1x64xf32> to vector<8x64xf32>
    %494 = arith.addf %492, %493 : vector<8x64xf32>
    %cst_312 = arith.constant 0.000000e+00 : f32
    %495 = vector.broadcast %cst_312 : f32 to vector<8x64xf32>
    %496 = arith.maximumf %494, %495 : vector<8x64xf32>
    %c0_313 = arith.constant 0 : index
    %c3904 = arith.constant 3904 : index
    %497 = vector.load %arg14[%c0_313, %c3904] : memref<8x4096xf32, #tpu.memory_space<vmem>>, vector<8x64xf32>
    tpu.vector_store %arg14[%c0_313, %c3904], %496 {strides = array<i32>} : memref<8x4096xf32, #tpu.memory_space<vmem>>, vector<8x64xf32>,
    %c62 = arith.constant 62 : index
    %c0_314 = arith.constant 0 : index
    %c0_315 = arith.constant 0 : index
    %498 = vector.load %arg1[%c62, %c0_314, %c0_315] : memref<64x8x128xf32, #tpu.memory_space<vmem>>, vector<1x8x128xf32>
    %499 = vector.shape_cast %498 : vector<1x8x128xf32> to vector<8x128xf32>
    %cst_316 = arith.constant dense<0.000000e+00> : vector<8x64xf32>
    %500 = tpu.matmul %499, %0, %cst_316 {dimension_numbers = #tpu.dot_dimension_numbers<[1], [0], [0], [1], [0, 0, 1, 1], [], []>} : vector<8x128xf32>, vector<128x64xf32>, vector<8x64xf32> -> vector<8x64xf32>
    %501 = vector.broadcast %1 : vector<1x64xf32> to vector<8x64xf32>
    %502 = arith.addf %500, %501 : vector<8x64xf32>
    %cst_317 = arith.constant 0.000000e+00 : f32
    %503 = vector.broadcast %cst_317 : f32 to vector<8x64xf32>
    %504 = arith.maximumf %502, %503 : vector<8x64xf32>
    %c0_318 = arith.constant 0 : index
    %c3968 = arith.constant 3968 : index
    %505 = vector.load %arg14[%c0_318, %c3968] : memref<8x4096xf32, #tpu.memory_space<vmem>>, vector<8x64xf32>
    tpu.vector_store %arg14[%c0_318, %c3968], %504 {strides = array<i32>} : memref<8x4096xf32, #tpu.memory_space<vmem>>, vector<8x64xf32>,
    %c63 = arith.constant 63 : index
    %c0_319 = arith.constant 0 : index
    %c0_320 = arith.constant 0 : index
    %506 = vector.load %arg1[%c63, %c0_319, %c0_320] : memref<64x8x128xf32, #tpu.memory_space<vmem>>, vector<1x8x128xf32>
    %507 = vector.shape_cast %506 : vector<1x8x128xf32> to vector<8x128xf32>
    %cst_321 = arith.constant dense<0.000000e+00> : vector<8x64xf32>
    %508 = tpu.matmul %507, %0, %cst_321 {dimension_numbers = #tpu.dot_dimension_numbers<[1], [0], [0], [1], [0, 0, 1, 1], [], []>} : vector<8x128xf32>, vector<128x64xf32>, vector<8x64xf32> -> vector<8x64xf32>
    %509 = vector.broadcast %1 : vector<1x64xf32> to vector<8x64xf32>
    %510 = arith.addf %508, %509 : vector<8x64xf32>
    %cst_322 = arith.constant 0.000000e+00 : f32
    %511 = vector.broadcast %cst_322 : f32 to vector<8x64xf32>
    %512 = arith.maximumf %510, %511 : vector<8x64xf32>
    %c0_323 = arith.constant 0 : index
    %c4032 = arith.constant 4032 : index
    %513 = vector.load %arg14[%c0_323, %c4032] : memref<8x4096xf32, #tpu.memory_space<vmem>>, vector<8x64xf32>
    tpu.vector_store %arg14[%c0_323, %c4032], %512 {strides = array<i32>} : memref<8x4096xf32, #tpu.memory_space<vmem>>, vector<8x64xf32>,
    %c0_324 = arith.constant 0 : index
    %c0_325 = arith.constant 0 : index
    %514 = vector.load %arg14[%c0_324, %c0_325] : memref<8x4096xf32, #tpu.memory_space<vmem>>, vector<8x4096xf32>
    %c0_326 = arith.constant 0 : index
    %c0_327 = arith.constant 0 : index
    %515 = vector.load %arg4[%c0_326, %c0_327] : memref<4096x128xf32, #tpu.memory_space<vmem>>, vector<4096x128xf32>
    %cst_328 = arith.constant dense<0.000000e+00> : vector<8x128xf32>
    %516 = tpu.matmul %514, %515, %cst_328 {dimension_numbers = #tpu.dot_dimension_numbers<[1], [0], [0], [1], [0, 0, 1, 1], [], []>} : vector<8x4096xf32>, vector<4096x128xf32>, vector<8x128xf32> -> vector<8x128xf32>
    %c0_329 = arith.constant 0 : index
    %c0_330 = arith.constant 0 : index
    %517 = vector.load %arg5[%c0_329, %c0_330] : memref<1x128xf32, #tpu.memory_space<vmem>>, vector<1x128xf32>
    %518 = vector.broadcast %517 : vector<1x128xf32> to vector<8x128xf32>
    %519 = arith.addf %516, %518 : vector<8x128xf32>
    %c0_331 = arith.constant 0 : index
    %520 = memref.load %arg12[%c0_331] : memref<3xf32, #tpu.memory_space<smem>>
    %cst_332 = arith.constant 0.000000e+00 : f32
    %521 = vector.broadcast %cst_332 : f32 to vector<8x128xf32>
    %522 = arith.cmpf oge, %519, %521 : vector<8x128xf32>
    %523 = vector.broadcast %520 : f32 to vector<8x128xf32>
    %524 = arith.mulf %523, %519 : vector<8x128xf32>
    %525 = arith.select %522, %519, %524 : vector<8x128xi1>, vector<8x128xf32>
    %c0_333 = arith.constant 0 : index
    %c0_334 = arith.constant 0 : index
    %526 = vector.load %arg6[%c0_333, %c0_334] : memref<128x128xf32, #tpu.memory_space<vmem>>, vector<128x128xf32>
    %cst_335 = arith.constant dense<0.000000e+00> : vector<8x128xf32>
    %527 = tpu.matmul %525, %526, %cst_335 {dimension_numbers = #tpu.dot_dimension_numbers<[1], [0], [0], [1], [0, 0, 1, 1], [], []>} : vector<8x128xf32>, vector<128x128xf32>, vector<8x128xf32> -> vector<8x128xf32>
    %c0_336 = arith.constant 0 : index
    %c0_337 = arith.constant 0 : index
    %528 = vector.load %arg7[%c0_336, %c0_337] : memref<1x128xf32, #tpu.memory_space<vmem>>, vector<1x128xf32>
    %529 = vector.broadcast %528 : vector<1x128xf32> to vector<8x128xf32>
    %530 = arith.addf %527, %529 : vector<8x128xf32>
    %c1_338 = arith.constant 1 : index
    %531 = memref.load %arg12[%c1_338] : memref<3xf32, #tpu.memory_space<smem>>
    %cst_339 = arith.constant 0.000000e+00 : f32
    %532 = vector.broadcast %cst_339 : f32 to vector<8x128xf32>
    %533 = arith.cmpf oge, %530, %532 : vector<8x128xf32>
    %534 = vector.broadcast %531 : f32 to vector<8x128xf32>
    %535 = arith.mulf %534, %530 : vector<8x128xf32>
    %536 = arith.select %533, %530, %535 : vector<8x128xi1>, vector<8x128xf32>
    %c0_340 = arith.constant 0 : index
    %c0_341 = arith.constant 0 : index
    %537 = vector.load %arg8[%c0_340, %c0_341] : memref<128x256xf32, #tpu.memory_space<vmem>>, vector<128x256xf32>
    %cst_342 = arith.constant dense<0.000000e+00> : vector<8x256xf32>
    %538 = tpu.matmul %536, %537, %cst_342 {dimension_numbers = #tpu.dot_dimension_numbers<[1], [0], [0], [1], [0, 0, 1, 1], [], []>} : vector<8x128xf32>, vector<128x256xf32>, vector<8x256xf32> -> vector<8x256xf32>
    %c0_343 = arith.constant 0 : index
    %c0_344 = arith.constant 0 : index
    %539 = vector.load %arg9[%c0_343, %c0_344] : memref<1x256xf32, #tpu.memory_space<vmem>>, vector<1x256xf32>
    %540 = vector.broadcast %539 : vector<1x256xf32> to vector<8x256xf32>
    %541 = arith.addf %538, %540 : vector<8x256xf32>
    %c2_345 = arith.constant 2 : index
    %542 = memref.load %arg12[%c2_345] : memref<3xf32, #tpu.memory_space<smem>>
    %cst_346 = arith.constant 0.000000e+00 : f32
    %543 = vector.broadcast %cst_346 : f32 to vector<8x256xf32>
    %544 = arith.cmpf oge, %541, %543 : vector<8x256xf32>
    %545 = vector.broadcast %542 : f32 to vector<8x256xf32>
    %546 = arith.mulf %545, %541 : vector<8x256xf32>
    %547 = arith.select %544, %541, %546 : vector<8x256xi1>, vector<8x256xf32>
    %c0_347 = arith.constant 0 : index
    %c0_348 = arith.constant 0 : index
    %548 = vector.load %arg10[%c0_347, %c0_348] : memref<256x128xf32, #tpu.memory_space<vmem>>, vector<256x128xf32>
    %cst_349 = arith.constant dense<0.000000e+00> : vector<8x128xf32>
    %549 = tpu.matmul %547, %548, %cst_349 {dimension_numbers = #tpu.dot_dimension_numbers<[1], [0], [0], [1], [0, 0, 1, 1], [], []>} : vector<8x256xf32>, vector<256x128xf32>, vector<8x128xf32> -> vector<8x128xf32>
    %c0_350 = arith.constant 0 : index
    %c0_351 = arith.constant 0 : index
    %550 = vector.load %arg11[%c0_350, %c0_351] : memref<1x128xf32, #tpu.memory_space<vmem>>, vector<1x128xf32>
    %551 = vector.broadcast %550 : vector<1x128xf32> to vector<8x128xf32>
    %552 = arith.addf %549, %551 : vector<8x128xf32>
    %553 = arith.mulf %552, %552 : vector<8x128xf32>
    %cst_352 = arith.constant dense<0.000000e+00> : vector<8xf32>
    %554 = vector.multi_reduction <add>, %553, %cst_352 [1] : vector<8x128xf32> to vector<8xf32>
    %555 = vector.shape_cast %554 : vector<8xf32> to vector<8x1xf32>
    %cst_353 = arith.constant 1.000000e-24 : f32
    %556 = vector.broadcast %cst_353 : f32 to vector<8x1xf32>
    %557 = arith.maximumf %555, %556 : vector<8x1xf32>
    %558 = math.rsqrt %557 : vector<8x1xf32>
    %559 = vector.broadcast %558 : vector<8x1xf32> to vector<8x128xf32>
    %560 = arith.mulf %552, %559 : vector<8x128xf32>
    %c0_354 = arith.constant 0 : index
    %c0_355 = arith.constant 0 : index
    %561 = vector.load %arg13[%c0_354, %c0_355] : memref<8x128xf32, #tpu.memory_space<vmem>>, vector<8x128xf32>
    tpu.vector_store %arg13[%c0_354, %c0_355], %560 {strides = array<i32>} : memref<8x128xf32, #tpu.memory_space<vmem>>, vector<8x128xf32>,
    return
  }
  func.func @transform_0(%arg0: i32) -> (i32, i32, i32) {
    %c0_i32 = arith.constant 0 : i32
    %c0_i32_0 = arith.constant 0 : i32
    %c0_i32_1 = arith.constant 0 : i32
    return %c0_i32, %arg0, %c0_i32_0 : i32, i32, i32
  }
  func.func @transform_1(%arg0: i32) -> (i32, i32) {
    %c0_i32 = arith.constant 0 : i32
    %c0_i32_0 = arith.constant 0 : i32
    %c0_i32_1 = arith.constant 0 : i32
    return %c0_i32, %c0_i32_0 : i32, i32
  }
  func.func @transform_2(%arg0: i32) -> (i32, i32) {
    %c0_i32 = arith.constant 0 : i32
    %c0_i32_0 = arith.constant 0 : i32
    %c0_i32_1 = arith.constant 0 : i32
    return %c0_i32, %c0_i32_0 : i32, i32
  }
  func.func @transform_3(%arg0: i32) -> (i32, i32) {
    %c0_i32 = arith.constant 0 : i32
    %c0_i32_0 = arith.constant 0 : i32
    %c0_i32_1 = arith.constant 0 : i32
    return %c0_i32, %c0_i32_0 : i32, i32
  }
  func.func @transform_4(%arg0: i32) -> (i32, i32) {
    %c0_i32 = arith.constant 0 : i32
    %c0_i32_0 = arith.constant 0 : i32
    %c0_i32_1 = arith.constant 0 : i32
    return %c0_i32, %c0_i32_0 : i32, i32
  }
  func.func @transform_5(%arg0: i32) -> (i32, i32) {
    %c0_i32 = arith.constant 0 : i32
    %c0_i32_0 = arith.constant 0 : i32
    %c0_i32_1 = arith.constant 0 : i32
    return %c0_i32, %c0_i32_0 : i32, i32
  }
  func.func @transform_6(%arg0: i32) -> (i32, i32) {
    %c0_i32 = arith.constant 0 : i32
    %c0_i32_0 = arith.constant 0 : i32
    %c0_i32_1 = arith.constant 0 : i32
    return %c0_i32, %c0_i32_0 : i32, i32
  }
  func.func @transform_7(%arg0: i32) -> (i32, i32) {
    %c0_i32 = arith.constant 0 : i32
    %c0_i32_0 = arith.constant 0 : i32
    %c0_i32_1 = arith.constant 0 : i32
    return %c0_i32, %c0_i32_0 : i32, i32
  }
  func.func @transform_8(%arg0: i32) -> (i32, i32) {
    %c0_i32 = arith.constant 0 : i32
    %c0_i32_0 = arith.constant 0 : i32
    %c0_i32_1 = arith.constant 0 : i32
    return %c0_i32, %c0_i32_0 : i32, i32
  }
  func.func @transform_9(%arg0: i32) -> (i32, i32) {
    %c0_i32 = arith.constant 0 : i32
    %c0_i32_0 = arith.constant 0 : i32
    %c0_i32_1 = arith.constant 0 : i32
    return %c0_i32, %c0_i32_0 : i32, i32
  }
  func.func @transform_10(%arg0: i32) -> (i32, i32) {
    %c0_i32 = arith.constant 0 : i32
    %c0_i32_0 = arith.constant 0 : i32
    %c0_i32_1 = arith.constant 0 : i32
    return %c0_i32, %c0_i32_0 : i32, i32
  }
  func.func @transform_11(%arg0: i32) -> i32 {
    %c0_i32 = arith.constant 0 : i32
    %c0_i32_0 = arith.constant 0 : i32
    return %c0_i32 : i32
  }
  func.func @transform_12(%arg0: i32) -> (i32, i32) {
    %c0_i32 = arith.constant 0 : i32
    %c0_i32_0 = arith.constant 0 : i32
    return %arg0, %c0_i32 : i32, i32
  }
}

</mosaic_0001>

<llo_original>
// kernel: shallow_embedd_net_pallas.1
$region0: #{shallow_embedd_net_pallas.1}
  #allocation0 [shape = 'u32[]', space=smem, size = 0x4, offset = 0x4, fixed_abs, tag = 'smem constant byte address 0x4 - core index']
  #allocation1 [shape = 'u32[72,128]{1,0:T(1,128)}', space=vmem, size = 0x9000, scoped, tag = 'internal scratch']
  #allocation2 [shape = 'f32[8,4096]{1,0:T(8,128)}', space=vmem, size = 0x20000, scoped, tag = 'scratch operand']
  %s0 = inlined_call_operand.vmem [shape: f32[64,8,128], index: 0, kind: input, shape index: {}]
  %s1 = inlined_call_operand.vmem [shape: f32[128,64], index: 1, kind: input, shape index: {}]
  %s2 = inlined_call_operand.hbm [shape: f32[1,64], index: 2, kind: input, shape index: {}]
  %s3 = inlined_call_operand.hbm [shape: f32[4096,128], index: 3, kind: input, shape index: {}]
  %s4 = inlined_call_operand.hbm [shape: f32[1,128], index: 4, kind: input, shape index: {}]
  %s5 = inlined_call_operand.hbm [shape: f32[128,128], index: 5, kind: input, shape index: {}]
  %s6 = inlined_call_operand.hbm [shape: f32[1,128], index: 6, kind: input, shape index: {}]
  %s7 = inlined_call_operand.hbm [shape: f32[128,256], index: 7, kind: input, shape index: {}]
  %s8 = inlined_call_operand.hbm [shape: f32[1,256], index: 8, kind: input, shape index: {}]
  %s9 = inlined_call_operand.hbm [shape: f32[256,128], index: 9, kind: input, shape index: {}]
  %s10 = inlined_call_operand.hbm [shape: f32[1,128], index: 10, kind: input, shape index: {}]
  %s11 = inlined_call_operand.hbm [shape: f32[3], index: 11, kind: input, shape index: {}]
  %s12 = inlined_call_operand.vmem [shape: f32[8,128], index: 12, kind: output, shape index: {}]
  %s13 = sld [smem:[#allocation0]]
  $region98: #{shallow_embedd_net_pallas.1} parent=0
    _
  %s15 = ssub.s32 1, %s13
  %s16 = scalar_select 0, %s15, %s13
  $region1: #{shallow_embedd_net_pallas.1} parent=0
    #allocation3 [shape = 'u8[512]{0}', space=vmem, size = 0x400, scoped, tag = 'input window, operand 2, single buffered']
    #allocation4 [shape = 's32[1]{0}', space=sflag, size = 0x4, scoped, tag = 'scoped memory for shallow_embedd_net_pallas.1']
    #allocation5 [shape = 's32[1]{0}', space=sflag, size = 0x4, scoped, tag = 'scoped memory for shallow_embedd_net_pallas.1']
    #allocation6 [shape = 'u8[2097152]{0}', space=vmem, size = 0x200000, scoped, tag = 'input window, operand 3, single buffered']
    #allocation7 [shape = 's32[1]{0}', space=sflag, size = 0x4, scoped, tag = 'scoped memory for shallow_embedd_net_pallas.1']
    #allocation8 [shape = 'u8[512]{0}', space=vmem, size = 0x400, scoped, tag = 'input window, operand 4, single buffered']
    #allocation9 [shape = 'u8[65536]{0}', space=vmem, size = 0x10000, scoped, tag = 'input window, operand 5, single buffered']
    #allocation10 [shape = 's32[1]{0}', space=sflag, size = 0x4, scoped, tag = 'scoped memory for shallow_embedd_net_pallas.1']
    #allocation11 [shape = 'u8[512]{0}', space=vmem, size = 0x400, scoped, tag = 'input window, operand 6, single buffered']
    #allocation12 [shape = 'u8[131072]{0}', space=vmem, size = 0x20000, scoped, tag = 'input window, operand 7, single buffered']
    #allocation13 [shape = 's32[1]{0}', space=sflag, size = 0x4, scoped, tag = 'scoped memory for shallow_embedd_net_pallas.1']
    #allocation14 [shape = 'u8[1024]{0}', space=vmem, size = 0x400, scoped, tag = 'input window, operand 8, single buffered']
    #allocation15 [shape = 'u8[131072]{0}', space=vmem, size = 0x20000, scoped, tag = 'input window, operand 9, single buffered']
    #allocation16 [shape = 's32[1]{0}', space=sflag, size = 0x4, scoped, tag = 'scoped memory for shallow_embedd_net_pallas.1']
    #allocation17 [shape = 'u8[512]{0}', space=vmem, size = 0x400, scoped, tag = 'input window, operand 10, single buffered']
    #allocation18 [shape = 'u8[512]{0}', space=smem, size = 0x200, scoped, tag = 'input window, operand 11, single buffered']
    %17 = vsyncpa [#allocation4], 0
    %18 = vsyncpa [#allocation7], 0
    %19 = vsyncpa [#allocation10], 0
    %20 = vsyncpa [#allocation13], 0
    %21 = vsyncpa [#allocation16], 0
    %22 = vsyncpa [#allocation5], 0
    // Predicated region
    $region2: #{shallow_embedd_net_pallas.1} parent=1 // pred_check
      _
    $region3: #{shallow_embedd_net_pallas.1} parent=1 // pred_check_branch
      %24 = sbr.rel (0) target = $region5
    $region4: #{shallow_embedd_net_pallas.1} parent=1 // pred_region
      _
    $region5: #{shallow_embedd_net_pallas.1} parent=1 // pred_fallthru
      _
    // Predicated region
    $region6: #{shallow_embedd_net_pallas.1} parent=1 // pred_check
      _
    $region7: #{shallow_embedd_net_pallas.1} parent=1 // pred_check_branch
      %26 = sbr.rel (0) target = $region9
    $region8: #{shallow_embedd_net_pallas.1} parent=1 // pred_region
      _
    $region9: #{shallow_embedd_net_pallas.1} parent=1 // pred_fallthru
      _
    // Predicated region
    $region10: #{shallow_embedd_net_pallas.1} parent=1 // pred_check
      _
    $region11: #{shallow_embedd_net_pallas.1} parent=1 // pred_check_branch
      %28 = sbr.rel (0) target = $region13
    $region12: #{shallow_embedd_net_pallas.1} parent=1 // pred_region
      %30 = vsyncadd [#allocation4], 0
      %s32 = sshll.u32 %s2, 4
      %s33 = int_to_ptr.hbm [resolvable:$true] %s32
      %s34 = sshll.u32 [#allocation3], 4
      %s35 = int_to_ptr.vmem [resolvable:$true] %s34
      %37 = dma.hbm_to_vmem [thread:$0]  %s33, 16, %s35, [#allocation4]
    $region13: #{shallow_embedd_net_pallas.1} parent=1 // pred_fallthru
      _
    // Predicated region
    $region14: #{shallow_embedd_net_pallas.1} parent=1 // pred_check
      _
    $region15: #{shallow_embedd_net_pallas.1} parent=1 // pred_check_branch
      %39 = sbr.rel (0) target = $region17
    $region16: #{shallow_embedd_net_pallas.1} parent=1 // pred_region
      %41 = vsyncadd [#allocation7], 0
      %s42 = sshll.u32 %s3, 4
      %s43 = int_to_ptr.hbm [resolvable:$true] %s42
      %s44 = sshll.u32 [#allocation6], 4
      %s45 = int_to_ptr.vmem [resolvable:$true] %s44
      %50 = dma.hbm_to_vmem [thread:$0]  %s43, 65536, %s45, [#allocation7], 128, 128, 8
    $region17: #{shallow_embedd_net_pallas.1} parent=1 // pred_fallthru
      _
    // Predicated region
    $region18: #{shallow_embedd_net_pallas.1} parent=1 // pred_check
      _
    $region19: #{shallow_embedd_net_pallas.1} parent=1 // pred_check_branch
      %52 = sbr.rel (0) target = $region21
    $region20: #{shallow_embedd_net_pallas.1} parent=1 // pred_region
      %54 = vsyncadd [#allocation7], 0
      %s56 = sshll.u32 %s4, 4
      %s57 = int_to_ptr.hbm [resolvable:$true] %s56
      %s58 = sshll.u32 [#allocation8], 4
      %s59 = int_to_ptr.vmem [resolvable:$true] %s58
      %61 = dma.hbm_to_vmem [thread:$0]  %s57, 16, %s59, [#allocation7]
    $region21: #{shallow_embedd_net_pallas.1} parent=1 // pred_fallthru
      _
    // Predicated region
    $region22: #{shallow_embedd_net_pallas.1} parent=1 // pred_check
      _
    $region23: #{shallow_embedd_net_pallas.1} parent=1 // pred_check_branch
      %63 = sbr.rel (0) target = $region25
    $region24: #{shallow_embedd_net_pallas.1} parent=1 // pred_region
      %65 = vsyncadd [#allocation10], 0
      %s66 = sshll.u32 %s5, 4
      %s67 = int_to_ptr.hbm [resolvable:$true] %s66
      %s68 = sshll.u32 [#allocation9], 4
      %s69 = int_to_ptr.vmem [resolvable:$true] %s68
      %74 = dma.hbm_to_vmem [thread:$0]  %s67, 2048, %s69, [#allocation10], 128, 128, 8
    $region25: #{shallow_embedd_net_pallas.1} parent=1 // pred_fallthru
      _
    // Predicated region
    $region26: #{shallow_embedd_net_pallas.1} parent=1 // pred_check
      _
    $region27: #{shallow_embedd_net_pallas.1} parent=1 // pred_check_branch
      %76 = sbr.rel (0) target = $region29
    $region28: #{shallow_embedd_net_pallas.1} parent=1 // pred_region
      %78 = vsyncadd [#allocation10], 0
      %s80 = sshll.u32 %s6, 4
      %s81 = int_to_ptr.hbm [resolvable:$true] %s80
      %s82 = sshll.u32 [#allocation11], 4
      %s83 = int_to_ptr.vmem [resolvable:$true] %s82
      %85 = dma.hbm_to_vmem [thread:$0]  %s81, 16, %s83, [#allocation10]
    $region29: #{shallow_embedd_net_pallas.1} parent=1 // pred_fallthru
      _
    // Predicated region
    $region30: #{shallow_embedd_net_pallas.1} parent=1 // pred_check
      _
    $region31: #{shallow_embedd_net_pallas.1} parent=1 // pred_check_branch
      %87 = sbr.rel (0) target = $region33
    $region32: #{shallow_embedd_net_pallas.1} parent=1 // pred_region
      %89 = vsyncadd [#allocation13], 0
      %s90 = sshll.u32 %s7, 4
      %s91 = int_to_ptr.hbm [resolvable:$true] %s90
      %s92 = sshll.u32 [#allocation12], 4
      %s93 = int_to_ptr.vmem [resolvable:$true] %s92
      %98 = dma.hbm_to_vmem [thread:$0]  %s91, 4096, %s93, [#allocation13], 256, 256, 16
    $region33: #{shallow_embedd_net_pallas.1} parent=1 // pred_fallthru
      _
    // Predicated region
    $region34: #{shallow_embedd_net_pallas.1} parent=1 // pred_check
      _
    $region35: #{shallow_embedd_net_pallas.1} parent=1 // pred_check_branch
      %100 = sbr.rel (0) target = $region37
    $region36: #{shallow_embedd_net_pallas.1} parent=1 // pred_region
      %102 = vsyncadd [#allocation13], 0
      %s104 = sshll.u32 %s8, 4
      %s105 = int_to_ptr.hbm [resolvable:$true] %s104
      %s106 = sshll.u32 [#allocation14], 4
      %s107 = int_to_ptr.vmem [resolvable:$true] %s106
      %109 = dma.hbm_to_vmem [thread:$0]  %s105, 32, %s107, [#allocation13]
    $region37: #{shallow_embedd_net_pallas.1} parent=1 // pred_fallthru
      _
    // Predicated region
    $region38: #{shallow_embedd_net_pallas.1} parent=1 // pred_check
      _
    $region39: #{shallow_embedd_net_pallas.1} parent=1 // pred_check_branch
      %111 = sbr.rel (0) target = $region41
    $region40: #{shallow_embedd_net_pallas.1} parent=1 // pred_region
      %113 = vsyncadd [#allocation16], 0
      %s114 = sshll.u32 %s9, 4
      %s115 = int_to_ptr.hbm [resolvable:$true] %s114
      %s116 = sshll.u32 [#allocation15], 4
      %s117 = int_to_ptr.vmem [resolvable:$true] %s116
      %122 = dma.hbm_to_vmem [thread:$0]  %s115, 4096, %s117, [#allocation16], 128, 128, 8
    $region41: #{shallow_embedd_net_pallas.1} parent=1 // pred_fallthru
      _
    // Predicated region
    $region42: #{shallow_embedd_net_pallas.1} parent=1 // pred_check
      _
    $region43: #{shallow_embedd_net_pallas.1} parent=1 // pred_check_branch
      %124 = sbr.rel (0) target = $region45
    $region44: #{shallow_embedd_net_pallas.1} parent=1 // pred_region
      %126 = vsyncadd [#allocation16], 0
      %s128 = sshll.u32 %s10, 4
      %s129 = int_to_ptr.hbm [resolvable:$true] %s128
      %s130 = sshll.u32 [#allocation17], 4
      %s131 = int_to_ptr.vmem [resolvable:$true] %s130
      %133 = dma.hbm_to_vmem [thread:$0]  %s129, 16, %s131, [#allocation16]
    $region45: #{shallow_embedd_net_pallas.1} parent=1 // pred_fallthru
      _
    // Predicated region
    $region46: #{shallow_embedd_net_pallas.1} parent=1 // pred_check
      _
    $region47: #{shallow_embedd_net_pallas.1} parent=1 // pred_check_branch
      %135 = sbr.rel (0) target = $region49
    $region48: #{shallow_embedd_net_pallas.1} parent=1 // pred_region
      %137 = vsyncadd [#allocation5], 0
      %s139 = sshll.u32 %s11, 4
      %s140 = int_to_ptr.hbm [resolvable:$true] %s139
      %142 = dma.hbm_to_smem %s140, 16, [#allocation18], [#allocation5]
    $region49: #{shallow_embedd_net_pallas.1} parent=1 // pred_fallthru
      _
    // Predicated region
    $region50: #{shallow_embedd_net_pallas.1} parent=1 // pred_check
      _
    $region51: #{shallow_embedd_net_pallas.1} parent=1 // pred_check_branch
      %144 = sbr.rel (0) target = $region53
    $region52: #{shallow_embedd_net_pallas.1} parent=1 // pred_region
      %146 = dma.done [#allocation4], 16
    $region53: #{shallow_embedd_net_pallas.1} parent=1 // pred_fallthru
      _
    // Predicated region
    $region54: #{shallow_embedd_net_pallas.1} parent=1 // pred_check
      _
    $region55: #{shallow_embedd_net_pallas.1} parent=1 // pred_check_branch
      %148 = sbr.rel (0) target = $region57
    $region56: #{shallow_embedd_net_pallas.1} parent=1 // pred_region
      %150 = dma.done [#allocation7], 65536
    $region57: #{shallow_embedd_net_pallas.1} parent=1 // pred_fallthru
      _
    // Predicated region
    $region58: #{shallow_embedd_net_pallas.1} parent=1 // pred_check
      _
    $region59: #{shallow_embedd_net_pallas.1} parent=1 // pred_check_branch
      %152 = sbr.rel (0) target = $region61
    $region60: #{shallow_embedd_net_pallas.1} parent=1 // pred_region
      %154 = dma.done [#allocation7], 16
    $region61: #{shallow_embedd_net_pallas.1} parent=1 // pred_fallthru
      _
    // Predicated region
    $region62: #{shallow_embedd_net_pallas.1} parent=1 // pred_check
      _
    $region63: #{shallow_embedd_net_pallas.1} parent=1 // pred_check_branch
      %156 = sbr.rel (0) target = $region65
    $region64: #{shallow_embedd_net_pallas.1} parent=1 // pred_region
      %158 = dma.done [#allocation10], 2048
    $region65: #{shallow_embedd_net_pallas.1} parent=1 // pred_fallthru
      _
    // Predicated region
    $region66: #{shallow_embedd_net_pallas.1} parent=1 // pred_check
      _
    $region67: #{shallow_embedd_net_pallas.1} parent=1 // pred_check_branch
      %160 = sbr.rel (0) target = $region69
    $region68: #{shallow_embedd_net_pallas.1} parent=1 // pred_region
      %162 = dma.done [#allocation10], 16
    $region69: #{shallow_embedd_net_pallas.1} parent=1 // pred_fallthru
      _
    // Predicated region
    $region70: #{shallow_embedd_net_pallas.1} parent=1 // pred_check
      _
    $region71: #{shallow_embedd_net_pallas.1} parent=1 // pred_check_branch
      %164 = sbr.rel (0) target = $region73
    $region72: #{shallow_embedd_net_pallas.1} parent=1 // pred_region
      %166 = dma.done [#allocation13], 4096
    $region73: #{shallow_embedd_net_pallas.1} parent=1 // pred_fallthru
      _
    // Predicated region
    $region74: #{shallow_embedd_net_pallas.1} parent=1 // pred_check
      _
    $region75: #{shallow_embedd_net_pallas.1} parent=1 // pred_check_branch
      %168 = sbr.rel (0) target = $region77
    $region76: #{shallow_embedd_net_pallas.1} parent=1 // pred_region
      %170 = dma.done [#allocation13], 32
    $region77: #{shallow_embedd_net_pallas.1} parent=1 // pred_fallthru
      _
    // Predicated region
    $region78: #{shallow_embedd_net_pallas.1} parent=1 // pred_check
      _
    $region79: #{shallow_embedd_net_pallas.1} parent=1 // pred_check_branch
      %172 = sbr.rel (0) target = $region81
    $region80: #{shallow_embedd_net_pallas.1} parent=1 // pred_region
      %174 = dma.done [#allocation16], 4096
    $region81: #{shallow_embedd_net_pallas.1} parent=1 // pred_fallthru
      _
    // Predicated region
    $region82: #{shallow_embedd_net_pallas.1} parent=1 // pred_check
      _
    $region83: #{shallow_embedd_net_pallas.1} parent=1 // pred_check_branch
      %176 = sbr.rel (0) target = $region85
    $region84: #{shallow_embedd_net_pallas.1} parent=1 // pred_region
      %178 = dma.done [#allocation16], 16
    $region85: #{shallow_embedd_net_pallas.1} parent=1 // pred_fallthru
      _
    // Predicated region
    $region86: #{shallow_embedd_net_pallas.1} parent=1 // pred_check
      _
    $region87: #{shallow_embedd_net_pallas.1} parent=1 // pred_check_branch
      %180 = sbr.rel (0) target = $region89
    $region88: #{shallow_embedd_net_pallas.1} parent=1 // pred_region
      %182 = dma.done [#allocation5], 16
    $region89: #{shallow_embedd_net_pallas.1} parent=1 // pred_fallthru
      _
    %183 = sfence
    %v184 = vld [vmem:[%s1] sm:$0xff]
    %v185 = vld [vmem:[%s1 + $0x8] sm:$0xff]
    %v186 = vld [vmem:[%s1 + $0x10] sm:$0xff]
    %v187 = vld [vmem:[%s1 + $0x18] sm:$0xff]
    %v188 = vld [vmem:[%s1 + $0x20] sm:$0xff]
    %v189 = vld [vmem:[%s1 + $0x28] sm:$0xff]
    %v190 = vld [vmem:[%s1 + $0x30] sm:$0xff]
    %v191 = vld [vmem:[%s1 + $0x38] sm:$0xff]
    %v192 = vld [vmem:[%s1 + $0x40] sm:$0xff]
    %v193 = vld [vmem:[%s1 + $0x48] sm:$0xff]
    %v194 = vld [vmem:[%s1 + $0x50] sm:$0xff]
    %v195 = vld [vmem:[%s1 + $0x58] sm:$0xff]
    %v196 = vld [vmem:[%s1 + $0x60] sm:$0xff]
    %v197 = vld [vmem:[%s1 + $0x68] sm:$0xff]
    %v198 = vld [vmem:[%s1 + $0x70] sm:$0xff]
    %v199 = vld [vmem:[%s1 + $0x78] sm:$0xff]
    %v200 = vld [vmem:[#allocation3] sm:$0x1]
    %v201 = vld [vmem:[%s0] sm:$0xff]
    %v203 = vperm.slane %v200, 0
    %205 = vmatpush.msra.mxu0 %v199
    %206 = vmatpush.msra.mxu0 %v198
    %207 = vmatpush.msra.mxu0 %v197
    %208 = vmatpush.msra.mxu0 %v196
    %209 = vmatpush.msra.mxu0 %v195
    %210 = vmatpush.msra.mxu0 %v194
    %211 = vmatpush.msra.mxu0 %v193
    %212 = vmatpush.msra.mxu0 %v192
    %213 = vmatpush.msra.mxu0 %v191
    %214 = vmatpush.msra.mxu0 %v190
    %215 = vmatpush.msra.mxu0 %v189
    %216 = vmatpush.msra.mxu0 %v188
    %217 = vmatpush.msra.mxu0 %v187
    %218 = vmatpush.msra.mxu0 %v186
    %219 = vmatpush.msra.mxu0 %v185
    %220 = vmatpush.msra.mxu0 %v184
    %221 = vmatmul.f32.gmra.mxu0 %v201
    %v222 = vpop.f32.mrf.mxu0
    %v223 = vadd.f32 %v203, %v222
    %224 = vdwg.mxu0
    %v225 = vmax.f32 %v223, 0.0
    %vm226 = vcmask 523264
    %227 = vst.msk [vmem:[#allocation2] sm:$0xff] %vm226, %v225
    %s228 = scalar_lea.vmem %s0, 8
    %v229 = vld [vmem:[%s228] sm:$0xff]
    %230 = vmatpush.msra.mxu0 %v199
    %231 = vmatpush.msra.mxu0 %v198
    %232 = vmatpush.msra.mxu0 %v197
    %233 = vmatpush.msra.mxu0 %v196
    %234 = vmatpush.msra.mxu0 %v195
    %235 = vmatpush.msra.mxu0 %v194
    %236 = vmatpush.msra.mxu0 %v193
    %237 = vmatpush.msra.mxu0 %v192
    %238 = vmatpush.msra.mxu0 %v191
    %239 = vmatpush.msra.mxu0 %v190
    %240 = vmatpush.msra.mxu0 %v189
    %241 = vmatpush.msra.mxu0 %v188
    %242 = vmatpush.msra.mxu0 %v187
    %243 = vmatpush.msra.mxu0 %v186
    %244 = vmatpush.msra.mxu0 %v185
    %245 = vmatpush.msra.mxu0 %v184
    %246 = vmatmul.f32.gmra.mxu0 %v229
    %v247 = vpop.f32.mrf.mxu0
    %v248 = vadd.f32 %v203, %v247
    %249 = vdwg.mxu0
    %v250 = vmax.f32 %v248, 0.0
    %252 = vrot.lane.b32.xlu0 %v250, 64
    %v253 = vpop.permute.xlu0 %252
    %vm255 = vcmask 1048064
    %256 = vst.msk [vmem:[#allocation2] sm:$0xff] %vm255, %v253
    %s257 = scalar_lea.vmem %s0, 16
    %v258 = vld [vmem:[%s257] sm:$0xff]
    %259 = vmatpush.msra.mxu0 %v199
    %260 = vmatpush.msra.mxu0 %v198
    %261 = vmatpush.msra.mxu0 %v197
    %262 = vmatpush.msra.mxu0 %v196
    %263 = vmatpush.msra.mxu0 %v195
    %264 = vmatpush.msra.mxu0 %v194
    %265 = vmatpush.msra.mxu0 %v193
    %266 = vmatpush.msra.mxu0 %v192
    %267 = vmatpush.msra.mxu0 %v191
    %268 = vmatpush.msra.mxu0 %v190
    %269 = vmatpush.msra.mxu0 %v189
    %270 = vmatpush.msra.mxu0 %v188
    %271 = vmatpush.msra.mxu0 %v187
    %272 = vmatpush.msra.mxu0 %v186
    %273 = vmatpush.msra.mxu0 %v185
    %274 = vmatpush.msra.mxu0 %v184
    %275 = vmatmul.f32.gmra.mxu0 %v258
    %v276 = vpop.f32.mrf.mxu0
    %v277 = vadd.f32 %v203, %v276
    %278 = vdwg.mxu0
    %v279 = vmax.f32 %v277, 0.0
    %280 = vst.msk [vmem:[#allocation2 + $0x8] sm:$0xff] %vm226, %v279
    %s281 = scalar_lea.vmem %s0, 24
    %v282 = vld [vmem:[%s281] sm:$0xff]
    %283 = vmatpush.msra.mxu0 %v199
    %284 = vmatpush.msra.mxu0 %v198
    %285 = vmatpush.msra.mxu0 %v197
    %286 = vmatpush.msra.mxu0 %v196
    %287 = vmatpush.msra.mxu0 %v195
    %288 = vmatpush.msra.mxu0 %v194
    %289 = vmatpush.msra.mxu0 %v193
    %290 = vmatpush.msra.mxu0 %v192
    %291 = vmatpush.msra.mxu0 %v191
    %292 = vmatpush.msra.mxu0 %v190
    %293 = vmatpush.msra.mxu0 %v189
    %294 = vmatpush.msra.mxu0 %v188
    %295 = vmatpush.msra.mxu0 %v187
    %296 = vmatpush.msra.mxu0 %v186
    %297 = vmatpush.msra.mxu0 %v185
    %298 = vmatpush.msra.mxu0 %v184
    %299 = vmatmul.f32.gmra.mxu0 %v282
    %v300 = vpop.f32.mrf.mxu0
    %v301 = vadd.f32 %v203, %v300
    %302 = vdwg.mxu0
    %v303 = vmax.f32 %v301, 0.0
    %305 = vrot.lane.b32.xlu0 %v303, 64
    %v306 = vpop.permute.xlu0 %305
    %308 = vst.msk [vmem:[#allocation2 + $0x8] sm:$0xff] %vm255, %v306
    %s309 = scalar_lea.vmem %s0, 32
    %v310 = vld [vmem:[%s309] sm:$0xff]
    %311 = vmatpush.msra.mxu0 %v199
    %312 = vmatpush.msra.mxu0 %v198
    %313 = vmatpush.msra.mxu0 %v197
    %314 = vmatpush.msra.mxu0 %v196
    %315 = vmatpush.msra.mxu0 %v195
    %316 = vmatpush.msra.mxu0 %v194
    %317 = vmatpush.msra.mxu0 %v193
    %318 = vmatpush.msra.mxu0 %v192
    %319 = vmatpush.msra.mxu0 %v191
    %320 = vmatpush.msra.mxu0 %v190
    %321 = vmatpush.msra.mxu0 %v189
    %322 = vmatpush.msra.mxu0 %v188
    %323 = vmatpush.msra.mxu0 %v187
    %324 = vmatpush.msra.mxu0 %v186
    %325 = vmatpush.msra.mxu0 %v185
    %326 = vmatpush.msra.mxu0 %v184
    %327 = vmatmul.f32.gmra.mxu0 %v310
    %v328 = vpop.f32.mrf.mxu0
    %v329 = vadd.f32 %v203, %v328
    %330 = vdwg.mxu0
    %v331 = vmax.f32 %v329, 0.0
    %332 = vst.msk [vmem:[#allocation2 + $0x10] sm:$0xff] %vm226, %v331
    %s333 = scalar_lea.vmem %s0, 40
    %v334 = vld [vmem:[%s333] sm:$0xff]
    %335 = vmatpush.msra.mxu0 %v199
    %336 = vmatpush.msra.mxu0 %v198
    %337 = vmatpush.msra.mxu0 %v197
    %338 = vmatpush.msra.mxu0 %v196
    %339 = vmatpush.msra.mxu0 %v195
    %340 = vmatpush.msra.mxu0 %v194
    %341 = vmatpush.msra.mxu0 %v193
    %342 = vmatpush.msra.mxu0 %v192
    %343 = vmatpush.msra.mxu0 %v191
    %344 = vmatpush.msra.mxu0 %v190
    %345 = vmatpush.msra.mxu0 %v189
    %346 = vmatpush.msra.mxu0 %v188
    %347 = vmatpush.msra.mxu0 %v187
    %348 = vmatpush.msra.mxu0 %v186
    %349 = vmatpush.msra.mxu0 %v185
    %350 = vmatpush.msra.mxu0 %v184
    %351 = vmatmul.f32.gmra.mxu0 %v334
    %v352 = vpop.f32.mrf.mxu0
    %v353 = vadd.f32 %v203, %v352
    %354 = vdwg.mxu0
    %v355 = vmax.f32 %v353, 0.0
    %357 = vrot.lane.b32.xlu0 %v355, 64
    %v358 = vpop.permute.xlu0 %357
    %360 = vst.msk [vmem:[#allocation2 + $0x10] sm:$0xff] %vm255, %v358
    %s361 = scalar_lea.vmem %s0, 48
    %v362 = vld [vmem:[%s361] sm:$0xff]
    %363 = vmatpush.msra.mxu0 %v199
    %364 = vmatpush.msra.mxu0 %v198
    %365 = vmatpush.msra.mxu0 %v197
    %366 = vmatpush.msra.mxu0 %v196
    %367 = vmatpush.msra.mxu0 %v195
    %368 = vmatpush.msra.mxu0 %v194
    %369 = vmatpush.msra.mxu0 %v193
    %370 = vmatpush.msra.mxu0 %v192
    %371 = vmatpush.msra.mxu0 %v191
    %372 = vmatpush.msra.mxu0 %v190
    %373 = vmatpush.msra.mxu0 %v189
    %374 = vmatpush.msra.mxu0 %v188
    %375 = vmatpush.msra.mxu0 %v187
    %376 = vmatpush.msra.mxu0 %v186
    %377 = vmatpush.msra.mxu0 %v185
    %378 = vmatpush.msra.mxu0 %v184
    %379 = vmatmul.f32.gmra.mxu0 %v362
    %v380 = vpop.f32.mrf.mxu0
    %v381 = vadd.f32 %v203, %v380
    %382 = vdwg.mxu0
    %v383 = vmax.f32 %v381, 0.0
    %384 = vst.msk [vmem:[#allocation2 + $0x18] sm:$0xff] %vm226, %v383
    %s385 = scalar_lea.vmem %s0, 56
    %v386 = vld [vmem:[%s385] sm:$0xff]
    %387 = vmatpush.msra.mxu0 %v199
    %388 = vmatpush.msra.mxu0 %v198
    %389 = vmatpush.msra.mxu0 %v197
    %390 = vmatpush.msra.mxu0 %v196
    %391 = vmatpush.msra.mxu0 %v195
    %392 = vmatpush.msra.mxu0 %v194
    %393 = vmatpush.msra.mxu0 %v193
    %394 = vmatpush.msra.mxu0 %v192
    %395 = vmatpush.msra.mxu0 %v191
    %396 = vmatpush.msra.mxu0 %v190
    %397 = vmatpush.msra.mxu0 %v189
    %398 = vmatpush.msra.mxu0 %v188
    %399 = vmatpush.msra.mxu0 %v187
    %400 = vmatpush.msra.mxu0 %v186
    %401 = vmatpush.msra.mxu0 %v185
    %402 = vmatpush.msra.mxu0 %v184
    %403 = vmatmul.f32.gmra.mxu0 %v386
    %v404 = vpop.f32.mrf.mxu0
    %v405 = vadd.f32 %v203, %v404
    %406 = vdwg.mxu0
    %v407 = vmax.f32 %v405, 0.0
    %409 = vrot.lane.b32.xlu0 %v407, 64
    %v410 = vpop.permute.xlu0 %409
    %412 = vst.msk [vmem:[#allocation2 + $0x18] sm:$0xff] %vm255, %v410
    %s413 = scalar_lea.vmem %s0, 64
    %v414 = vld [vmem:[%s413] sm:$0xff]
    %415 = vmatpush.msra.mxu0 %v199
    %416 = vmatpush.msra.mxu0 %v198
    %417 = vmatpush.msra.mxu0 %v197
    %418 = vmatpush.msra.mxu0 %v196
    %419 = vmatpush.msra.mxu0 %v195
    %420 = vmatpush.msra.mxu0 %v194
    %421 = vmatpush.msra.mxu0 %v193
    %422 = vmatpush.msra.mxu0 %v192
    %423 = vmatpush.msra.mxu0 %v191
    %424 = vmatpush.msra.mxu0 %v190
    %425 = vmatpush.msra.mxu0 %v189
    %426 = vmatpush.msra.mxu0 %v188
    %427 = vmatpush.msra.mxu0 %v187
    %428 = vmatpush.msra.mxu0 %v186
    %429 = vmatpush.msra.mxu0 %v185
    %430 = vmatpush.msra.mxu0 %v184
    %431 = vmatmul.f32.gmra.mxu0 %v414
    %v432 = vpop.f32.mrf.mxu0
    %v433 = vadd.f32 %v203, %v432
    %434 = vdwg.mxu0
    %v435 = vmax.f32 %v433, 0.0
    %436 = vst.msk [vmem:[#allocation2 + $0x20] sm:$0xff] %vm226, %v435
    %s437 = scalar_lea.vmem %s0, 72
    %v438 = vld [vmem:[%s437] sm:$0xff]
    %439 = vmatpush.msra.mxu0 %v199
    %440 = vmatpush.msra.mxu0 %v198
    %441 = vmatpush.msra.mxu0 %v197
    %442 = vmatpush.msra.mxu0 %v196
    %443 = vmatpush.msra.mxu0 %v195
    %444 = vmatpush.msra.mxu0 %v194
    %445 = vmatpush.msra.mxu0 %v193
    %446 = vmatpush.msra.mxu0 %v192
    %447 = vmatpush.msra.mxu0 %v191
    %448 = vmatpush.msra.mxu0 %v190
    %449 = vmatpush.msra.mxu0 %v189
    %450 = vmatpush.msra.mxu0 %v188
    %451 = vmatpush.msra.mxu0 %v187
    %452 = vmatpush.msra.mxu0 %v186
    %453 = vmatpush.msra.mxu0 %v185
    %454 = vmatpush.msra.mxu0 %v184
    %455 = vmatmul.f32.gmra.mxu0 %v438
    %v456 = vpop.f32.mrf.mxu0
    %v457 = vadd.f32 %v203, %v456
    %458 = vdwg.mxu0
    %v459 = vmax.f32 %v457, 0.0
    %461 = vrot.lane.b32.xlu0 %v459, 64
    %v462 = vpop.permute.xlu0 %461
    %464 = vst.msk [vmem:[#allocation2 + $0x20] sm:$0xff] %vm255, %v462
    %s465 = scalar_lea.vmem %s0, 80
    %v466 = vld [vmem:[%s465] sm:$0xff]
    %467 = vmatpush.msra.mxu0 %v199
    %468 = vmatpush.msra.mxu0 %v198
    %469 = vmatpush.msra.mxu0 %v197
    %470 = vmatpush.msra.mxu0 %v196
    %471 = vmatpush.msra.mxu0 %v195
    %472 = vmatpush.msra.mxu0 %v194
    %473 = vmatpush.msra.mxu0 %v193
    %474 = vmatpush.msra.mxu0 %v192
    %475 = vmatpush.msra.mxu0 %v191
    %476 = vmatpush.msra.mxu0 %v190
    %477 = vmatpush.msra.mxu0 %v189
    %478 = vmatpush.msra.mxu0 %v188
    %479 = vmatpush.msra.mxu0 %v187
    %480 = vmatpush.msra.mxu0 %v186
    %481 = vmatpush.msra.mxu0 %v185
    %482 = vmatpush.msra.mxu0 %v184
    %483 = vmatmul.f32.gmra.mxu0 %v466
    %v484 = vpop.f32.mrf.mxu0
    %v485 = vadd.f32 %v203, %v484
    %486 = vdwg.mxu0
    %v487 = vmax.f32 %v485, 0.0
    %488 = vst.msk [vmem:[#allocation2 + $0x28] sm:$0xff] %vm226, %v487
    %s489 = scalar_lea.vmem %s0, 88
    %v490 = vld [vmem:[%s489] sm:$0xff]
    %491 = vmatpush.msra.mxu0 %v199
    %492 = vmatpush.msra.mxu0 %v198
    %493 = vmatpush.msra.mxu0 %v197
    %494 = vmatpush.msra.mxu0 %v196
    %495 = vmatpush.msra.mxu0 %v195
    %496 = vmatpush.msra.mxu0 %v194
    %497 = vmatpush.msra.mxu0 %v193
    %498 = vmatpush.msra.mxu0 %v192
    %499 = vmatpush.msra.mxu0 %v191
    %500 = vmatpush.msra.mxu0 %v190
    %501 = vmatpush.msra.mxu0 %v189
    %502 = vmatpush.msra.mxu0 %v188
    %503 = vmatpush.msra.mxu0 %v187
    %504 = vmatpush.msra.mxu0 %v186
    %505 = vmatpush.msra.mxu0 %v185
    %506 = vmatpush.msra.mxu0 %v184
    %507 = vmatmul.f32.gmra.mxu0 %v490
    %v508 = vpop.f32.mrf.mxu0
    %v509 = vadd.f32 %v203, %v508
    %510 = vdwg.mxu0
    %v511 = vmax.f32 %v509, 0.0
    %513 = vrot.lane.b32.xlu0 %v511, 64
    %v514 = vpop.permute.xlu0 %513
    %516 = vst.msk [vmem:[#allocation2 + $0x28] sm:$0xff] %vm255, %v514
    %s517 = scalar_lea.vmem %s0, 96
    %v518 = vld [vmem:[%s517] sm:$0xff]
    %519 = vmatpush.msra.mxu0 %v199
    %520 = vmatpush.msra.mxu0 %v198
    %521 = vmatpush.msra.mxu0 %v197
    %522 = vmatpush.msra.mxu0 %v196
    %523 = vmatpush.msra.mxu0 %v195
    %524 = vmatpush.msra.mxu0 %v194
    %525 = vmatpush.msra.mxu0 %v193
    %526 = vmatpush.msra.mxu0 %v192
    %527 = vmatpush.msra.mxu0 %v191
    %528 = vmatpush.msra.mxu0 %v190
    %529 = vmatpush.msra.mxu0 %v189
    %530 = vmatpush.msra.mxu0 %v188
    %531 = vmatpush.msra.mxu0 %v187
    %532 = vmatpush.msra.mxu0 %v186
    %533 = vmatpush.msra.mxu0 %v185
    %534 = vmatpush.msra.mxu0 %v184
    %535 = vmatmul.f32.gmra.mxu0 %v518
    %v536 = vpop.f32.mrf.mxu0
    %v537 = vadd.f32 %v203, %v536
    %538 = vdwg.mxu0
    %v539 = vmax.f32 %v537, 0.0
    %540 = vst.msk [vmem:[#allocation2 + $0x30] sm:$0xff] %vm226, %v539
    %s541 = scalar_lea.vmem %s0, 104
    %v542 = vld [vmem:[%s541] sm:$0xff]
    %543 = vmatpush.msra.mxu0 %v199
    %544 = vmatpush.msra.mxu0 %v198
    %545 = vmatpush.msra.mxu0 %v197
    %546 = vmatpush.msra.mxu0 %v196
    %547 = vmatpush.msra.mxu0 %v195
    %548 = vmatpush.msra.mxu0 %v194
    %549 = vmatpush.msra.mxu0 %v193
    %550 = vmatpush.msra.mxu0 %v192
    %551 = vmatpush.msra.mxu0 %v191
    %552 = vmatpush.msra.mxu0 %v190
    %553 = vmatpush.msra.mxu0 %v189
    %554 = vmatpush.msra.mxu0 %v188
    %555 = vmatpush.msra.mxu0 %v187
    %556 = vmatpush.msra.mxu0 %v186
    %557 = vmatpush.msra.mxu0 %v185
    %558 = vmatpush.msra.mxu0 %v184
    %559 = vmatmul.f32.gmra.mxu0 %v542
    %v560 = vpop.f32.mrf.mxu0
    %v561 = vadd.f32 %v203, %v560
    %562 = vdwg.mxu0
    %v563 = vmax.f32 %v561, 0.0
    %565 = vrot.lane.b32.xlu0 %v563, 64
    %v566 = vpop.permute.xlu0 %565
    %568 = vst.msk [vmem:[#allocation2 + $0x30] sm:$0xff] %vm255, %v566
    %s569 = scalar_lea.vmem %s0, 112
    %v570 = vld [vmem:[%s569] sm:$0xff]
    %571 = vmatpush.msra.mxu0 %v199
    %572 = vmatpush.msra.mxu0 %v198
    %573 = vmatpush.msra.mxu0 %v197
    %574 = vmatpush.msra.mxu0 %v196
    %575 = vmatpush.msra.mxu0 %v195
    %576 = vmatpush.msra.mxu0 %v194
    %577 = vmatpush.msra.mxu0 %v193
    %578 = vmatpush.msra.mxu0 %v192
    %579 = vmatpush.msra.mxu0 %v191
    %580 = vmatpush.msra.mxu0 %v190
    %581 = vmatpush.msra.mxu0 %v189
    %582 = vmatpush.msra.mxu0 %v188
    %583 = vmatpush.msra.mxu0 %v187
    %584 = vmatpush.msra.mxu0 %v186
    %585 = vmatpush.msra.mxu0 %v185
    %586 = vmatpush.msra.mxu0 %v184
    %587 = vmatmul.f32.gmra.mxu0 %v570
    %v588 = vpop.f32.mrf.mxu0
    %v589 = vadd.f32 %v203, %v588
    %590 = vdwg.mxu0
    %v591 = vmax.f32 %v589, 0.0
    %592 = vst.msk [vmem:[#allocation2 + $0x38] sm:$0xff] %vm226, %v591
    %s593 = scalar_lea.vmem %s0, 120
    %v594 = vld [vmem:[%s593] sm:$0xff]
    %595 = vmatpush.msra.mxu0 %v199
    %596 = vmatpush.msra.mxu0 %v198
    %597 = vmatpush.msra.mxu0 %v197
    %598 = vmatpush.msra.mxu0 %v196
    %599 = vmatpush.msra.mxu0 %v195
    %600 = vmatpush.msra.mxu0 %v194
    %601 = vmatpush.msra.mxu0 %v193
    %602 = vmatpush.msra.mxu0 %v192
    %603 = vmatpush.msra.mxu0 %v191
    %604 = vmatpush.msra.mxu0 %v190
    %605 = vmatpush.msra.mxu0 %v189
    %606 = vmatpush.msra.mxu0 %v188
    %607 = vmatpush.msra.mxu0 %v187
    %608 = vmatpush.msra.mxu0 %v186
    %609 = vmatpush.msra.mxu0 %v185
    %610 = vmatpush.msra.mxu0 %v184
    %611 = vmatmul.f32.gmra.mxu0 %v594
    %v612 = vpop.f32.mrf.mxu0
    %v613 = vadd.f32 %v203, %v612
    %614 = vdwg.mxu0
    %v615 = vmax.f32 %v613, 0.0
    %617 = vrot.lane.b32.xlu0 %v615, 64
    %v618 = vpop.permute.xlu0 %617
    %620 = vst.msk [vmem:[#allocation2 + $0x38] sm:$0xff] %vm255, %v618
    %s621 = scalar_lea.vmem %s0, 128
    %v622 = vld [vmem:[%s621] sm:$0xff]
    %623 = vmatpush.msra.mxu0 %v199
    %624 = vmatpush.msra.mxu0 %v198
    %625 = vmatpush.msra.mxu0 %v197
    %626 = vmatpush.msra.mxu0 %v196
    %627 = vmatpush.msra.mxu0 %v195
    %628 = vmatpush.msra.mxu0 %v194
    %629 = vmatpush.msra.mxu0 %v193
    %630 = vmatpush.msra.mxu0 %v192
    %631 = vmatpush.msra.mxu0 %v191
    %632 = vmatpush.msra.mxu0 %v190
    %633 = vmatpush.msra.mxu0 %v189
    %634 = vmatpush.msra.mxu0 %v188
    %635 = vmatpush.msra.mxu0 %v187
    %636 = vmatpush.msra.mxu0 %v186
    %637 = vmatpush.msra.mxu0 %v185
    %638 = vmatpush.msra.mxu0 %v184
    %639 = vmatmul.f32.gmra.mxu0 %v622
    %v640 = vpop.f32.mrf.mxu0
    %v641 = vadd.f32 %v203, %v640
    %642 = vdwg.mxu0
    %v643 = vmax.f32 %v641, 0.0
    %644 = vst.msk [vmem:[#allocation2 + $0x40] sm:$0xff] %vm226, %v643
    %s645 = scalar_lea.vmem %s0, 136
    %v646 = vld [vmem:[%s645] sm:$0xff]
    %647 = vmatpush.msra.mxu0 %v199
    %648 = vmatpush.msra.mxu0 %v198
    %649 = vmatpush.msra.mxu0 %v197
    %650 = vmatpush.msra.mxu0 %v196
    %651 = vmatpush.msra.mxu0 %v195
    %652 = vmatpush.msra.mxu0 %v194
    %653 = vmatpush.msra.mxu0 %v193
    %654 = vmatpush.msra.mxu0 %v192
    %655 = vmatpush.msra.mxu0 %v191
    %656 = vmatpush.msra.mxu0 %v190
    %657 = vmatpush.msra.mxu0 %v189
    %658 = vmatpush.msra.mxu0 %v188
    %659 = vmatpush.msra.mxu0 %v187
    %660 = vmatpush.msra.mxu0 %v186
    %661 = vmatpush.msra.mxu0 %v185
    %662 = vmatpush.msra.mxu0 %v184
    %663 = vmatmul.f32.gmra.mxu0 %v646
    %v664 = vpop.f32.mrf.mxu0
    %v665 = vadd.f32 %v203, %v664
    %666 = vdwg.mxu0
    %v667 = vmax.f32 %v665, 0.0
    %669 = vrot.lane.b32.xlu0 %v667, 64
    %v670 = vpop.permute.xlu0 %669
    %672 = vst.msk [vmem:[#allocation2 + $0x40] sm:$0xff] %vm255, %v670
    %s673 = scalar_lea.vmem %s0, 144
    %v674 = vld [vmem:[%s673] sm:$0xff]
    %675 = vmatpush.msra.mxu0 %v199
    %676 = vmatpush.msra.mxu0 %v198
    %677 = vmatpush.msra.mxu0 %v197
    %678 = vmatpush.msra.mxu0 %v196
    %679 = vmatpush.msra.mxu0 %v195
    %680 = vmatpush.msra.mxu0 %v194
    %681 = vmatpush.msra.mxu0 %v193
    %682 = vmatpush.msra.mxu0 %v192
    %683 = vmatpush.msra.mxu0 %v191
    %684 = vmatpush.msra.mxu0 %v190
    %685 = vmatpush.msra.mxu0 %v189
    %686 = vmatpush.msra.mxu0 %v188
    %687 = vmatpush.msra.mxu0 %v187
    %688 = vmatpush.msra.mxu0 %v186
    %689 = vmatpush.msra.mxu0 %v185
    %690 = vmatpush.msra.mxu0 %v184
    %691 = vmatmul.f32.gmra.mxu0 %v674
    %v692 = vpop.f32.mrf.mxu0
    %v693 = vadd.f32 %v203, %v692
    %694 = vdwg.mxu0
    %v695 = vmax.f32 %v693, 0.0
    %696 = vst.msk [vmem:[#allocation2 + $0x48] sm:$0xff] %vm226, %v695
    %s697 = scalar_lea.vmem %s0, 152
    %v698 = vld [vmem:[%s697] sm:$0xff]
    %699 = vmatpush.msra.mxu0 %v199
    %700 = vmatpush.msra.mxu0 %v198
    %701 = vmatpush.msra.mxu0 %v197
    %702 = vmatpush.msra.mxu0 %v196
    %703 = vmatpush.msra.mxu0 %v195
    %704 = vmatpush.msra.mxu0 %v194
    %705 = vmatpush.msra.mxu0 %v193
    %706 = vmatpush.msra.mxu0 %v192
    %707 = vmatpush.msra.mxu0 %v191
    %708 = vmatpush.msra.mxu0 %v190
    %709 = vmatpush.msra.mxu0 %v189
    %710 = vmatpush.msra.mxu0 %v188
    %711 = vmatpush.msra.mxu0 %v187
    %712 = vmatpush.msra.mxu0 %v186
    %713 = vmatpush.msra.mxu0 %v185
    %714 = vmatpush.msra.mxu0 %v184
    %715 = vmatmul.f32.gmra.mxu0 %v698
    %v716 = vpop.f32.mrf.mxu0
    %v717 = vadd.f32 %v203, %v716
    %718 = vdwg.mxu0
    %v719 = vmax.f32 %v717, 0.0
    %721 = vrot.lane.b32.xlu0 %v719, 64
    %v722 = vpop.permute.xlu0 %721
    %724 = vst.msk [vmem:[#allocation2 + $0x48] sm:$0xff] %vm255, %v722
    %s725 = scalar_lea.vmem %s0, 160
    %v726 = vld [vmem:[%s725] sm:$0xff]
    %727 = vmatpush.msra.mxu0 %v199
    %728 = vmatpush.msra.mxu0 %v198
    %729 = vmatpush.msra.mxu0 %v197
    %730 = vmatpush.msra.mxu0 %v196
    %731 = vmatpush.msra.mxu0 %v195
    %732 = vmatpush.msra.mxu0 %v194
    %733 = vmatpush.msra.mxu0 %v193
    %734 = vmatpush.msra.mxu0 %v192
    %735 = vmatpush.msra.mxu0 %v191
    %736 = vmatpush.msra.mxu0 %v190
    %737 = vmatpush.msra.mxu0 %v189
    %738 = vmatpush.msra.mxu0 %v188
    %739 = vmatpush.msra.mxu0 %v187
    %740 = vmatpush.msra.mxu0 %v186
    %741 = vmatpush.msra.mxu0 %v185
    %742 = vmatpush.msra.mxu0 %v184
    %743 = vmatmul.f32.gmra.mxu0 %v726
    %v744 = vpop.f32.mrf.mxu0
    %v745 = vadd.f32 %v203, %v744
    %746 = vdwg.mxu0
    %v747 = vmax.f32 %v745, 0.0
    %748 = vst.msk [vmem:[#allocation2 + $0x50] sm:$0xff] %vm226, %v747
    %s749 = scalar_lea.vmem %s0, 168
    %v750 = vld [vmem:[%s749] sm:$0xff]
    %751 = vmatpush.msra.mxu0 %v199
    %752 = vmatpush.msra.mxu0 %v198
    %753 = vmatpush.msra.mxu0 %v197
    %754 = vmatpush.msra.mxu0 %v196
    %755 = vmatpush.msra.mxu0 %v195
    %756 = vmatpush.msra.mxu0 %v194
    %757 = vmatpush.msra.mxu0 %v193
    %758 = vmatpush.msra.mxu0 %v192
    %759 = vmatpush.msra.mxu0 %v191
    %760 = vmatpush.msra.mxu0 %v190
    %761 = vmatpush.msra.mxu0 %v189
    %762 = vmatpush.msra.mxu0 %v188
    %763 = vmatpush.msra.mxu0 %v187
    %764 = vmatpush.msra.mxu0 %v186
    %765 = vmatpush.msra.mxu0 %v185
    %766 = vmatpush.msra.mxu0 %v184
    %767 = vmatmul.f32.gmra.mxu0 %v750
    %v768 = vpop.f32.mrf.mxu0
    %v769 = vadd.f32 %v203, %v768
    %770 = vdwg.mxu0
    %v771 = vmax.f32 %v769, 0.0
    %773 = vrot.lane.b32.xlu0 %v771, 64
    %v774 = vpop.permute.xlu0 %773
    %776 = vst.msk [vmem:[#allocation2 + $0x50] sm:$0xff] %vm255, %v774
    %s777 = scalar_lea.vmem %s0, 176
    %v778 = vld [vmem:[%s777] sm:$0xff]
    %779 = vmatpush.msra.mxu0 %v199
    %780 = vmatpush.msra.mxu0 %v198
    %781 = vmatpush.msra.mxu0 %v197
    %782 = vmatpush.msra.mxu0 %v196
    %783 = vmatpush.msra.mxu0 %v195
    %784 = vmatpush.msra.mxu0 %v194
    %785 = vmatpush.msra.mxu0 %v193
    %786 = vmatpush.msra.mxu0 %v192
    %787 = vmatpush.msra.mxu0 %v191
    %788 = vmatpush.msra.mxu0 %v190
    %789 = vmatpush.msra.mxu0 %v189
    %790 = vmatpush.msra.mxu0 %v188
    %791 = vmatpush.msra.mxu0 %v187
    %792 = vmatpush.msra.mxu0 %v186
    %793 = vmatpush.msra.mxu0 %v185
    %794 = vmatpush.msra.mxu0 %v184
    %795 = vmatmul.f32.gmra.mxu0 %v778
    %v796 = vpop.f32.mrf.mxu0
    %v797 = vadd.f32 %v203, %v796
    %798 = vdwg.mxu0
    %v799 = vmax.f32 %v797, 0.0
    %800 = vst.msk [vmem:[#allocation2 + $0x58] sm:$0xff] %vm226, %v799
    %s801 = scalar_lea.vmem %s0, 184
    %v802 = vld [vmem:[%s801] sm:$0xff]
    %803 = vmatpush.msra.mxu0 %v199
    %804 = vmatpush.msra.mxu0 %v198
    %805 = vmatpush.msra.mxu0 %v197
    %806 = vmatpush.msra.mxu0 %v196
    %807 = vmatpush.msra.mxu0 %v195
    %808 = vmatpush.msra.mxu0 %v194
    %809 = vmatpush.msra.mxu0 %v193
    %810 = vmatpush.msra.mxu0 %v192
    %811 = vmatpush.msra.mxu0 %v191
    %812 = vmatpush.msra.mxu0 %v190
    %813 = vmatpush.msra.mxu0 %v189
    %814 = vmatpush.msra.mxu0 %v188
    %815 = vmatpush.msra.mxu0 %v187
    %816 = vmatpush.msra.mxu0 %v186
    %817 = vmatpush.msra.mxu0 %v185
    %818 = vmatpush.msra.mxu0 %v184
    %819 = vmatmul.f32.gmra.mxu0 %v802
    %v820 = vpop.f32.mrf.mxu0
    %v821 = vadd.f32 %v203, %v820
    %822 = vdwg.mxu0
    %v823 = vmax.f32 %v821, 0.0
    %825 = vrot.lane.b32.xlu0 %v823, 64
    %v826 = vpop.permute.xlu0 %825
    %828 = vst.msk [vmem:[#allocation2 + $0x58] sm:$0xff] %vm255, %v826
    %s829 = scalar_lea.vmem %s0, 192
    %v830 = vld [vmem:[%s829] sm:$0xff]
    %831 = vmatpush.msra.mxu0 %v199
    %832 = vmatpush.msra.mxu0 %v198
    %833 = vmatpush.msra.mxu0 %v197
    %834 = vmatpush.msra.mxu0 %v196
    %835 = vmatpush.msra.mxu0 %v195
    %836 = vmatpush.msra.mxu0 %v194
    %837 = vmatpush.msra.mxu0 %v193
    %838 = vmatpush.msra.mxu0 %v192
    %839 = vmatpush.msra.mxu0 %v191
    %840 = vmatpush.msra.mxu0 %v190
    %841 = vmatpush.msra.mxu0 %v189
    %842 = vmatpush.msra.mxu0 %v188
    %843 = vmatpush.msra.mxu0 %v187
    %844 = vmatpush.msra.mxu0 %v186
    %845 = vmatpush.msra.mxu0 %v185
    %846 = vmatpush.msra.mxu0 %v184
    %847 = vmatmul.f32.gmra.mxu0 %v830
    %v848 = vpop.f32.mrf.mxu0
    %v849 = vadd.f32 %v203, %v848
    %850 = vdwg.mxu0
    %v851 = vmax.f32 %v849, 0.0
    %852 = vst.msk [vmem:[#allocation2 + $0x60] sm:$0xff] %vm226, %v851
    %s853 = scalar_lea.vmem %s0, 200
    %v854 = vld [vmem:[%s853] sm:$0xff]
    %855 = vmatpush.msra.mxu0 %v199
    %856 = vmatpush.msra.mxu0 %v198
    %857 = vmatpush.msra.mxu0 %v197
    %858 = vmatpush.msra.mxu0 %v196
    %859 = vmatpush.msra.mxu0 %v195
    %860 = vmatpush.msra.mxu0 %v194
    %861 = vmatpush.msra.mxu0 %v193
    %862 = vmatpush.msra.mxu0 %v192
    %863 = vmatpush.msra.mxu0 %v191
    %864 = vmatpush.msra.mxu0 %v190
    %865 = vmatpush.msra.mxu0 %v189
    %866 = vmatpush.msra.mxu0 %v188
    %867 = vmatpush.msra.mxu0 %v187
    %868 = vmatpush.msra.mxu0 %v186
    %869 = vmatpush.msra.mxu0 %v185
    %870 = vmatpush.msra.mxu0 %v184
    %871 = vmatmul.f32.gmra.mxu0 %v854
    %v872 = vpop.f32.mrf.mxu0
    %v873 = vadd.f32 %v203, %v872
    %874 = vdwg.mxu0
    %v875 = vmax.f32 %v873, 0.0
    %877 = vrot.lane.b32.xlu0 %v875, 64
    %v878 = vpop.permute.xlu0 %877
    %880 = vst.msk [vmem:[#allocation2 + $0x60] sm:$0xff] %vm255, %v878
    %s881 = scalar_lea.vmem %s0, 208
    %v882 = vld [vmem:[%s881] sm:$0xff]
    %883 = vmatpush.msra.mxu0 %v199
    %884 = vmatpush.msra.mxu0 %v198
    %885 = vmatpush.msra.mxu0 %v197
    %886 = vmatpush.msra.mxu0 %v196
    %887 = vmatpush.msra.mxu0 %v195
    %888 = vmatpush.msra.mxu0 %v194
    %889 = vmatpush.msra.mxu0 %v193
    %890 = vmatpush.msra.mxu0 %v192
    %891 = vmatpush.msra.mxu0 %v191
    %892 = vmatpush.msra.mxu0 %v190
    %893 = vmatpush.msra.mxu0 %v189
    %894 = vmatpush.msra.mxu0 %v188
    %895 = vmatpush.msra.mxu0 %v187
    %896 = vmatpush.msra.mxu0 %v186
    %897 = vmatpush.msra.mxu0 %v185
    %898 = vmatpush.msra.mxu0 %v184
    %899 = vmatmul.f32.gmra.mxu0 %v882
    %v900 = vpop.f32.mrf.mxu0
    %v901 = vadd.f32 %v203, %v900
    %902 = vdwg.mxu0
    %v903 = vmax.f32 %v901, 0.0
    %904 = vst.msk [vmem:[#allocation2 + $0x68] sm:$0xff] %vm226, %v903
    %s905 = scalar_lea.vmem %s0, 216
    %v906 = vld [vmem:[%s905] sm:$0xff]
    %907 = vmatpush.msra.mxu0 %v199
    %908 = vmatpush.msra.mxu0 %v198
    %909 = vmatpush.msra.mxu0 %v197
    %910 = vmatpush.msra.mxu0 %v196
    %911 = vmatpush.msra.mxu0 %v195
    %912 = vmatpush.msra.mxu0 %v194
    %913 = vmatpush.msra.mxu0 %v193
    %914 = vmatpush.msra.mxu0 %v192
    %915 = vmatpush.msra.mxu0 %v191
    %916 = vmatpush.msra.mxu0 %v190
    %917 = vmatpush.msra.mxu0 %v189
    %918 = vmatpush.msra.mxu0 %v188
    %919 = vmatpush.msra.mxu0 %v187
    %920 = vmatpush.msra.mxu0 %v186
    %921 = vmatpush.msra.mxu0 %v185
    %922 = vmatpush.msra.mxu0 %v184
    %923 = vmatmul.f32.gmra.mxu0 %v906
    %v924 = vpop.f32.mrf.mxu0
    %v925 = vadd.f32 %v203, %v924
    %926 = vdwg.mxu0
    %v927 = vmax.f32 %v925, 0.0
    %929 = vrot.lane.b32.xlu0 %v927, 64
    %v930 = vpop.permute.xlu0 %929
    %932 = vst.msk [vmem:[#allocation2 + $0x68] sm:$0xff] %vm255, %v930
    %s933 = scalar_lea.vmem %s0, 224
    %v934 = vld [vmem:[%s933] sm:$0xff]
    %935 = vmatpush.msra.mxu0 %v199
    %936 = vmatpush.msra.mxu0 %v198
    %937 = vmatpush.msra.mxu0 %v197
    %938 = vmatpush.msra.mxu0 %v196
    %939 = vmatpush.msra.mxu0 %v195
    %940 = vmatpush.msra.mxu0 %v194
    %941 = vmatpush.msra.mxu0 %v193
    %942 = vmatpush.msra.mxu0 %v192
    %943 = vmatpush.msra.mxu0 %v191
    %944 = vmatpush.msra.mxu0 %v190
    %945 = vmatpush.msra.mxu0 %v189
    %946 = vmatpush.msra.mxu0 %v188
    %947 = vmatpush.msra.mxu0 %v187
    %948 = vmatpush.msra.mxu0 %v186
    %949 = vmatpush.msra.mxu0 %v185
    %950 = vmatpush.msra.mxu0 %v184
    %951 = vmatmul.f32.gmra.mxu0 %v934
    %v952 = vpop.f32.mrf.mxu0
    %v953 = vadd.f32 %v203, %v952
    %954 = vdwg.mxu0
    %v955 = vmax.f32 %v953, 0.0
    %956 = vst.msk [vmem:[#allocation2 + $0x70] sm:$0xff] %vm226, %v955
    %s957 = scalar_lea.vmem %s0, 232
    %v958 = vld [vmem:[%s957] sm:$0xff]
    %959 = vmatpush.msra.mxu0 %v199
    %960 = vmatpush.msra.mxu0 %v198
    %961 = vmatpush.msra.mxu0 %v197
    %962 = vmatpush.msra.mxu0 %v196
    %963 = vmatpush.msra.mxu0 %v195
    %964 = vmatpush.msra.mxu0 %v194
    %965 = vmatpush.msra.mxu0 %v193
    %966 = vmatpush.msra.mxu0 %v192
    %967 = vmatpush.msra.mxu0 %v191
    %968 = vmatpush.msra.mxu0 %v190
    %969 = vmatpush.msra.mxu0 %v189
    %970 = vmatpush.msra.mxu0 %v188
    %971 = vmatpush.msra.mxu0 %v187
    %972 = vmatpush.msra.mxu0 %v186
    %973 = vmatpush.msra.mxu0 %v185
    %974 = vmatpush.msra.mxu0 %v184
    %975 = vmatmul.f32.gmra.mxu0 %v958
    %v976 = vpop.f32.mrf.mxu0
    %v977 = vadd.f32 %v203, %v976
    %978 = vdwg.mxu0
    %v979 = vmax.f32 %v977, 0.0
    %981 = vrot.lane.b32.xlu0 %v979, 64
    %v982 = vpop.permute.xlu0 %981
    %984 = vst.msk [vmem:[#allocation2 + $0x70] sm:$0xff] %vm255, %v982
    %s985 = scalar_lea.vmem %s0, 240
    %v986 = vld [vmem:[%s985] sm:$0xff]
    %987 = vmatpush.msra.mxu0 %v199
    %988 = vmatpush.msra.mxu0 %v198
    %989 = vmatpush.msra.mxu0 %v197
    %990 = vmatpush.msra.mxu0 %v196
    %991 = vmatpush.msra.mxu0 %v195
    %992 = vmatpush.msra.mxu0 %v194
    %993 = vmatpush.msra.mxu0 %v193
    %994 = vmatpush.msra.mxu0 %v192
    %995 = vmatpush.msra.mxu0 %v191
    %996 = vmatpush.msra.mxu0 %v190
    %997 = vmatpush.msra.mxu0 %v189
    %998 = vmatpush.msra.mxu0 %v188
    %999 = vmatpush.msra.mxu0 %v187
    %1000 = vmatpush.msra.mxu0 %v186
    %1001 = vmatpush.msra.mxu0 %v185
    %1002 = vmatpush.msra.mxu0 %v184
    %1003 = vmatmul.f32.gmra.mxu0 %v986
    %v1004 = vpop.f32.mrf.mxu0
    %v1005 = vadd.f32 %v203, %v1004
    %1006 = vdwg.mxu0
    %v1007 = vmax.f32 %v1005, 0.0
    %1008 = vst.msk [vmem:[#allocation2 + $0x78] sm:$0xff] %vm226, %v1007
    %s1009 = scalar_lea.vmem %s0, 248
    %v1010 = vld [vmem:[%s1009] sm:$0xff]
    %1011 = vmatpush.msra.mxu0 %v199
    %1012 = vmatpush.msra.mxu0 %v198
    %1013 = vmatpush.msra.mxu0 %v197
    %1014 = vmatpush.msra.mxu0 %v196
    %1015 = vmatpush.msra.mxu0 %v195
    %1016 = vmatpush.msra.mxu0 %v194
    %1017 = vmatpush.msra.mxu0 %v193
    %1018 = vmatpush.msra.mxu0 %v192
    %1019 = vmatpush.msra.mxu0 %v191
    %1020 = vmatpush.msra.mxu0 %v190
    %1021 = vmatpush.msra.mxu0 %v189
    %1022 = vmatpush.msra.mxu0 %v188
    %1023 = vmatpush.msra.mxu0 %v187
    %1024 = vmatpush.msra.mxu0 %v186
    %1025 = vmatpush.msra.mxu0 %v185
    %1026 = vmatpush.msra.mxu0 %v184
    %1027 = vmatmul.f32.gmra.mxu0 %v1010
    %v1028 = vpop.f32.mrf.mxu0
    %v1029 = vadd.f32 %v203, %v1028
    %1030 = vdwg.mxu0
    %v1031 = vmax.f32 %v1029, 0.0
    %1033 = vrot.lane.b32.xlu0 %v1031, 64
    %v1034 = vpop.permute.xlu0 %1033
    %1036 = vst.msk [vmem:[#allocation2 + $0x78] sm:$0xff] %vm255, %v1034
    %s1037 = scalar_lea.vmem %s0, 256
    %v1038 = vld [vmem:[%s1037] sm:$0xff]
    %1039 = vmatpush.msra.mxu0 %v199
    %1040 = vmatpush.msra.mxu0 %v198
    %1041 = vmatpush.msra.mxu0 %v197
    %1042 = vmatpush.msra.mxu0 %v196
    %1043 = vmatpush.msra.mxu0 %v195
    %1044 = vmatpush.msra.mxu0 %v194
    %1045 = vmatpush.msra.mxu0 %v193
    %1046 = vmatpush.msra.mxu0 %v192
    %1047 = vmatpush.msra.mxu0 %v191
    %1048 = vmatpush.msra.mxu0 %v190
    %1049 = vmatpush.msra.mxu0 %v189
    %1050 = vmatpush.msra.mxu0 %v188
    %1051 = vmatpush.msra.mxu0 %v187
    %1052 = vmatpush.msra.mxu0 %v186
    %1053 = vmatpush.msra.mxu0 %v185
    %1054 = vmatpush.msra.mxu0 %v184
    %1055 = vmatmul.f32.gmra.mxu0 %v1038
    %v1056 = vpop.f32.mrf.mxu0
    %v1057 = vadd.f32 %v203, %v1056
    %1058 = vdwg.mxu0
    %v1059 = vmax.f32 %v1057, 0.0
    %1060 = vst.msk [vmem:[#allocation2 + $0x80] sm:$0xff] %vm226, %v1059
    %s1061 = scalar_lea.vmem %s0, 264
    %v1062 = vld [vmem:[%s1061] sm:$0xff]
    %1063 = vmatpush.msra.mxu0 %v199
    %1064 = vmatpush.msra.mxu0 %v198
    %1065 = vmatpush.msra.mxu0 %v197
    %1066 = vmatpush.msra.mxu0 %v196
    %1067 = vmatpush.msra.mxu0 %v195
    %1068 = vmatpush.msra.mxu0 %v194
    %1069 = vmatpush.msra.mxu0 %v193
    %1070 = vmatpush.msra.mxu0 %v192
    %1071 = vmatpush.msra.mxu0 %v191
    %1072 = vmatpush.msra.mxu0 %v190
    %1073 = vmatpush.msra.mxu0 %v189
    %1074 = vmatpush.msra.mxu0 %v188
    %1075 = vmatpush.msra.mxu0 %v187
    %1076 = vmatpush.msra.mxu0 %v186
    %1077 = vmatpush.msra.mxu0 %v185
    %1078 = vmatpush.msra.mxu0 %v184
    %1079 = vmatmul.f32.gmra.mxu0 %v1062
    %v1080 = vpop.f32.mrf.mxu0
    %v1081 = vadd.f32 %v203, %v1080
    %1082 = vdwg.mxu0
    %v1083 = vmax.f32 %v1081, 0.0
    %1085 = vrot.lane.b32.xlu0 %v1083, 64
    %v1086 = vpop.permute.xlu0 %1085
    %1088 = vst.msk [vmem:[#allocation2 + $0x80] sm:$0xff] %vm255, %v1086
    %s1089 = scalar_lea.vmem %s0, 272
    %v1090 = vld [vmem:[%s1089] sm:$0xff]
    %1091 = vmatpush.msra.mxu0 %v199
    %1092 = vmatpush.msra.mxu0 %v198
    %1093 = vmatpush.msra.mxu0 %v197
    %1094 = vmatpush.msra.mxu0 %v196
    %1095 = vmatpush.msra.mxu0 %v195
    %1096 = vmatpush.msra.mxu0 %v194
    %1097 = vmatpush.msra.mxu0 %v193
    %1098 = vmatpush.msra.mxu0 %v192
    %1099 = vmatpush.msra.mxu0 %v191
    %1100 = vmatpush.msra.mxu0 %v190
    %1101 = vmatpush.msra.mxu0 %v189
    %1102 = vmatpush.msra.mxu0 %v188
    %1103 = vmatpush.msra.mxu0 %v187
    %1104 = vmatpush.msra.mxu0 %v186
    %1105 = vmatpush.msra.mxu0 %v185
    %1106 = vmatpush.msra.mxu0 %v184
    %1107 = vmatmul.f32.gmra.mxu0 %v1090
    %v1108 = vpop.f32.mrf.mxu0
    %v1109 = vadd.f32 %v203, %v1108
    %1110 = vdwg.mxu0
    %v1111 = vmax.f32 %v1109, 0.0
    %1112 = vst.msk [vmem:[#allocation2 + $0x88] sm:$0xff] %vm226, %v1111
    %s1113 = scalar_lea.vmem %s0, 280
    %v1114 = vld [vmem:[%s1113] sm:$0xff]
    %1115 = vmatpush.msra.mxu0 %v199
    %1116 = vmatpush.msra.mxu0 %v198
    %1117 = vmatpush.msra.mxu0 %v197
    %1118 = vmatpush.msra.mxu0 %v196
    %1119 = vmatpush.msra.mxu0 %v195
    %1120 = vmatpush.msra.mxu0 %v194
    %1121 = vmatpush.msra.mxu0 %v193
    %1122 = vmatpush.msra.mxu0 %v192
    %1123 = vmatpush.msra.mxu0 %v191
    %1124 = vmatpush.msra.mxu0 %v190
    %1125 = vmatpush.msra.mxu0 %v189
    %1126 = vmatpush.msra.mxu0 %v188
    %1127 = vmatpush.msra.mxu0 %v187
    %1128 = vmatpush.msra.mxu0 %v186
    %1129 = vmatpush.msra.mxu0 %v185
    %1130 = vmatpush.msra.mxu0 %v184
    %1131 = vmatmul.f32.gmra.mxu0 %v1114
    %v1132 = vpop.f32.mrf.mxu0
    %v1133 = vadd.f32 %v203, %v1132
    %1134 = vdwg.mxu0
    %v1135 = vmax.f32 %v1133, 0.0
    %1137 = vrot.lane.b32.xlu0 %v1135, 64
    %v1138 = vpop.permute.xlu0 %1137
    %1140 = vst.msk [vmem:[#allocation2 + $0x88] sm:$0xff] %vm255, %v1138
    %s1141 = scalar_lea.vmem %s0, 288
    %v1142 = vld [vmem:[%s1141] sm:$0xff]
    %1143 = vmatpush.msra.mxu0 %v199
    %1144 = vmatpush.msra.mxu0 %v198
    %1145 = vmatpush.msra.mxu0 %v197
    %1146 = vmatpush.msra.mxu0 %v196
    %1147 = vmatpush.msra.mxu0 %v195
    %1148 = vmatpush.msra.mxu0 %v194
    %1149 = vmatpush.msra.mxu0 %v193
    %1150 = vmatpush.msra.mxu0 %v192
    %1151 = vmatpush.msra.mxu0 %v191
    %1152 = vmatpush.msra.mxu0 %v190
    %1153 = vmatpush.msra.mxu0 %v189
    %1154 = vmatpush.msra.mxu0 %v188
    %1155 = vmatpush.msra.mxu0 %v187
    %1156 = vmatpush.msra.mxu0 %v186
    %1157 = vmatpush.msra.mxu0 %v185
    %1158 = vmatpush.msra.mxu0 %v184
    %1159 = vmatmul.f32.gmra.mxu0 %v1142
    %v1160 = vpop.f32.mrf.mxu0
    %v1161 = vadd.f32 %v203, %v1160
    %1162 = vdwg.mxu0
    %v1163 = vmax.f32 %v1161, 0.0
    %1164 = vst.msk [vmem:[#allocation2 + $0x90] sm:$0xff] %vm226, %v1163
    %s1165 = scalar_lea.vmem %s0, 296
    %v1166 = vld [vmem:[%s1165] sm:$0xff]
    %1167 = vmatpush.msra.mxu0 %v199
    %1168 = vmatpush.msra.mxu0 %v198
    %1169 = vmatpush.msra.mxu0 %v197
    %1170 = vmatpush.msra.mxu0 %v196
    %1171 = vmatpush.msra.mxu0 %v195
    %1172 = vmatpush.msra.mxu0 %v194
    %1173 = vmatpush.msra.mxu0 %v193
    %1174 = vmatpush.msra.mxu0 %v192
    %1175 = vmatpush.msra.mxu0 %v191
    %1176 = vmatpush.msra.mxu0 %v190
    %1177 = vmatpush.msra.mxu0 %v189
    %1178 = vmatpush.msra.mxu0 %v188
    %1179 = vmatpush.msra.mxu0 %v187
    %1180 = vmatpush.msra.mxu0 %v186
    %1181 = vmatpush.msra.mxu0 %v185
    %1182 = vmatpush.msra.mxu0 %v184
    %1183 = vmatmul.f32.gmra.mxu0 %v1166
    %v1184 = vpop.f32.mrf.mxu0
    %v1185 = vadd.f32 %v203, %v1184
    %1186 = vdwg.mxu0
    %v1187 = vmax.f32 %v1185, 0.0
    %1189 = vrot.lane.b32.xlu0 %v1187, 64
    %v1190 = vpop.permute.xlu0 %1189
    %1192 = vst.msk [vmem:[#allocation2 + $0x90] sm:$0xff] %vm255, %v1190
    %s1193 = scalar_lea.vmem %s0, 304
    %v1194 = vld [vmem:[%s1193] sm:$0xff]
    %1195 = vmatpush.msra.mxu0 %v199
    %1196 = vmatpush.msra.mxu0 %v198
    %1197 = vmatpush.msra.mxu0 %v197
    %1198 = vmatpush.msra.mxu0 %v196
    %1199 = vmatpush.msra.mxu0 %v195
    %1200 = vmatpush.msra.mxu0 %v194
    %1201 = vmatpush.msra.mxu0 %v193
    %1202 = vmatpush.msra.mxu0 %v192
    %1203 = vmatpush.msra.mxu0 %v191
    %1204 = vmatpush.msra.mxu0 %v190
    %1205 = vmatpush.msra.mxu0 %v189
    %1206 = vmatpush.msra.mxu0 %v188
    %1207 = vmatpush.msra.mxu0 %v187
    %1208 = vmatpush.msra.mxu0 %v186
    %1209 = vmatpush.msra.mxu0 %v185
    %1210 = vmatpush.msra.mxu0 %v184
    %1211 = vmatmul.f32.gmra.mxu0 %v1194
    %v1212 = vpop.f32.mrf.mxu0
    %v1213 = vadd.f32 %v203, %v1212
    %1214 = vdwg.mxu0
    %v1215 = vmax.f32 %v1213, 0.0
    %1216 = vst.msk [vmem:[#allocation2 + $0x98] sm:$0xff] %vm226, %v1215
    %s1217 = scalar_lea.vmem %s0, 312
    %v1218 = vld [vmem:[%s1217] sm:$0xff]
    %1219 = vmatpush.msra.mxu0 %v199
    %1220 = vmatpush.msra.mxu0 %v198
    %1221 = vmatpush.msra.mxu0 %v197
    %1222 = vmatpush.msra.mxu0 %v196
    %1223 = vmatpush.msra.mxu0 %v195
    %1224 = vmatpush.msra.mxu0 %v194
    %1225 = vmatpush.msra.mxu0 %v193
    %1226 = vmatpush.msra.mxu0 %v192
    %1227 = vmatpush.msra.mxu0 %v191
    %1228 = vmatpush.msra.mxu0 %v190
    %1229 = vmatpush.msra.mxu0 %v189
    %1230 = vmatpush.msra.mxu0 %v188
    %1231 = vmatpush.msra.mxu0 %v187
    %1232 = vmatpush.msra.mxu0 %v186
    %1233 = vmatpush.msra.mxu0 %v185
    %1234 = vmatpush.msra.mxu0 %v184
    %1235 = vmatmul.f32.gmra.mxu0 %v1218
    %v1236 = vpop.f32.mrf.mxu0
    %v1237 = vadd.f32 %v203, %v1236
    %1238 = vdwg.mxu0
    %v1239 = vmax.f32 %v1237, 0.0
    %1241 = vrot.lane.b32.xlu0 %v1239, 64
    %v1242 = vpop.permute.xlu0 %1241
    %1244 = vst.msk [vmem:[#allocation2 + $0x98] sm:$0xff] %vm255, %v1242
    %s1245 = scalar_lea.vmem %s0, 320
    %v1246 = vld [vmem:[%s1245] sm:$0xff]
    %1247 = vmatpush.msra.mxu0 %v199
    %1248 = vmatpush.msra.mxu0 %v198
    %1249 = vmatpush.msra.mxu0 %v197
    %1250 = vmatpush.msra.mxu0 %v196
    %1251 = vmatpush.msra.mxu0 %v195
    %1252 = vmatpush.msra.mxu0 %v194
    %1253 = vmatpush.msra.mxu0 %v193
    %1254 = vmatpush.msra.mxu0 %v192
    %1255 = vmatpush.msra.mxu0 %v191
    %1256 = vmatpush.msra.mxu0 %v190
    %1257 = vmatpush.msra.mxu0 %v189
    %1258 = vmatpush.msra.mxu0 %v188
    %1259 = vmatpush.msra.mxu0 %v187
    %1260 = vmatpush.msra.mxu0 %v186
    %1261 = vmatpush.msra.mxu0 %v185
    %1262 = vmatpush.msra.mxu0 %v184
    %1263 = vmatmul.f32.gmra.mxu0 %v1246
    %v1264 = vpop.f32.mrf.mxu0
    %v1265 = vadd.f32 %v203, %v1264
    %1266 = vdwg.mxu0
    %v1267 = vmax.f32 %v1265, 0.0
    %1268 = vst.msk [vmem:[#allocation2 + $0xa0] sm:$0xff] %vm226, %v1267
    %s1269 = scalar_lea.vmem %s0, 328
    %v1270 = vld [vmem:[%s1269] sm:$0xff]
    %1271 = vmatpush.msra.mxu0 %v199
    %1272 = vmatpush.msra.mxu0 %v198
    %1273 = vmatpush.msra.mxu0 %v197
    %1274 = vmatpush.msra.mxu0 %v196
    %1275 = vmatpush.msra.mxu0 %v195
    %1276 = vmatpush.msra.mxu0 %v194
    %1277 = vmatpush.msra.mxu0 %v193
    %1278 = vmatpush.msra.mxu0 %v192
    %1279 = vmatpush.msra.mxu0 %v191
    %1280 = vmatpush.msra.mxu0 %v190
    %1281 = vmatpush.msra.mxu0 %v189
    %1282 = vmatpush.msra.mxu0 %v188
    %1283 = vmatpush.msra.mxu0 %v187
    %1284 = vmatpush.msra.mxu0 %v186
    %1285 = vmatpush.msra.mxu0 %v185
    %1286 = vmatpush.msra.mxu0 %v184
    %1287 = vmatmul.f32.gmra.mxu0 %v1270
    %v1288 = vpop.f32.mrf.mxu0
    %v1289 = vadd.f32 %v203, %v1288
    %1290 = vdwg.mxu0
    %v1291 = vmax.f32 %v1289, 0.0
    %1293 = vrot.lane.b32.xlu0 %v1291, 64
    %v1294 = vpop.permute.xlu0 %1293
    %1296 = vst.msk [vmem:[#allocation2 + $0xa0] sm:$0xff] %vm255, %v1294
    %s1297 = scalar_lea.vmem %s0, 336
    %v1298 = vld [vmem:[%s1297] sm:$0xff]
    %1299 = vmatpush.msra.mxu0 %v199
    %1300 = vmatpush.msra.mxu0 %v198
    %1301 = vmatpush.msra.mxu0 %v197
    %1302 = vmatpush.msra.mxu0 %v196
    %1303 = vmatpush.msra.mxu0 %v195
    %1304 = vmatpush.msra.mxu0 %v194
    %1305 = vmatpush.msra.mxu0 %v193
    %1306 = vmatpush.msra.mxu0 %v192
    %1307 = vmatpush.msra.mxu0 %v191
    %1308 = vmatpush.msra.mxu0 %v190
    %1309 = vmatpush.msra.mxu0 %v189
    %1310 = vmatpush.msra.mxu0 %v188
    %1311 = vmatpush.msra.mxu0 %v187
    %1312 = vmatpush.msra.mxu0 %v186
    %1313 = vmatpush.msra.mxu0 %v185
    %1314 = vmatpush.msra.mxu0 %v184
    %1315 = vmatmul.f32.gmra.mxu0 %v1298
    %v1316 = vpop.f32.mrf.mxu0
    %v1317 = vadd.f32 %v203, %v1316
    %1318 = vdwg.mxu0
    %v1319 = vmax.f32 %v1317, 0.0
    %1320 = vst.msk [vmem:[#allocation2 + $0xa8] sm:$0xff] %vm226, %v1319
    %s1321 = scalar_lea.vmem %s0, 344
    %v1322 = vld [vmem:[%s1321] sm:$0xff]
    %1323 = vmatpush.msra.mxu0 %v199
    %1324 = vmatpush.msra.mxu0 %v198
    %1325 = vmatpush.msra.mxu0 %v197
    %1326 = vmatpush.msra.mxu0 %v196
    %1327 = vmatpush.msra.mxu0 %v195
    %1328 = vmatpush.msra.mxu0 %v194
    %1329 = vmatpush.msra.mxu0 %v193
    %1330 = vmatpush.msra.mxu0 %v192
    %1331 = vmatpush.msra.mxu0 %v191
    %1332 = vmatpush.msra.mxu0 %v190
    %1333 = vmatpush.msra.mxu0 %v189
    %1334 = vmatpush.msra.mxu0 %v188
    %1335 = vmatpush.msra.mxu0 %v187
    %1336 = vmatpush.msra.mxu0 %v186
    %1337 = vmatpush.msra.mxu0 %v185
    %1338 = vmatpush.msra.mxu0 %v184
    %1339 = vmatmul.f32.gmra.mxu0 %v1322
    %v1340 = vpop.f32.mrf.mxu0
    %v1341 = vadd.f32 %v203, %v1340
    %1342 = vdwg.mxu0
    %v1343 = vmax.f32 %v1341, 0.0
    %1345 = vrot.lane.b32.xlu0 %v1343, 64
    %v1346 = vpop.permute.xlu0 %1345
    %1348 = vst.msk [vmem:[#allocation2 + $0xa8] sm:$0xff] %vm255, %v1346
    %s1349 = scalar_lea.vmem %s0, 352
    %v1350 = vld [vmem:[%s1349] sm:$0xff]
    %1351 = vmatpush.msra.mxu0 %v199
    %1352 = vmatpush.msra.mxu0 %v198
    %1353 = vmatpush.msra.mxu0 %v197
    %1354 = vmatpush.msra.mxu0 %v196
    %1355 = vmatpush.msra.mxu0 %v195
    %1356 = vmatpush.msra.mxu0 %v194
    %1357 = vmatpush.msra.mxu0 %v193
    %1358 = vmatpush.msra.mxu0 %v192
    %1359 = vmatpush.msra.mxu0 %v191
    %1360 = vmatpush.msra.mxu0 %v190
    %1361 = vmatpush.msra.mxu0 %v189
    %1362 = vmatpush.msra.mxu0 %v188
    %1363 = vmatpush.msra.mxu0 %v187
    %1364 = vmatpush.msra.mxu0 %v186
    %1365 = vmatpush.msra.mxu0 %v185
    %1366 = vmatpush.msra.mxu0 %v184
    %1367 = vmatmul.f32.gmra.mxu0 %v1350
    %v1368 = vpop.f32.mrf.mxu0
    %v1369 = vadd.f32 %v203, %v1368
    %1370 = vdwg.mxu0
    %v1371 = vmax.f32 %v1369, 0.0
    %1372 = vst.msk [vmem:[#allocation2 + $0xb0] sm:$0xff] %vm226, %v1371
    %s1373 = scalar_lea.vmem %s0, 360
    %v1374 = vld [vmem:[%s1373] sm:$0xff]
    %1375 = vmatpush.msra.mxu0 %v199
    %1376 = vmatpush.msra.mxu0 %v198
    %1377 = vmatpush.msra.mxu0 %v197
    %1378 = vmatpush.msra.mxu0 %v196
    %1379 = vmatpush.msra.mxu0 %v195
    %1380 = vmatpush.msra.mxu0 %v194
    %1381 = vmatpush.msra.mxu0 %v193
    %1382 = vmatpush.msra.mxu0 %v192
    %1383 = vmatpush.msra.mxu0 %v191
    %1384 = vmatpush.msra.mxu0 %v190
    %1385 = vmatpush.msra.mxu0 %v189
    %1386 = vmatpush.msra.mxu0 %v188
    %1387 = vmatpush.msra.mxu0 %v187
    %1388 = vmatpush.msra.mxu0 %v186
    %1389 = vmatpush.msra.mxu0 %v185
    %1390 = vmatpush.msra.mxu0 %v184
    %1391 = vmatmul.f32.gmra.mxu0 %v1374
    %v1392 = vpop.f32.mrf.mxu0
    %v1393 = vadd.f32 %v203, %v1392
    %1394 = vdwg.mxu0
    %v1395 = vmax.f32 %v1393, 0.0
    %1397 = vrot.lane.b32.xlu0 %v1395, 64
    %v1398 = vpop.permute.xlu0 %1397
    %1400 = vst.msk [vmem:[#allocation2 + $0xb0] sm:$0xff] %vm255, %v1398
    %s1401 = scalar_lea.vmem %s0, 368
    %v1402 = vld [vmem:[%s1401] sm:$0xff]
    %1403 = vmatpush.msra.mxu0 %v199
    %1404 = vmatpush.msra.mxu0 %v198
    %1405 = vmatpush.msra.mxu0 %v197
    %1406 = vmatpush.msra.mxu0 %v196
    %1407 = vmatpush.msra.mxu0 %v195
    %1408 = vmatpush.msra.mxu0 %v194
    %1409 = vmatpush.msra.mxu0 %v193
    %1410 = vmatpush.msra.mxu0 %v192
    %1411 = vmatpush.msra.mxu0 %v191
    %1412 = vmatpush.msra.mxu0 %v190
    %1413 = vmatpush.msra.mxu0 %v189
    %1414 = vmatpush.msra.mxu0 %v188
    %1415 = vmatpush.msra.mxu0 %v187
    %1416 = vmatpush.msra.mxu0 %v186
    %1417 = vmatpush.msra.mxu0 %v185
    %1418 = vmatpush.msra.mxu0 %v184
    %1419 = vmatmul.f32.gmra.mxu0 %v1402
    %v1420 = vpop.f32.mrf.mxu0
    %v1421 = vadd.f32 %v203, %v1420
    %1422 = vdwg.mxu0
    %v1423 = vmax.f32 %v1421, 0.0
    %1424 = vst.msk [vmem:[#allocation2 + $0xb8] sm:$0xff] %vm226, %v1423
    %s1425 = scalar_lea.vmem %s0, 376
    %v1426 = vld [vmem:[%s1425] sm:$0xff]
    %1427 = vmatpush.msra.mxu0 %v199
    %1428 = vmatpush.msra.mxu0 %v198
    %1429 = vmatpush.msra.mxu0 %v197
    %1430 = vmatpush.msra.mxu0 %v196
    %1431 = vmatpush.msra.mxu0 %v195
    %1432 = vmatpush.msra.mxu0 %v194
    %1433 = vmatpush.msra.mxu0 %v193
    %1434 = vmatpush.msra.mxu0 %v192
    %1435 = vmatpush.msra.mxu0 %v191
    %1436 = vmatpush.msra.mxu0 %v190
    %1437 = vmatpush.msra.mxu0 %v189
    %1438 = vmatpush.msra.mxu0 %v188
    %1439 = vmatpush.msra.mxu0 %v187
    %1440 = vmatpush.msra.mxu0 %v186
    %1441 = vmatpush.msra.mxu0 %v185
    %1442 = vmatpush.msra.mxu0 %v184
    %1443 = vmatmul.f32.gmra.mxu0 %v1426
    %v1444 = vpop.f32.mrf.mxu0
    %v1445 = vadd.f32 %v203, %v1444
    %1446 = vdwg.mxu0
    %v1447 = vmax.f32 %v1445, 0.0
    %1449 = vrot.lane.b32.xlu0 %v1447, 64
    %v1450 = vpop.permute.xlu0 %1449
    %1452 = vst.msk [vmem:[#allocation2 + $0xb8] sm:$0xff] %vm255, %v1450
    %s1453 = scalar_lea.vmem %s0, 384
    %v1454 = vld [vmem:[%s1453] sm:$0xff]
    %1455 = vmatpush.msra.mxu0 %v199
    %1456 = vmatpush.msra.mxu0 %v198
    %1457 = vmatpush.msra.mxu0 %v197
    %1458 = vmatpush.msra.mxu0 %v196
    %1459 = vmatpush.msra.mxu0 %v195
    %1460 = vmatpush.msra.mxu0 %v194
    %1461 = vmatpush.msra.mxu0 %v193
    %1462 = vmatpush.msra.mxu0 %v192
    %1463 = vmatpush.msra.mxu0 %v191
    %1464 = vmatpush.msra.mxu0 %v190
    %1465 = vmatpush.msra.mxu0 %v189
    %1466 = vmatpush.msra.mxu0 %v188
    %1467 = vmatpush.msra.mxu0 %v187
    %1468 = vmatpush.msra.mxu0 %v186
    %1469 = vmatpush.msra.mxu0 %v185
    %1470 = vmatpush.msra.mxu0 %v184
    %1471 = vmatmul.f32.gmra.mxu0 %v1454
    %v1472 = vpop.f32.mrf.mxu0
    %v1473 = vadd.f32 %v203, %v1472
    %1474 = vdwg.mxu0
    %v1475 = vmax.f32 %v1473, 0.0
    %1476 = vst.msk [vmem:[#allocation2 + $0xc0] sm:$0xff] %vm226, %v1475
    %s1477 = scalar_lea.vmem %s0, 392
    %v1478 = vld [vmem:[%s1477] sm:$0xff]
    %1479 = vmatpush.msra.mxu0 %v199
    %1480 = vmatpush.msra.mxu0 %v198
    %1481 = vmatpush.msra.mxu0 %v197
    %1482 = vmatpush.msra.mxu0 %v196
    %1483 = vmatpush.msra.mxu0 %v195
    %1484 = vmatpush.msra.mxu0 %v194
    %1485 = vmatpush.msra.mxu0 %v193
    %1486 = vmatpush.msra.mxu0 %v192
    %1487 = vmatpush.msra.mxu0 %v191
    %1488 = vmatpush.msra.mxu0 %v190
    %1489 = vmatpush.msra.mxu0 %v189
    %1490 = vmatpush.msra.mxu0 %v188
    %1491 = vmatpush.msra.mxu0 %v187
    %1492 = vmatpush.msra.mxu0 %v186
    %1493 = vmatpush.msra.mxu0 %v185
    %1494 = vmatpush.msra.mxu0 %v184
    %1495 = vmatmul.f32.gmra.mxu0 %v1478
    %v1496 = vpop.f32.mrf.mxu0
    %v1497 = vadd.f32 %v203, %v1496
    %1498 = vdwg.mxu0
    %v1499 = vmax.f32 %v1497, 0.0
    %1501 = vrot.lane.b32.xlu0 %v1499, 64
    %v1502 = vpop.permute.xlu0 %1501
    %1504 = vst.msk [vmem:[#allocation2 + $0xc0] sm:$0xff] %vm255, %v1502
    %s1505 = scalar_lea.vmem %s0, 400
    %v1506 = vld [vmem:[%s1505] sm:$0xff]
    %1507 = vmatpush.msra.mxu0 %v199
    %1508 = vmatpush.msra.mxu0 %v198
    %1509 = vmatpush.msra.mxu0 %v197
    %1510 = vmatpush.msra.mxu0 %v196
    %1511 = vmatpush.msra.mxu0 %v195
    %1512 = vmatpush.msra.mxu0 %v194
    %1513 = vmatpush.msra.mxu0 %v193
    %1514 = vmatpush.msra.mxu0 %v192
    %1515 = vmatpush.msra.mxu0 %v191
    %1516 = vmatpush.msra.mxu0 %v190
    %1517 = vmatpush.msra.mxu0 %v189
    %1518 = vmatpush.msra.mxu0 %v188
    %1519 = vmatpush.msra.mxu0 %v187
    %1520 = vmatpush.msra.mxu0 %v186
    %1521 = vmatpush.msra.mxu0 %v185
    %1522 = vmatpush.msra.mxu0 %v184
    %1523 = vmatmul.f32.gmra.mxu0 %v1506
    %v1524 = vpop.f32.mrf.mxu0
    %v1525 = vadd.f32 %v203, %v1524
    %1526 = vdwg.mxu0
    %v1527 = vmax.f32 %v1525, 0.0
    %1528 = vst.msk [vmem:[#allocation2 + $0xc8] sm:$0xff] %vm226, %v1527
    %s1529 = scalar_lea.vmem %s0, 408
    %v1530 = vld [vmem:[%s1529] sm:$0xff]
    %1531 = vmatpush.msra.mxu0 %v199
    %1532 = vmatpush.msra.mxu0 %v198
    %1533 = vmatpush.msra.mxu0 %v197
    %1534 = vmatpush.msra.mxu0 %v196
    %1535 = vmatpush.msra.mxu0 %v195
    %1536 = vmatpush.msra.mxu0 %v194
    %1537 = vmatpush.msra.mxu0 %v193
    %1538 = vmatpush.msra.mxu0 %v192
    %1539 = vmatpush.msra.mxu0 %v191
    %1540 = vmatpush.msra.mxu0 %v190
    %1541 = vmatpush.msra.mxu0 %v189
    %1542 = vmatpush.msra.mxu0 %v188
    %1543 = vmatpush.msra.mxu0 %v187
    %1544 = vmatpush.msra.mxu0 %v186
    %1545 = vmatpush.msra.mxu0 %v185
    %1546 = vmatpush.msra.mxu0 %v184
    %1547 = vmatmul.f32.gmra.mxu0 %v1530
    %v1548 = vpop.f32.mrf.mxu0
    %v1549 = vadd.f32 %v203, %v1548
    %1550 = vdwg.mxu0
    %v1551 = vmax.f32 %v1549, 0.0
    %1553 = vrot.lane.b32.xlu0 %v1551, 64
    %v1554 = vpop.permute.xlu0 %1553
    %1556 = vst.msk [vmem:[#allocation2 + $0xc8] sm:$0xff] %vm255, %v1554
    %s1557 = scalar_lea.vmem %s0, 416
    %v1558 = vld [vmem:[%s1557] sm:$0xff]
    %1559 = vmatpush.msra.mxu0 %v199
    %1560 = vmatpush.msra.mxu0 %v198
    %1561 = vmatpush.msra.mxu0 %v197
    %1562 = vmatpush.msra.mxu0 %v196
    %1563 = vmatpush.msra.mxu0 %v195
    %1564 = vmatpush.msra.mxu0 %v194
    %1565 = vmatpush.msra.mxu0 %v193
    %1566 = vmatpush.msra.mxu0 %v192
    %1567 = vmatpush.msra.mxu0 %v191
    %1568 = vmatpush.msra.mxu0 %v190
    %1569 = vmatpush.msra.mxu0 %v189
    %1570 = vmatpush.msra.mxu0 %v188
    %1571 = vmatpush.msra.mxu0 %v187
    %1572 = vmatpush.msra.mxu0 %v186
    %1573 = vmatpush.msra.mxu0 %v185
    %1574 = vmatpush.msra.mxu0 %v184
    %1575 = vmatmul.f32.gmra.mxu0 %v1558
    %v1576 = vpop.f32.mrf.mxu0
    %v1577 = vadd.f32 %v203, %v1576
    %1578 = vdwg.mxu0
    %v1579 = vmax.f32 %v1577, 0.0
    %1580 = vst.msk [vmem:[#allocation2 + $0xd0] sm:$0xff] %vm226, %v1579
    %s1581 = scalar_lea.vmem %s0, 424
    %v1582 = vld [vmem:[%s1581] sm:$0xff]
    %1583 = vmatpush.msra.mxu0 %v199
    %1584 = vmatpush.msra.mxu0 %v198
    %1585 = vmatpush.msra.mxu0 %v197
    %1586 = vmatpush.msra.mxu0 %v196
    %1587 = vmatpush.msra.mxu0 %v195
    %1588 = vmatpush.msra.mxu0 %v194
    %1589 = vmatpush.msra.mxu0 %v193
    %1590 = vmatpush.msra.mxu0 %v192
    %1591 = vmatpush.msra.mxu0 %v191
    %1592 = vmatpush.msra.mxu0 %v190
    %1593 = vmatpush.msra.mxu0 %v189
    %1594 = vmatpush.msra.mxu0 %v188
    %1595 = vmatpush.msra.mxu0 %v187
    %1596 = vmatpush.msra.mxu0 %v186
    %1597 = vmatpush.msra.mxu0 %v185
    %1598 = vmatpush.msra.mxu0 %v184
    %1599 = vmatmul.f32.gmra.mxu0 %v1582
    %v1600 = vpop.f32.mrf.mxu0
    %v1601 = vadd.f32 %v203, %v1600
    %1602 = vdwg.mxu0
    %v1603 = vmax.f32 %v1601, 0.0
    %1605 = vrot.lane.b32.xlu0 %v1603, 64
    %v1606 = vpop.permute.xlu0 %1605
    %1608 = vst.msk [vmem:[#allocation2 + $0xd0] sm:$0xff] %vm255, %v1606
    %s1609 = scalar_lea.vmem %s0, 432
    %v1610 = vld [vmem:[%s1609] sm:$0xff]
    %1611 = vmatpush.msra.mxu0 %v199
    %1612 = vmatpush.msra.mxu0 %v198
    %1613 = vmatpush.msra.mxu0 %v197
    %1614 = vmatpush.msra.mxu0 %v196
    %1615 = vmatpush.msra.mxu0 %v195
    %1616 = vmatpush.msra.mxu0 %v194
    %1617 = vmatpush.msra.mxu0 %v193
    %1618 = vmatpush.msra.mxu0 %v192
    %1619 = vmatpush.msra.mxu0 %v191
    %1620 = vmatpush.msra.mxu0 %v190
    %1621 = vmatpush.msra.mxu0 %v189
    %1622 = vmatpush.msra.mxu0 %v188
    %1623 = vmatpush.msra.mxu0 %v187
    %1624 = vmatpush.msra.mxu0 %v186
    %1625 = vmatpush.msra.mxu0 %v185
    %1626 = vmatpush.msra.mxu0 %v184
    %1627 = vmatmul.f32.gmra.mxu0 %v1610
    %v1628 = vpop.f32.mrf.mxu0
    %v1629 = vadd.f32 %v203, %v1628
    %1630 = vdwg.mxu0
    %v1631 = vmax.f32 %v1629, 0.0
    %1632 = vst.msk [vmem:[#allocation2 + $0xd8] sm:$0xff] %vm226, %v1631
    %s1633 = scalar_lea.vmem %s0, 440
    %v1634 = vld [vmem:[%s1633] sm:$0xff]
    %1635 = vmatpush.msra.mxu0 %v199
    %1636 = vmatpush.msra.mxu0 %v198
    %1637 = vmatpush.msra.mxu0 %v197
    %1638 = vmatpush.msra.mxu0 %v196
    %1639 = vmatpush.msra.mxu0 %v195
    %1640 = vmatpush.msra.mxu0 %v194
    %1641 = vmatpush.msra.mxu0 %v193
    %1642 = vmatpush.msra.mxu0 %v192
    %1643 = vmatpush.msra.mxu0 %v191
    %1644 = vmatpush.msra.mxu0 %v190
    %1645 = vmatpush.msra.mxu0 %v189
    %1646 = vmatpush.msra.mxu0 %v188
    %1647 = vmatpush.msra.mxu0 %v187
    %1648 = vmatpush.msra.mxu0 %v186
    %1649 = vmatpush.msra.mxu0 %v185
    %1650 = vmatpush.msra.mxu0 %v184
    %1651 = vmatmul.f32.gmra.mxu0 %v1634
    %v1652 = vpop.f32.mrf.mxu0
    %v1653 = vadd.f32 %v203, %v1652
    %1654 = vdwg.mxu0
    %v1655 = vmax.f32 %v1653, 0.0
    %1657 = vrot.lane.b32.xlu0 %v1655, 64
    %v1658 = vpop.permute.xlu0 %1657
    %1660 = vst.msk [vmem:[#allocation2 + $0xd8] sm:$0xff] %vm255, %v1658
    %s1661 = scalar_lea.vmem %s0, 448
    %v1662 = vld [vmem:[%s1661] sm:$0xff]
    %1663 = vmatpush.msra.mxu0 %v199
    %1664 = vmatpush.msra.mxu0 %v198
    %1665 = vmatpush.msra.mxu0 %v197
    %1666 = vmatpush.msra.mxu0 %v196
    %1667 = vmatpush.msra.mxu0 %v195
    %1668 = vmatpush.msra.mxu0 %v194
    %1669 = vmatpush.msra.mxu0 %v193
    %1670 = vmatpush.msra.mxu0 %v192
    %1671 = vmatpush.msra.mxu0 %v191
    %1672 = vmatpush.msra.mxu0 %v190
    %1673 = vmatpush.msra.mxu0 %v189
    %1674 = vmatpush.msra.mxu0 %v188
    %1675 = vmatpush.msra.mxu0 %v187
    %1676 = vmatpush.msra.mxu0 %v186
    %1677 = vmatpush.msra.mxu0 %v185
    %1678 = vmatpush.msra.mxu0 %v184
    %1679 = vmatmul.f32.gmra.mxu0 %v1662
    %v1680 = vpop.f32.mrf.mxu0
    %v1681 = vadd.f32 %v203, %v1680
    %1682 = vdwg.mxu0
    %v1683 = vmax.f32 %v1681, 0.0
    %1684 = vst.msk [vmem:[#allocation2 + $0xe0] sm:$0xff] %vm226, %v1683
    %s1685 = scalar_lea.vmem %s0, 456
    %v1686 = vld [vmem:[%s1685] sm:$0xff]
    %1687 = vmatpush.msra.mxu0 %v199
    %1688 = vmatpush.msra.mxu0 %v198
    %1689 = vmatpush.msra.mxu0 %v197
    %1690 = vmatpush.msra.mxu0 %v196
    %1691 = vmatpush.msra.mxu0 %v195
    %1692 = vmatpush.msra.mxu0 %v194
    %1693 = vmatpush.msra.mxu0 %v193
    %1694 = vmatpush.msra.mxu0 %v192
    %1695 = vmatpush.msra.mxu0 %v191
    %1696 = vmatpush.msra.mxu0 %v190
    %1697 = vmatpush.msra.mxu0 %v189
    %1698 = vmatpush.msra.mxu0 %v188
    %1699 = vmatpush.msra.mxu0 %v187
    %1700 = vmatpush.msra.mxu0 %v186
    %1701 = vmatpush.msra.mxu0 %v185
    %1702 = vmatpush.msra.mxu0 %v184
    %1703 = vmatmul.f32.gmra.mxu0 %v1686
    %v1704 = vpop.f32.mrf.mxu0
    %v1705 = vadd.f32 %v203, %v1704
    %1706 = vdwg.mxu0
    %v1707 = vmax.f32 %v1705, 0.0
    %1709 = vrot.lane.b32.xlu0 %v1707, 64
    %v1710 = vpop.permute.xlu0 %1709
    %1712 = vst.msk [vmem:[#allocation2 + $0xe0] sm:$0xff] %vm255, %v1710
    %s1713 = scalar_lea.vmem %s0, 464
    %v1714 = vld [vmem:[%s1713] sm:$0xff]
    %1715 = vmatpush.msra.mxu0 %v199
    %1716 = vmatpush.msra.mxu0 %v198
    %1717 = vmatpush.msra.mxu0 %v197
    %1718 = vmatpush.msra.mxu0 %v196
    %1719 = vmatpush.msra.mxu0 %v195
    %1720 = vmatpush.msra.mxu0 %v194
    %1721 = vmatpush.msra.mxu0 %v193
    %1722 = vmatpush.msra.mxu0 %v192
    %1723 = vmatpush.msra.mxu0 %v191
    %1724 = vmatpush.msra.mxu0 %v190
    %1725 = vmatpush.msra.mxu0 %v189
    %1726 = vmatpush.msra.mxu0 %v188
    %1727 = vmatpush.msra.mxu0 %v187
    %1728 = vmatpush.msra.mxu0 %v186
    %1729 = vmatpush.msra.mxu0 %v185
    %1730 = vmatpush.msra.mxu0 %v184
    %1731 = vmatmul.f32.gmra.mxu0 %v1714
    %v1732 = vpop.f32.mrf.mxu0
    %v1733 = vadd.f32 %v203, %v1732
    %1734 = vdwg.mxu0
    %v1735 = vmax.f32 %v1733, 0.0
    %1736 = vst.msk [vmem:[#allocation2 + $0xe8] sm:$0xff] %vm226, %v1735
    %s1737 = scalar_lea.vmem %s0, 472
    %v1738 = vld [vmem:[%s1737] sm:$0xff]
    %1739 = vmatpush.msra.mxu0 %v199
    %1740 = vmatpush.msra.mxu0 %v198
    %1741 = vmatpush.msra.mxu0 %v197
    %1742 = vmatpush.msra.mxu0 %v196
    %1743 = vmatpush.msra.mxu0 %v195
    %1744 = vmatpush.msra.mxu0 %v194
    %1745 = vmatpush.msra.mxu0 %v193
    %1746 = vmatpush.msra.mxu0 %v192
    %1747 = vmatpush.msra.mxu0 %v191
    %1748 = vmatpush.msra.mxu0 %v190
    %1749 = vmatpush.msra.mxu0 %v189
    %1750 = vmatpush.msra.mxu0 %v188
    %1751 = vmatpush.msra.mxu0 %v187
    %1752 = vmatpush.msra.mxu0 %v186
    %1753 = vmatpush.msra.mxu0 %v185
    %1754 = vmatpush.msra.mxu0 %v184
    %1755 = vmatmul.f32.gmra.mxu0 %v1738
    %v1756 = vpop.f32.mrf.mxu0
    %v1757 = vadd.f32 %v203, %v1756
    %1758 = vdwg.mxu0
    %v1759 = vmax.f32 %v1757, 0.0
    %1761 = vrot.lane.b32.xlu0 %v1759, 64
    %v1762 = vpop.permute.xlu0 %1761
    %1764 = vst.msk [vmem:[#allocation2 + $0xe8] sm:$0xff] %vm255, %v1762
    %s1765 = scalar_lea.vmem %s0, 480
    %v1766 = vld [vmem:[%s1765] sm:$0xff]
    %1767 = vmatpush.msra.mxu0 %v199
    %1768 = vmatpush.msra.mxu0 %v198
    %1769 = vmatpush.msra.mxu0 %v197
    %1770 = vmatpush.msra.mxu0 %v196
    %1771 = vmatpush.msra.mxu0 %v195
    %1772 = vmatpush.msra.mxu0 %v194
    %1773 = vmatpush.msra.mxu0 %v193
    %1774 = vmatpush.msra.mxu0 %v192
    %1775 = vmatpush.msra.mxu0 %v191
    %1776 = vmatpush.msra.mxu0 %v190
    %1777 = vmatpush.msra.mxu0 %v189
    %1778 = vmatpush.msra.mxu0 %v188
    %1779 = vmatpush.msra.mxu0 %v187
    %1780 = vmatpush.msra.mxu0 %v186
    %1781 = vmatpush.msra.mxu0 %v185
    %1782 = vmatpush.msra.mxu0 %v184
    %1783 = vmatmul.f32.gmra.mxu0 %v1766
    %v1784 = vpop.f32.mrf.mxu0
    %v1785 = vadd.f32 %v203, %v1784
    %1786 = vdwg.mxu0
    %v1787 = vmax.f32 %v1785, 0.0
    %1788 = vst.msk [vmem:[#allocation2 + $0xf0] sm:$0xff] %vm226, %v1787
    %s1789 = scalar_lea.vmem %s0, 488
    %v1790 = vld [vmem:[%s1789] sm:$0xff]
    %1791 = vmatpush.msra.mxu0 %v199
    %1792 = vmatpush.msra.mxu0 %v198
    %1793 = vmatpush.msra.mxu0 %v197
    %1794 = vmatpush.msra.mxu0 %v196
    %1795 = vmatpush.msra.mxu0 %v195
    %1796 = vmatpush.msra.mxu0 %v194
    %1797 = vmatpush.msra.mxu0 %v193
    %1798 = vmatpush.msra.mxu0 %v192
    %1799 = vmatpush.msra.mxu0 %v191
    %1800 = vmatpush.msra.mxu0 %v190
    %1801 = vmatpush.msra.mxu0 %v189
    %1802 = vmatpush.msra.mxu0 %v188
    %1803 = vmatpush.msra.mxu0 %v187
    %1804 = vmatpush.msra.mxu0 %v186
    %1805 = vmatpush.msra.mxu0 %v185
    %1806 = vmatpush.msra.mxu0 %v184
    %1807 = vmatmul.f32.gmra.mxu0 %v1790
    %v1808 = vpop.f32.mrf.mxu0
    %v1809 = vadd.f32 %v203, %v1808
    %1810 = vdwg.mxu0
    %v1811 = vmax.f32 %v1809, 0.0
    %1813 = vrot.lane.b32.xlu0 %v1811, 64
    %v1814 = vpop.permute.xlu0 %1813
    %1816 = vst.msk [vmem:[#allocation2 + $0xf0] sm:$0xff] %vm255, %v1814
    %s1817 = scalar_lea.vmem %s0, 496
    %v1818 = vld [vmem:[%s1817] sm:$0xff]
    %1819 = vmatpush.msra.mxu0 %v199
    %1820 = vmatpush.msra.mxu0 %v198
    %1821 = vmatpush.msra.mxu0 %v197
    %1822 = vmatpush.msra.mxu0 %v196
    %1823 = vmatpush.msra.mxu0 %v195
    %1824 = vmatpush.msra.mxu0 %v194
    %1825 = vmatpush.msra.mxu0 %v193
    %1826 = vmatpush.msra.mxu0 %v192
    %1827 = vmatpush.msra.mxu0 %v191
    %1828 = vmatpush.msra.mxu0 %v190
    %1829 = vmatpush.msra.mxu0 %v189
    %1830 = vmatpush.msra.mxu0 %v188
    %1831 = vmatpush.msra.mxu0 %v187
    %1832 = vmatpush.msra.mxu0 %v186
    %1833 = vmatpush.msra.mxu0 %v185
    %1834 = vmatpush.msra.mxu0 %v184
    %1835 = vmatmul.f32.gmra.mxu0 %v1818
    %v1836 = vpop.f32.mrf.mxu0
    %v1837 = vadd.f32 %v203, %v1836
    %1838 = vdwg.mxu0
    %v1839 = vmax.f32 %v1837, 0.0
    %1840 = vst.msk [vmem:[#allocation2 + $0xf8] sm:$0xff] %vm226, %v1839
    %s1841 = scalar_lea.vmem %s0, 504
    %v1842 = vld [vmem:[%s1841] sm:$0xff]
    %1843 = vmatpush.msra.mxu0 %v199
    %1844 = vmatpush.msra.mxu0 %v198
    %1845 = vmatpush.msra.mxu0 %v197
    %1846 = vmatpush.msra.mxu0 %v196
    %1847 = vmatpush.msra.mxu0 %v195
    %1848 = vmatpush.msra.mxu0 %v194
    %1849 = vmatpush.msra.mxu0 %v193
    %1850 = vmatpush.msra.mxu0 %v192
    %1851 = vmatpush.msra.mxu0 %v191
    %1852 = vmatpush.msra.mxu0 %v190
    %1853 = vmatpush.msra.mxu0 %v189
    %1854 = vmatpush.msra.mxu0 %v188
    %1855 = vmatpush.msra.mxu0 %v187
    %1856 = vmatpush.msra.mxu0 %v186
    %1857 = vmatpush.msra.mxu0 %v185
    %1858 = vmatpush.msra.mxu0 %v184
    %1859 = vmatmul.f32.gmra.mxu0 %v1842
    %v1860 = vpop.f32.mrf.mxu0
    %v1861 = vadd.f32 %v203, %v1860
    %1862 = vdwg.mxu0
    %v1863 = vmax.f32 %v1861, 0.0
    %1865 = vrot.lane.b32.xlu0 %v1863, 64
    %v1866 = vpop.permute.xlu0 %1865
    %1868 = vst.msk [vmem:[#allocation2 + $0xf8] sm:$0xff] %vm255, %v1866
    %v1869 = vld [vmem:[#allocation2] sm:$0xff]
    %v1870 = vld [vmem:[#allocation2 + $0x8] sm:$0xff]
    %v1871 = vld [vmem:[#allocation2 + $0x10] sm:$0xff]
    %v1872 = vld [vmem:[#allocation2 + $0x18] sm:$0xff]
    %v1873 = vld [vmem:[#allocation2 + $0x20] sm:$0xff]
    %v1874 = vld [vmem:[#allocation2 + $0x28] sm:$0xff]
    %v1875 = vld [vmem:[#allocation2 + $0x30] sm:$0xff]
    %v1876 = vld [vmem:[#allocation2 + $0x38] sm:$0xff]
    %v1877 = vld [vmem:[#allocation2 + $0x40] sm:$0xff]
    %v1878 = vld [vmem:[#allocation2 + $0x48] sm:$0xff]
    %v1879 = vld [vmem:[#allocation2 + $0x50] sm:$0xff]
    %v1880 = vld [vmem:[#allocation2 + $0x58] sm:$0xff]
    %v1881 = vld [vmem:[#allocation2 + $0x60] sm:$0xff]
    %v1882 = vld [vmem:[#allocation2 + $0x68] sm:$0xff]
    %v1883 = vld [vmem:[#allocation2 + $0x70] sm:$0xff]
    %v1884 = vld [vmem:[#allocation2 + $0x78] sm:$0xff]
    %v1885 = vld [vmem:[#allocation2 + $0x80] sm:$0xff]
    %v1886 = vld [vmem:[#allocation2 + $0x88] sm:$0xff]
    %v1887 = vld [vmem:[#allocation2 + $0x90] sm:$0xff]
    %v1888 = vld [vmem:[#allocation2 + $0x98] sm:$0xff]
    %v1889 = vld [vmem:[#allocation2 + $0xa0] sm:$0xff]
    %v1890 = vld [vmem:[#allocation2 + $0xa8] sm:$0xff]
    %v1891 = vld [vmem:[#allocation2 + $0xb0] sm:$0xff]
    %v1892 = vld [vmem:[#allocation2 + $0xb8] sm:$0xff]
    %v1893 = vld [vmem:[#allocation2 + $0xc0] sm:$0xff]
    %v1894 = vld [vmem:[#allocation2 + $0xc8] sm:$0xff]
    %v1895 = vld [vmem:[#allocation2 + $0xd0] sm:$0xff]
    %v1896 = vld [vmem:[#allocation2 + $0xd8] sm:$0xff]
    %v1897 = vld [vmem:[#allocation2 + $0xe0] sm:$0xff]
    %v1898 = vld [vmem:[#allocation2 + $0xe8] sm:$0xff]
    %v1899 = vld [vmem:[#allocation2 + $0xf0] sm:$0xff]
    %v1900 = vld [vmem:[#allocation2 + $0xf8] sm:$0xff]
    %v1901 = vld [vmem:[#allocation6] sm:$0xff]
    %v1902 = vld [vmem:[#allocation6 + $0x8] sm:$0xff]
    %v1903 = vld [vmem:[#allocation6 + $0x10] sm:$0xff]
    %v1904 = vld [vmem:[#allocation6 + $0x18] sm:$0xff]
    %v1905 = vld [vmem:[#allocation6 + $0x20] sm:$0xff]
    %v1906 = vld [vmem:[#allocation6 + $0x28] sm:$0xff]
    %v1907 = vld [vmem:[#allocation6 + $0x30] sm:$0xff]
    %v1908 = vld [vmem:[#allocation6 + $0x38] sm:$0xff]
    %v1909 = vld [vmem:[#allocation6 + $0x40] sm:$0xff]
    %v1910 = vld [vmem:[#allocation6 + $0x48] sm:$0xff]
    %v1911 = vld [vmem:[#allocation6 + $0x50] sm:$0xff]
    %v1912 = vld [vmem:[#allocation6 + $0x58] sm:$0xff]
    %v1913 = vld [vmem:[#allocation6 + $0x60] sm:$0xff]
    %v1914 = vld [vmem:[#allocation6 + $0x68] sm:$0xff]
    %v1915 = vld [vmem:[#allocation6 + $0x70] sm:$0xff]
    %v1916 = vld [vmem:[#allocation6 + $0x78] sm:$0xff]
    %v1917 = vld [vmem:[#allocation6 + $0x80] sm:$0xff]
    %v1918 = vld [vmem:[#allocation6 + $0x88] sm:$0xff]
    %v1919 = vld [vmem:[#allocation6 + $0x90] sm:$0xff]
    %v1920 = vld [vmem:[#allocation6 + $0x98] sm:$0xff]
    %v1921 = vld [vmem:[#allocation6 + $0xa0] sm:$0xff]
    %v1922 = vld [vmem:[#allocation6 + $0xa8] sm:$0xff]
    %v1923 = vld [vmem:[#allocation6 + $0xb0] sm:$0xff]
    %v1924 = vld [vmem:[#allocation6 + $0xb8] sm:$0xff]
    %v1925 = vld [vmem:[#allocation6 + $0xc0] sm:$0xff]
    %v1926 = vld [vmem:[#allocation6 + $0xc8] sm:$0xff]
    %v1927 = vld [vmem:[#allocation6 + $0xd0] sm:$0xff]
    %v1928 = vld [vmem:[#allocation6 + $0xd8] sm:$0xff]
    %v1929 = vld [vmem:[#allocation6 + $0xe0] sm:$0xff]
    %v1930 = vld [vmem:[#allocation6 + $0xe8] sm:$0xff]
    %v1931 = vld [vmem:[#allocation6 + $0xf0] sm:$0xff]
    %v1932 = vld [vmem:[#allocation6 + $0xf8] sm:$0xff]
    %v1933 = vld [vmem:[#allocation6 + $0x100] sm:$0xff]
    %v1934 = vld [vmem:[#allocation6 + $0x108] sm:$0xff]
    %v1935 = vld [vmem:[#allocation6 + $0x110] sm:$0xff]
    %v1936 = vld [vmem:[#allocation6 + $0x118] sm:$0xff]
    %v1937 = vld [vmem:[#allocation6 + $0x120] sm:$0xff]
    %v1938 = vld [vmem:[#allocation6 + $0x128] sm:$0xff]
    %v1939 = vld [vmem:[#allocation6 + $0x130] sm:$0xff]
    %v1940 = vld [vmem:[#allocation6 + $0x138] sm:$0xff]
    %v1941 = vld [vmem:[#allocation6 + $0x140] sm:$0xff]
    %v1942 = vld [vmem:[#allocation6 + $0x148] sm:$0xff]
    %v1943 = vld [vmem:[#allocation6 + $0x150] sm:$0xff]
    %v1944 = vld [vmem:[#allocation6 + $0x158] sm:$0xff]
    %v1945 = vld [vmem:[#allocation6 + $0x160] sm:$0xff]
    %v1946 = vld [vmem:[#allocation6 + $0x168] sm:$0xff]
    %v1947 = vld [vmem:[#allocation6 + $0x170] sm:$0xff]
    %v1948 = vld [vmem:[#allocation6 + $0x178] sm:$0xff]
    %v1949 = vld [vmem:[#allocation6 + $0x180] sm:$0xff]
    %v1950 = vld [vmem:[#allocation6 + $0x188] sm:$0xff]
    %v1951 = vld [vmem:[#allocation6 + $0x190] sm:$0xff]
    %v1952 = vld [vmem:[#allocation6 + $0x198] sm:$0xff]
    %v1953 = vld [vmem:[#allocation6 + $0x1a0] sm:$0xff]
    %v1954 = vld [vmem:[#allocation6 + $0x1a8] sm:$0xff]
    %v1955 = vld [vmem:[#allocation6 + $0x1b0] sm:$0xff]
    %v1956 = vld [vmem:[#allocation6 + $0x1b8] sm:$0xff]
    %v1957 = vld [vmem:[#allocation6 + $0x1c0] sm:$0xff]
    %v1958 = vld [vmem:[#allocation6 + $0x1c8] sm:$0xff]
    %v1959 = vld [vmem:[#allocation6 + $0x1d0] sm:$0xff]
    %v1960 = vld [vmem:[#allocation6 + $0x1d8] sm:$0xff]
    %v1961 = vld [vmem:[#allocation6 + $0x1e0] sm:$0xff]
    %v1962 = vld [vmem:[#allocation6 + $0x1e8] sm:$0xff]
    %v1963 = vld [vmem:[#allocation6 + $0x1f0] sm:$0xff]
    %v1964 = vld [vmem:[#allocation6 + $0x1f8] sm:$0xff]
    %v1965 = vld [vmem:[#allocation6 + $0x200] sm:$0xff]
    %v1966 = vld [vmem:[#allocation6 + $0x208] sm:$0xff]
    %v1967 = vld [vmem:[#allocation6 + $0x210] sm:$0xff]
    %v1968 = vld [vmem:[#allocation6 + $0x218] sm:$0xff]
    %v1969 = vld [vmem:[#allocation6 + $0x220] sm:$0xff]
    %v1970 = vld [vmem:[#allocation6 + $0x228] sm:$0xff]
    %v1971 = vld [vmem:[#allocation6 + $0x230] sm:$0xff]
    %v1972 = vld [vmem:[#allocation6 + $0x238] sm:$0xff]
    %v1973 = vld [vmem:[#allocation6 + $0x240] sm:$0xff]
    %v1974 = vld [vmem:[#allocation6 + $0x248] sm:$0xff]
    %v1975 = vld [vmem:[#allocation6 + $0x250] sm:$0xff]
    %v1976 = vld [vmem:[#allocation6 + $0x258] sm:$0xff]
    %v1977 = vld [vmem:[#allocation6 + $0x260] sm:$0xff]
    %v1978 = vld [vmem:[#allocation6 + $0x268] sm:$0xff]
    %v1979 = vld [vmem:[#allocation6 + $0x270] sm:$0xff]
    %v1980 = vld [vmem:[#allocation6 + $0x278] sm:$0xff]
    %v1981 = vld [vmem:[#allocation6 + $0x280] sm:$0xff]
    %v1982 = vld [vmem:[#allocation6 + $0x288] sm:$0xff]
    %v1983 = vld [vmem:[#allocation6 + $0x290] sm:$0xff]
    %v1984 = vld [vmem:[#allocation6 + $0x298] sm:$0xff]
    %v1985 = vld [vmem:[#allocation6 + $0x2a0] sm:$0xff]
    %v1986 = vld [vmem:[#allocation6 + $0x2a8] sm:$0xff]
    %v1987 = vld [vmem:[#allocation6 + $0x2b0] sm:$0xff]
    %v1988 = vld [vmem:[#allocation6 + $0x2b8] sm:$0xff]
    %v1989 = vld [vmem:[#allocation6 + $0x2c0] sm:$0xff]
    %v1990 = vld [vmem:[#allocation6 + $0x2c8] sm:$0xff]
    %v1991 = vld [vmem:[#allocation6 + $0x2d0] sm:$0xff]
    %v1992 = vld [vmem:[#allocation6 + $0x2d8] sm:$0xff]
    %v1993 = vld [vmem:[#allocation6 + $0x2e0] sm:$0xff]
    %v1994 = vld [vmem:[#allocation6 + $0x2e8] sm:$0xff]
    %v1995 = vld [vmem:[#allocation6 + $0x2f0] sm:$0xff]
    %v1996 = vld [vmem:[#allocation6 + $0x2f8] sm:$0xff]
    %v1997 = vld [vmem:[#allocation6 + $0x300] sm:$0xff]
    %v1998 = vld [vmem:[#allocation6 + $0x308] sm:$0xff]
    %v1999 = vld [vmem:[#allocation6 + $0x310] sm:$0xff]
    %v2000 = vld [vmem:[#allocation6 + $0x318] sm:$0xff]
    %v2001 = vld [vmem:[#allocation6 + $0x320] sm:$0xff]
    %v2002 = vld [vmem:[#allocation6 + $0x328] sm:$0xff]
    %v2003 = vld [vmem:[#allocation6 + $0x330] sm:$0xff]
    %v2004 = vld [vmem:[#allocation6 + $0x338] sm:$0xff]
    %v2005 = vld [vmem:[#allocation6 + $0x340] sm:$0xff]
    %v2006 = vld [vmem:[#allocation6 + $0x348] sm:$0xff]
    %v2007 = vld [vmem:[#allocation6 + $0x350] sm:$0xff]
    %v2008 = vld [vmem:[#allocation6 + $0x358] sm:$0xff]
    %v2009 = vld [vmem:[#allocation6 + $0x360] sm:$0xff]
    %v2010 = vld [vmem:[#allocation6 + $0x368] sm:$0xff]
    %v2011 = vld [vmem:[#allocation6 + $0x370] sm:$0xff]
    %v2012 = vld [vmem:[#allocation6 + $0x378] sm:$0xff]
    %v2013 = vld [vmem:[#allocation6 + $0x380] sm:$0xff]
    %v2014 = vld [vmem:[#allocation6 + $0x388] sm:$0xff]
    %v2015 = vld [vmem:[#allocation6 + $0x390] sm:$0xff]
    %v2016 = vld [vmem:[#allocation6 + $0x398] sm:$0xff]
    %v2017 = vld [vmem:[#allocation6 + $0x3a0] sm:$0xff]
    %v2018 = vld [vmem:[#allocation6 + $0x3a8] sm:$0xff]
    %v2019 = vld [vmem:[#allocation6 + $0x3b0] sm:$0xff]
    %v2020 = vld [vmem:[#allocation6 + $0x3b8] sm:$0xff]
    %v2021 = vld [vmem:[#allocation6 + $0x3c0] sm:$0xff]
    %v2022 = vld [vmem:[#allocation6 + $0x3c8] sm:$0xff]
    %v2023 = vld [vmem:[#allocation6 + $0x3d0] sm:$0xff]
    %v2024 = vld [vmem:[#allocation6 + $0x3d8] sm:$0xff]
    %v2025 = vld [vmem:[#allocation6 + $0x3e0] sm:$0xff]
    %v2026 = vld [vmem:[#allocation6 + $0x3e8] sm:$0xff]
    %v2027 = vld [vmem:[#allocation6 + $0x3f0] sm:$0xff]
    %v2028 = vld [vmem:[#allocation6 + $0x3f8] sm:$0xff]
    %v2029 = vld [vmem:[#allocation6 + $0x400] sm:$0xff]
    %v2030 = vld [vmem:[#allocation6 + $0x408] sm:$0xff]
    %v2031 = vld [vmem:[#allocation6 + $0x410] sm:$0xff]
    %v2032 = vld [vmem:[#allocation6 + $0x418] sm:$0xff]
    %v2033 = vld [vmem:[#allocation6 + $0x420] sm:$0xff]
    %v2034 = vld [vmem:[#allocation6 + $0x428] sm:$0xff]
    %v2035 = vld [vmem:[#allocation6 + $0x430] sm:$0xff]
    %v2036 = vld [vmem:[#allocation6 + $0x438] sm:$0xff]
    %v2037 = vld [vmem:[#allocation6 + $0x440] sm:$0xff]
    %v2038 = vld [vmem:[#allocation6 + $0x448] sm:$0xff]
    %v2039 = vld [vmem:[#allocation6 + $0x450] sm:$0xff]
    %v2040 = vld [vmem:[#allocation6 + $0x458] sm:$0xff]
    %v2041 = vld [vmem:[#allocation6 + $0x460] sm:$0xff]
    %v2042 = vld [vmem:[#allocation6 + $0x468] sm:$0xff]
    %v2043 = vld [vmem:[#allocation6 + $0x470] sm:$0xff]
    %v2044 = vld [vmem:[#allocation6 + $0x478] sm:$0xff]
    %v2045 = vld [vmem:[#allocation6 + $0x480] sm:$0xff]
    %v2046 = vld [vmem:[#allocation6 + $0x488] sm:$0xff]
    %v2047 = vld [vmem:[#allocation6 + $0x490] sm:$0xff]
    %v2048 = vld [vmem:[#allocation6 + $0x498] sm:$0xff]
    %v2049 = vld [vmem:[#allocation6 + $0x4a0] sm:$0xff]
    %v2050 = vld [vmem:[#allocation6 + $0x4a8] sm:$0xff]
    %v2051 = vld [vmem:[#allocation6 + $0x4b0] sm:$0xff]
    %v2052 = vld [vmem:[#allocation6 + $0x4b8] sm:$0xff]
    %v2053 = vld [vmem:[#allocation6 + $0x4c0] sm:$0xff]
    %v2054 = vld [vmem:[#allocation6 + $0x4c8] sm:$0xff]
    %v2055 = vld [vmem:[#allocation6 + $0x4d0] sm:$0xff]
    %v2056 = vld [vmem:[#allocation6 + $0x4d8] sm:$0xff]
    %v2057 = vld [vmem:[#allocation6 + $0x4e0] sm:$0xff]
    %v2058 = vld [vmem:[#allocation6 + $0x4e8] sm:$0xff]
    %v2059 = vld [vmem:[#allocation6 + $0x4f0] sm:$0xff]
    %v2060 = vld [vmem:[#allocation6 + $0x4f8] sm:$0xff]
    %v2061 = vld [vmem:[#allocation6 + $0x500] sm:$0xff]
    %v2062 = vld [vmem:[#allocation6 + $0x508] sm:$0xff]
    %v2063 = vld [vmem:[#allocation6 + $0x510] sm:$0xff]
    %v2064 = vld [vmem:[#allocation6 + $0x518] sm:$0xff]
    %v2065 = vld [vmem:[#allocation6 + $0x520] sm:$0xff]
    %v2066 = vld [vmem:[#allocation6 + $0x528] sm:$0xff]
    %v2067 = vld [vmem:[#allocation6 + $0x530] sm:$0xff]
    %v2068 = vld [vmem:[#allocation6 + $0x538] sm:$0xff]
    %v2069 = vld [vmem:[#allocation6 + $0x540] sm:$0xff]
    %v2070 = vld [vmem:[#allocation6 + $0x548] sm:$0xff]
    %v2071 = vld [vmem:[#allocation6 + $0x550] sm:$0xff]
    %v2072 = vld [vmem:[#allocation6 + $0x558] sm:$0xff]
    %v2073 = vld [vmem:[#allocation6 + $0x560] sm:$0xff]
    %v2074 = vld [vmem:[#allocation6 + $0x568] sm:$0xff]
    %v2075 = vld [vmem:[#allocation6 + $0x570] sm:$0xff]
    %v2076 = vld [vmem:[#allocation6 + $0x578] sm:$0xff]
    %v2077 = vld [vmem:[#allocation6 + $0x580] sm:$0xff]
    %v2078 = vld [vmem:[#allocation6 + $0x588] sm:$0xff]
    %v2079 = vld [vmem:[#allocation6 + $0x590] sm:$0xff]
    %v2080 = vld [vmem:[#allocation6 + $0x598] sm:$0xff]
    %v2081 = vld [vmem:[#allocation6 + $0x5a0] sm:$0xff]
    %v2082 = vld [vmem:[#allocation6 + $0x5a8] sm:$0xff]
    %v2083 = vld [vmem:[#allocation6 + $0x5b0] sm:$0xff]
    %v2084 = vld [vmem:[#allocation6 + $0x5b8] sm:$0xff]
    %v2085 = vld [vmem:[#allocation6 + $0x5c0] sm:$0xff]
    %v2086 = vld [vmem:[#allocation6 + $0x5c8] sm:$0xff]
    %v2087 = vld [vmem:[#allocation6 + $0x5d0] sm:$0xff]
    %v2088 = vld [vmem:[#allocation6 + $0x5d8] sm:$0xff]
    %v2089 = vld [vmem:[#allocation6 + $0x5e0] sm:$0xff]
    %v2090 = vld [vmem:[#allocation6 + $0x5e8] sm:$0xff]
    %v2091 = vld [vmem:[#allocation6 + $0x5f0] sm:$0xff]
    %v2092 = vld [vmem:[#allocation6 + $0x5f8] sm:$0xff]
    %v2093 = vld [vmem:[#allocation6 + $0x600] sm:$0xff]
    %v2094 = vld [vmem:[#allocation6 + $0x608] sm:$0xff]
    %v2095 = vld [vmem:[#allocation6 + $0x610] sm:$0xff]
    %v2096 = vld [vmem:[#allocation6 + $0x618] sm:$0xff]
    %v2097 = vld [vmem:[#allocation6 + $0x620] sm:$0xff]
    %v2098 = vld [vmem:[#allocation6 + $0x628] sm:$0xff]
    %v2099 = vld [vmem:[#allocation6 + $0x630] sm:$0xff]
    %v2100 = vld [vmem:[#allocation6 + $0x638] sm:$0xff]
    %v2101 = vld [vmem:[#allocation6 + $0x640] sm:$0xff]
    %v2102 = vld [vmem:[#allocation6 + $0x648] sm:$0xff]
    %v2103 = vld [vmem:[#allocation6 + $0x650] sm:$0xff]
    %v2104 = vld [vmem:[#allocation6 + $0x658] sm:$0xff]
    %v2105 = vld [vmem:[#allocation6 + $0x660] sm:$0xff]
    %v2106 = vld [vmem:[#allocation6 + $0x668] sm:$0xff]
    %v2107 = vld [vmem:[#allocation6 + $0x670] sm:$0xff]
    %v2108 = vld [vmem:[#allocation6 + $0x678] sm:$0xff]
    %v2109 = vld [vmem:[#allocation6 + $0x680] sm:$0xff]
    %v2110 = vld [vmem:[#allocation6 + $0x688] sm:$0xff]
    %v2111 = vld [vmem:[#allocation6 + $0x690] sm:$0xff]
    %v2112 = vld [vmem:[#allocation6 + $0x698] sm:$0xff]
    %v2113 = vld [vmem:[#allocation6 + $0x6a0] sm:$0xff]
    %v2114 = vld [vmem:[#allocation6 + $0x6a8] sm:$0xff]
    %v2115 = vld [vmem:[#allocation6 + $0x6b0] sm:$0xff]
    %v2116 = vld [vmem:[#allocation6 + $0x6b8] sm:$0xff]
    %v2117 = vld [vmem:[#allocation6 + $0x6c0] sm:$0xff]
    %v2118 = vld [vmem:[#allocation6 + $0x6c8] sm:$0xff]
    %v2119 = vld [vmem:[#allocation6 + $0x6d0] sm:$0xff]
    %v2120 = vld [vmem:[#allocation6 + $0x6d8] sm:$0xff]
    %v2121 = vld [vmem:[#allocation6 + $0x6e0] sm:$0xff]
    %v2122 = vld [vmem:[#allocation6 + $0x6e8] sm:$0xff]
    %v2123 = vld [vmem:[#allocation6 + $0x6f0] sm:$0xff]
    %v2124 = vld [vmem:[#allocation6 + $0x6f8] sm:$0xff]
    %v2125 = vld [vmem:[#allocation6 + $0x700] sm:$0xff]
    %v2126 = vld [vmem:[#allocation6 + $0x708] sm:$0xff]
    %v2127 = vld [vmem:[#allocation6 + $0x710] sm:$0xff]
    %v2128 = vld [vmem:[#allocation6 + $0x718] sm:$0xff]
    %v2129 = vld [vmem:[#allocation6 + $0x720] sm:$0xff]
    %v2130 = vld [vmem:[#allocation6 + $0x728] sm:$0xff]
    %v2131 = vld [vmem:[#allocation6 + $0x730] sm:$0xff]
    %v2132 = vld [vmem:[#allocation6 + $0x738] sm:$0xff]
    %v2133 = vld [vmem:[#allocation6 + $0x740] sm:$0xff]
    %v2134 = vld [vmem:[#allocation6 + $0x748] sm:$0xff]
    %v2135 = vld [vmem:[#allocation6 + $0x750] sm:$0xff]
    %v2136 = vld [vmem:[#allocation6 + $0x758] sm:$0xff]
    %v2137 = vld [vmem:[#allocation6 + $0x760] sm:$0xff]
    %v2138 = vld [vmem:[#allocation6 + $0x768] sm:$0xff]
    %v2139 = vld [vmem:[#allocation6 + $0x770] sm:$0xff]
    %v2140 = vld [vmem:[#allocation6 + $0x778] sm:$0xff]
    %v2141 = vld [vmem:[#allocation6 + $0x780] sm:$0xff]
    %v2142 = vld [vmem:[#allocation6 + $0x788] sm:$0xff]
    %v2143 = vld [vmem:[#allocation6 + $0x790] sm:$0xff]
    %v2144 = vld [vmem:[#allocation6 + $0x798] sm:$0xff]
    %v2145 = vld [vmem:[#allocation6 + $0x7a0] sm:$0xff]
    %v2146 = vld [vmem:[#allocation6 + $0x7a8] sm:$0xff]
    %v2147 = vld [vmem:[#allocation6 + $0x7b0] sm:$0xff]
    %v2148 = vld [vmem:[#allocation6 + $0x7b8] sm:$0xff]
    %v2149 = vld [vmem:[#allocation6 + $0x7c0] sm:$0xff]
    %v2150 = vld [vmem:[#allocation6 + $0x7c8] sm:$0xff]
    %v2151 = vld [vmem:[#allocation6 + $0x7d0] sm:$0xff]
    %v2152 = vld [vmem:[#allocation6 + $0x7d8] sm:$0xff]
    %v2153 = vld [vmem:[#allocation6 + $0x7e0] sm:$0xff]
    %v2154 = vld [vmem:[#allocation6 + $0x7e8] sm:$0xff]
    %v2155 = vld [vmem:[#allocation6 + $0x7f0] sm:$0xff]
    %v2156 = vld [vmem:[#allocation6 + $0x7f8] sm:$0xff]
    %v2157 = vld [vmem:[#allocation6 + $0x800] sm:$0xff]
    %v2158 = vld [vmem:[#allocation6 + $0x808] sm:$0xff]
    %v2159 = vld [vmem:[#allocation6 + $0x810] sm:$0xff]
    %v2160 = vld [vmem:[#allocation6 + $0x818] sm:$0xff]
    %v2161 = vld [vmem:[#allocation6 + $0x820] sm:$0xff]
    %v2162 = vld [vmem:[#allocation6 + $0x828] sm:$0xff]
    %v2163 = vld [vmem:[#allocation6 + $0x830] sm:$0xff]
    %v2164 = vld [vmem:[#allocation6 + $0x838] sm:$0xff]
    %v2165 = vld [vmem:[#allocation6 + $0x840] sm:$0xff]
    %v2166 = vld [vmem:[#allocation6 + $0x848] sm:$0xff]
    %v2167 = vld [vmem:[#allocation6 + $0x850] sm:$0xff]
    %v2168 = vld [vmem:[#allocation6 + $0x858] sm:$0xff]
    %v2169 = vld [vmem:[#allocation6 + $0x860] sm:$0xff]
    %v2170 = vld [vmem:[#allocation6 + $0x868] sm:$0xff]
    %v2171 = vld [vmem:[#allocation6 + $0x870] sm:$0xff]
    %v2172 = vld [vmem:[#allocation6 + $0x878] sm:$0xff]
    %v2173 = vld [vmem:[#allocation6 + $0x880] sm:$0xff]
    %v2174 = vld [vmem:[#allocation6 + $0x888] sm:$0xff]
    %v2175 = vld [vmem:[#allocation6 + $0x890] sm:$0xff]
    %v2176 = vld [vmem:[#allocation6 + $0x898] sm:$0xff]
    %v2177 = vld [vmem:[#allocation6 + $0x8a0] sm:$0xff]
    %v2178 = vld [vmem:[#allocation6 + $0x8a8] sm:$0xff]
    %v2179 = vld [vmem:[#allocation6 + $0x8b0] sm:$0xff]
    %v2180 = vld [vmem:[#allocation6 + $0x8b8] sm:$0xff]
    %v2181 = vld [vmem:[#allocation6 + $0x8c0] sm:$0xff]
    %v2182 = vld [vmem:[#allocation6 + $0x8c8] sm:$0xff]
    %v2183 = vld [vmem:[#allocation6 + $0x8d0] sm:$0xff]
    %v2184 = vld [vmem:[#allocation6 + $0x8d8] sm:$0xff]
    %v2185 = vld [vmem:[#allocation6 + $0x8e0] sm:$0xff]
    %v2186 = vld [vmem:[#allocation6 + $0x8e8] sm:$0xff]
    %v2187 = vld [vmem:[#allocation6 + $0x8f0] sm:$0xff]
    %v2188 = vld [vmem:[#allocation6 + $0x8f8] sm:$0xff]
    %v2189 = vld [vmem:[#allocation6 + $0x900] sm:$0xff]
    %v2190 = vld [vmem:[#allocation6 + $0x908] sm:$0xff]
    %v2191 = vld [vmem:[#allocation6 + $0x910] sm:$0xff]
    %v2192 = vld [vmem:[#allocation6 + $0x918] sm:$0xff]
    %v2193 = vld [vmem:[#allocation6 + $0x920] sm:$0xff]
    %v2194 = vld [vmem:[#allocation6 + $0x928] sm:$0xff]
    %v2195 = vld [vmem:[#allocation6 + $0x930] sm:$0xff]
    %v2196 = vld [vmem:[#allocation6 + $0x938] sm:$0xff]
    %v2197 = vld [vmem:[#allocation6 + $0x940] sm:$0xff]
    %v2198 = vld [vmem:[#allocation6 + $0x948] sm:$0xff]
    %v2199 = vld [vmem:[#allocation6 + $0x950] sm:$0xff]
    %v2200 = vld [vmem:[#allocation6 + $0x958] sm:$0xff]
    %v2201 = vld [vmem:[#allocation6 + $0x960] sm:$0xff]
    %v2202 = vld [vmem:[#allocation6 + $0x968] sm:$0xff]
    %v2203 = vld [vmem:[#allocation6 + $0x970] sm:$0xff]
    %v2204 = vld [vmem:[#allocation6 + $0x978] sm:$0xff]
    %v2205 = vld [vmem:[#allocation6 + $0x980] sm:$0xff]
    %v2206 = vld [vmem:[#allocation6 + $0x988] sm:$0xff]
    %v2207 = vld [vmem:[#allocation6 + $0x990] sm:$0xff]
    %v2208 = vld [vmem:[#allocation6 + $0x998] sm:$0xff]
    %v2209 = vld [vmem:[#allocation6 + $0x9a0] sm:$0xff]
    %v2210 = vld [vmem:[#allocation6 + $0x9a8] sm:$0xff]
    %v2211 = vld [vmem:[#allocation6 + $0x9b0] sm:$0xff]
    %v2212 = vld [vmem:[#allocation6 + $0x9b8] sm:$0xff]
    %v2213 = vld [vmem:[#allocation6 + $0x9c0] sm:$0xff]
    %v2214 = vld [vmem:[#allocation6 + $0x9c8] sm:$0xff]
    %v2215 = vld [vmem:[#allocation6 + $0x9d0] sm:$0xff]
    %v2216 = vld [vmem:[#allocation6 + $0x9d8] sm:$0xff]
    %v2217 = vld [vmem:[#allocation6 + $0x9e0] sm:$0xff]
    %v2218 = vld [vmem:[#allocation6 + $0x9e8] sm:$0xff]
    %v2219 = vld [vmem:[#allocation6 + $0x9f0] sm:$0xff]
    %v2220 = vld [vmem:[#allocation6 + $0x9f8] sm:$0xff]
    %v2221 = vld [vmem:[#allocation6 + $0xa00] sm:$0xff]
    %v2222 = vld [vmem:[#allocation6 + $0xa08] sm:$0xff]
    %v2223 = vld [vmem:[#allocation6 + $0xa10] sm:$0xff]
    %v2224 = vld [vmem:[#allocation6 + $0xa18] sm:$0xff]
    %v2225 = vld [vmem:[#allocation6 + $0xa20] sm:$0xff]
    %v2226 = vld [vmem:[#allocation6 + $0xa28] sm:$0xff]
    %v2227 = vld [vmem:[#allocation6 + $0xa30] sm:$0xff]
    %v2228 = vld [vmem:[#allocation6 + $0xa38] sm:$0xff]
    %v2229 = vld [vmem:[#allocation6 + $0xa40] sm:$0xff]
    %v2230 = vld [vmem:[#allocation6 + $0xa48] sm:$0xff]
    %v2231 = vld [vmem:[#allocation6 + $0xa50] sm:$0xff]
    %v2232 = vld [vmem:[#allocation6 + $0xa58] sm:$0xff]
    %v2233 = vld [vmem:[#allocation6 + $0xa60] sm:$0xff]
    %v2234 = vld [vmem:[#allocation6 + $0xa68] sm:$0xff]
    %v2235 = vld [vmem:[#allocation6 + $0xa70] sm:$0xff]
    %v2236 = vld [vmem:[#allocation6 + $0xa78] sm:$0xff]
    %v2237 = vld [vmem:[#allocation6 + $0xa80] sm:$0xff]
    %v2238 = vld [vmem:[#allocation6 + $0xa88] sm:$0xff]
    %v2239 = vld [vmem:[#allocation6 + $0xa90] sm:$0xff]
    %v2240 = vld [vmem:[#allocation6 + $0xa98] sm:$0xff]
    %v2241 = vld [vmem:[#allocation6 + $0xaa0] sm:$0xff]
    %v2242 = vld [vmem:[#allocation6 + $0xaa8] sm:$0xff]
    %v2243 = vld [vmem:[#allocation6 + $0xab0] sm:$0xff]
    %v2244 = vld [vmem:[#allocation6 + $0xab8] sm:$0xff]
    %v2245 = vld [vmem:[#allocation6 + $0xac0] sm:$0xff]
    %v2246 = vld [vmem:[#allocation6 + $0xac8] sm:$0xff]
    %v2247 = vld [vmem:[#allocation6 + $0xad0] sm:$0xff]
    %v2248 = vld [vmem:[#allocation6 + $0xad8] sm:$0xff]
    %v2249 = vld [vmem:[#allocation6 + $0xae0] sm:$0xff]
    %v2250 = vld [vmem:[#allocation6 + $0xae8] sm:$0xff]
    %v2251 = vld [vmem:[#allocation6 + $0xaf0] sm:$0xff]
    %v2252 = vld [vmem:[#allocation6 + $0xaf8] sm:$0xff]
    %v2253 = vld [vmem:[#allocation6 + $0xb00] sm:$0xff]
    %v2254 = vld [vmem:[#allocation6 + $0xb08] sm:$0xff]
    %v2255 = vld [vmem:[#allocation6 + $0xb10] sm:$0xff]
    %v2256 = vld [vmem:[#allocation6 + $0xb18] sm:$0xff]
    %v2257 = vld [vmem:[#allocation6 + $0xb20] sm:$0xff]
    %v2258 = vld [vmem:[#allocation6 + $0xb28] sm:$0xff]
    %v2259 = vld [vmem:[#allocation6 + $0xb30] sm:$0xff]
    %v2260 = vld [vmem:[#allocation6 + $0xb38] sm:$0xff]
    %v2261 = vld [vmem:[#allocation6 + $0xb40] sm:$0xff]
    %v2262 = vld [vmem:[#allocation6 + $0xb48] sm:$0xff]
    %v2263 = vld [vmem:[#allocation6 + $0xb50] sm:$0xff]
    %v2264 = vld [vmem:[#allocation6 + $0xb58] sm:$0xff]
    %v2265 = vld [vmem:[#allocation6 + $0xb60] sm:$0xff]
    %v2266 = vld [vmem:[#allocation6 + $0xb68] sm:$0xff]
    %v2267 = vld [vmem:[#allocation6 + $0xb70] sm:$0xff]
    %v2268 = vld [vmem:[#allocation6 + $0xb78] sm:$0xff]
    %v2269 = vld [vmem:[#allocation6 + $0xb80] sm:$0xff]
    %v2270 = vld [vmem:[#allocation6 + $0xb88] sm:$0xff]
    %v2271 = vld [vmem:[#allocation6 + $0xb90] sm:$0xff]
    %v2272 = vld [vmem:[#allocation6 + $0xb98] sm:$0xff]
    %v2273 = vld [vmem:[#allocation6 + $0xba0] sm:$0xff]
    %v2274 = vld [vmem:[#allocation6 + $0xba8] sm:$0xff]
    %v2275 = vld [vmem:[#allocation6 + $0xbb0] sm:$0xff]
    %v2276 = vld [vmem:[#allocation6 + $0xbb8] sm:$0xff]
    %v2277 = vld [vmem:[#allocation6 + $0xbc0] sm:$0xff]
    %v2278 = vld [vmem:[#allocation6 + $0xbc8] sm:$0xff]
    %v2279 = vld [vmem:[#allocation6 + $0xbd0] sm:$0xff]
    %v2280 = vld [vmem:[#allocation6 + $0xbd8] sm:$0xff]
    %v2281 = vld [vmem:[#allocation6 + $0xbe0] sm:$0xff]
    %v2282 = vld [vmem:[#allocation6 + $0xbe8] sm:$0xff]
    %v2283 = vld [vmem:[#allocation6 + $0xbf0] sm:$0xff]
    %v2284 = vld [vmem:[#allocation6 + $0xbf8] sm:$0xff]
    %v2285 = vld [vmem:[#allocation6 + $0xc00] sm:$0xff]
    %v2286 = vld [vmem:[#allocation6 + $0xc08] sm:$0xff]
    %v2287 = vld [vmem:[#allocation6 + $0xc10] sm:$0xff]
    %v2288 = vld [vmem:[#allocation6 + $0xc18] sm:$0xff]
    %v2289 = vld [vmem:[#allocation6 + $0xc20] sm:$0xff]
    %v2290 = vld [vmem:[#allocation6 + $0xc28] sm:$0xff]
    %v2291 = vld [vmem:[#allocation6 + $0xc30] sm:$0xff]
    %v2292 = vld [vmem:[#allocation6 + $0xc38] sm:$0xff]
    %v2293 = vld [vmem:[#allocation6 + $0xc40] sm:$0xff]
    %v2294 = vld [vmem:[#allocation6 + $0xc48] sm:$0xff]
    %v2295 = vld [vmem:[#allocation6 + $0xc50] sm:$0xff]
    %v2296 = vld [vmem:[#allocation6 + $0xc58] sm:$0xff]
    %v2297 = vld [vmem:[#allocation6 + $0xc60] sm:$0xff]
    %v2298 = vld [vmem:[#allocation6 + $0xc68] sm:$0xff]
    %v2299 = vld [vmem:[#allocation6 + $0xc70] sm:$0xff]
    %v2300 = vld [vmem:[#allocation6 + $0xc78] sm:$0xff]
    %v2301 = vld [vmem:[#allocation6 + $0xc80] sm:$0xff]
    %v2302 = vld [vmem:[#allocation6 + $0xc88] sm:$0xff]
    %v2303 = vld [vmem:[#allocation6 + $0xc90] sm:$0xff]
    %v2304 = vld [vmem:[#allocation6 + $0xc98] sm:$0xff]
    %v2305 = vld [vmem:[#allocation6 + $0xca0] sm:$0xff]
    %v2306 = vld [vmem:[#allocation6 + $0xca8] sm:$0xff]
    %v2307 = vld [vmem:[#allocation6 + $0xcb0] sm:$0xff]
    %v2308 = vld [vmem:[#allocation6 + $0xcb8] sm:$0xff]
    %v2309 = vld [vmem:[#allocation6 + $0xcc0] sm:$0xff]
    %v2310 = vld [vmem:[#allocation6 + $0xcc8] sm:$0xff]
    %v2311 = vld [vmem:[#allocation6 + $0xcd0] sm:$0xff]
    %v2312 = vld [vmem:[#allocation6 + $0xcd8] sm:$0xff]
    %v2313 = vld [vmem:[#allocation6 + $0xce0] sm:$0xff]
    %v2314 = vld [vmem:[#allocation6 + $0xce8] sm:$0xff]
    %v2315 = vld [vmem:[#allocation6 + $0xcf0] sm:$0xff]
    %v2316 = vld [vmem:[#allocation6 + $0xcf8] sm:$0xff]
    %v2317 = vld [vmem:[#allocation6 + $0xd00] sm:$0xff]
    %v2318 = vld [vmem:[#allocation6 + $0xd08] sm:$0xff]
    %v2319 = vld [vmem:[#allocation6 + $0xd10] sm:$0xff]
    %v2320 = vld [vmem:[#allocation6 + $0xd18] sm:$0xff]
    %v2321 = vld [vmem:[#allocation6 + $0xd20] sm:$0xff]
    %v2322 = vld [vmem:[#allocation6 + $0xd28] sm:$0xff]
    %v2323 = vld [vmem:[#allocation6 + $0xd30] sm:$0xff]
    %v2324 = vld [vmem:[#allocation6 + $0xd38] sm:$0xff]
    %v2325 = vld [vmem:[#allocation6 + $0xd40] sm:$0xff]
    %v2326 = vld [vmem:[#allocation6 + $0xd48] sm:$0xff]
    %v2327 = vld [vmem:[#allocation6 + $0xd50] sm:$0xff]
    %v2328 = vld [vmem:[#allocation6 + $0xd58] sm:$0xff]
    %v2329 = vld [vmem:[#allocation6 + $0xd60] sm:$0xff]
    %v2330 = vld [vmem:[#allocation6 + $0xd68] sm:$0xff]
    %v2331 = vld [vmem:[#allocation6 + $0xd70] sm:$0xff]
    %v2332 = vld [vmem:[#allocation6 + $0xd78] sm:$0xff]
    %v2333 = vld [vmem:[#allocation6 + $0xd80] sm:$0xff]
    %v2334 = vld [vmem:[#allocation6 + $0xd88] sm:$0xff]
    %v2335 = vld [vmem:[#allocation6 + $0xd90] sm:$0xff]
    %v2336 = vld [vmem:[#allocation6 + $0xd98] sm:$0xff]
    %v2337 = vld [vmem:[#allocation6 + $0xda0] sm:$0xff]
    %v2338 = vld [vmem:[#allocation6 + $0xda8] sm:$0xff]
    %v2339 = vld [vmem:[#allocation6 + $0xdb0] sm:$0xff]
    %v2340 = vld [vmem:[#allocation6 + $0xdb8] sm:$0xff]
    %v2341 = vld [vmem:[#allocation6 + $0xdc0] sm:$0xff]
    %v2342 = vld [vmem:[#allocation6 + $0xdc8] sm:$0xff]
    %v2343 = vld [vmem:[#allocation6 + $0xdd0] sm:$0xff]
    %v2344 = vld [vmem:[#allocation6 + $0xdd8] sm:$0xff]
    %v2345 = vld [vmem:[#allocation6 + $0xde0] sm:$0xff]
    %v2346 = vld [vmem:[#allocation6 + $0xde8] sm:$0xff]
    %v2347 = vld [vmem:[#allocation6 + $0xdf0] sm:$0xff]
    %v2348 = vld [vmem:[#allocation6 + $0xdf8] sm:$0xff]
    %v2349 = vld [vmem:[#allocation6 + $0xe00] sm:$0xff]
    %v2350 = vld [vmem:[#allocation6 + $0xe08] sm:$0xff]
    %v2351 = vld [vmem:[#allocation6 + $0xe10] sm:$0xff]
    %v2352 = vld [vmem:[#allocation6 + $0xe18] sm:$0xff]
    %v2353 = vld [vmem:[#allocation6 + $0xe20] sm:$0xff]
    %v2354 = vld [vmem:[#allocation6 + $0xe28] sm:$0xff]
    %v2355 = vld [vmem:[#allocation6 + $0xe30] sm:$0xff]
    %v2356 = vld [vmem:[#allocation6 + $0xe38] sm:$0xff]
    %v2357 = vld [vmem:[#allocation6 + $0xe40] sm:$0xff]
    %v2358 = vld [vmem:[#allocation6 + $0xe48] sm:$0xff]
    %v2359 = vld [vmem:[#allocation6 + $0xe50] sm:$0xff]
    %v2360 = vld [vmem:[#allocation6 + $0xe58] sm:$0xff]
    %v2361 = vld [vmem:[#allocation6 + $0xe60] sm:$0xff]
    %v2362 = vld [vmem:[#allocation6 + $0xe68] sm:$0xff]
    %v2363 = vld [vmem:[#allocation6 + $0xe70] sm:$0xff]
    %v2364 = vld [vmem:[#allocation6 + $0xe78] sm:$0xff]
    %v2365 = vld [vmem:[#allocation6 + $0xe80] sm:$0xff]
    %v2366 = vld [vmem:[#allocation6 + $0xe88] sm:$0xff]
    %v2367 = vld [vmem:[#allocation6 + $0xe90] sm:$0xff]
    %v2368 = vld [vmem:[#allocation6 + $0xe98] sm:$0xff]
    %v2369 = vld [vmem:[#allocation6 + $0xea0] sm:$0xff]
    %v2370 = vld [vmem:[#allocation6 + $0xea8] sm:$0xff]
    %v2371 = vld [vmem:[#allocation6 + $0xeb0] sm:$0xff]
    %v2372 = vld [vmem:[#allocation6 + $0xeb8] sm:$0xff]
    %v2373 = vld [vmem:[#allocation6 + $0xec0] sm:$0xff]
    %v2374 = vld [vmem:[#allocation6 + $0xec8] sm:$0xff]
    %v2375 = vld [vmem:[#allocation6 + $0xed0] sm:$0xff]
    %v2376 = vld [vmem:[#allocation6 + $0xed8] sm:$0xff]
    %v2377 = vld [vmem:[#allocation6 + $0xee0] sm:$0xff]
    %v2378 = vld [vmem:[#allocation6 + $0xee8] sm:$0xff]
    %v2379 = vld [vmem:[#allocation6 + $0xef0] sm:$0xff]
    %v2380 = vld [vmem:[#allocation6 + $0xef8] sm:$0xff]
    %v2381 = vld [vmem:[#allocation6 + $0xf00] sm:$0xff]
    %v2382 = vld [vmem:[#allocation6 + $0xf08] sm:$0xff]
    %v2383 = vld [vmem:[#allocation6 + $0xf10] sm:$0xff]
    %v2384 = vld [vmem:[#allocation6 + $0xf18] sm:$0xff]
    %v2385 = vld [vmem:[#allocation6 + $0xf20] sm:$0xff]
    %v2386 = vld [vmem:[#allocation6 + $0xf28] sm:$0xff]
    %v2387 = vld [vmem:[#allocation6 + $0xf30] sm:$0xff]
    %v2388 = vld [vmem:[#allocation6 + $0xf38] sm:$0xff]
    %v2389 = vld [vmem:[#allocation6 + $0xf40] sm:$0xff]
    %v2390 = vld [vmem:[#allocation6 + $0xf48] sm:$0xff]
    %v2391 = vld [vmem:[#allocation6 + $0xf50] sm:$0xff]
    %v2392 = vld [vmem:[#allocation6 + $0xf58] sm:$0xff]
    %v2393 = vld [vmem:[#allocation6 + $0xf60] sm:$0xff]
    %v2394 = vld [vmem:[#allocation6 + $0xf68] sm:$0xff]
    %v2395 = vld [vmem:[#allocation6 + $0xf70] sm:$0xff]
    %v2396 = vld [vmem:[#allocation6 + $0xf78] sm:$0xff]
    %v2397 = vld [vmem:[#allocation6 + $0xf80] sm:$0xff]
    %v2398 = vld [vmem:[#allocation6 + $0xf88] sm:$0xff]
    %v2399 = vld [vmem:[#allocation6 + $0xf90] sm:$0xff]
    %v2400 = vld [vmem:[#allocation6 + $0xf98] sm:$0xff]
    %v2401 = vld [vmem:[#allocation6 + $0xfa0] sm:$0xff]
    %v2402 = vld [vmem:[#allocation6 + $0xfa8] sm:$0xff]
    %v2403 = vld [vmem:[#allocation6 + $0xfb0] sm:$0xff]
    %v2404 = vld [vmem:[#allocation6 + $0xfb8] sm:$0xff]
    %v2405 = vld [vmem:[#allocation6 + $0xfc0] sm:$0xff]
    %v2406 = vld [vmem:[#allocation6 + $0xfc8] sm:$0xff]
    %v2407 = vld [vmem:[#allocation6 + $0xfd0] sm:$0xff]
    %v2408 = vld [vmem:[#allocation6 + $0xfd8] sm:$0xff]
    %v2409 = vld [vmem:[#allocation6 + $0xfe0] sm:$0xff]
    %v2410 = vld [vmem:[#allocation6 + $0xfe8] sm:$0xff]
    %v2411 = vld [vmem:[#allocation6 + $0xff0] sm:$0xff]
    %v2412 = vld [vmem:[#allocation6 + $0xff8] sm:$0xff]
    %v2413 = vld [vmem:[#allocation8] sm:$0x1]
    %v2415 = vperm.slane %v2413, 0
    %2417 = vmatpush.msra.mxu0 %v1916
    %2418 = vmatpush.msra.mxu0 %v1915
    %2419 = vmatpush.msra.mxu0 %v1914
    %2420 = vmatpush.msra.mxu0 %v1913
    %2421 = vmatpush.msra.mxu0 %v1912
    %2422 = vmatpush.msra.mxu0 %v1911
    %2423 = vmatpush.msra.mxu0 %v1910
    %2424 = vmatpush.msra.mxu0 %v1909
    %2425 = vmatpush.msra.mxu0 %v1908
    %2426 = vmatpush.msra.mxu0 %v1907
    %2427 = vmatpush.msra.mxu0 %v1906
    %2428 = vmatpush.msra.mxu0 %v1905
    %2429 = vmatpush.msra.mxu0 %v1904
    %2430 = vmatpush.msra.mxu0 %v1903
    %2431 = vmatpush.msra.mxu0 %v1902
    %2432 = vmatpush.msra.mxu0 %v1901
    %2433 = vmatmul.f32.gmra.mxu0 %v1869
    %v2434 = vpop.f32.mrf.mxu0
    %v2435 = vadd.f32 %v2415, %v2434
    %2436 = vdwg.mxu0
    %2437 = vmatpush.msra.mxu0 %v1932
    %2438 = vmatpush.msra.mxu0 %v1931
    %2439 = vmatpush.msra.mxu0 %v1930
    %2440 = vmatpush.msra.mxu0 %v1929
    %2441 = vmatpush.msra.mxu0 %v1928
    %2442 = vmatpush.msra.mxu0 %v1927
    %2443 = vmatpush.msra.mxu0 %v1926
    %2444 = vmatpush.msra.mxu0 %v1925
    %2445 = vmatpush.msra.mxu0 %v1924
    %2446 = vmatpush.msra.mxu0 %v1923
    %2447 = vmatpush.msra.mxu0 %v1922
    %2448 = vmatpush.msra.mxu0 %v1921
    %2449 = vmatpush.msra.mxu0 %v1920
    %2450 = vmatpush.msra.mxu0 %v1919
    %2451 = vmatpush.msra.mxu0 %v1918
    %2452 = vmatpush.msra.mxu0 %v1917
    %2453 = vmatmul.f32.gmra.mxu0 %v1870
    %v2454 = vpop.f32.mrf.mxu0
    %v2455 = vadd.f32 %v2435, %v2454
    %2456 = vdwg.mxu0
    %2457 = vmatpush.msra.mxu0 %v1948
    %2458 = vmatpush.msra.mxu0 %v1947
    %2459 = vmatpush.msra.mxu0 %v1946
    %2460 = vmatpush.msra.mxu0 %v1945
    %2461 = vmatpush.msra.mxu0 %v1944
    %2462 = vmatpush.msra.mxu0 %v1943
    %2463 = vmatpush.msra.mxu0 %v1942
    %2464 = vmatpush.msra.mxu0 %v1941
    %2465 = vmatpush.msra.mxu0 %v1940
    %2466 = vmatpush.msra.mxu0 %v1939
    %2467 = vmatpush.msra.mxu0 %v1938
    %2468 = vmatpush.msra.mxu0 %v1937
    %2469 = vmatpush.msra.mxu0 %v1936
    %2470 = vmatpush.msra.mxu0 %v1935
    %2471 = vmatpush.msra.mxu0 %v1934
    %2472 = vmatpush.msra.mxu0 %v1933
    %2473 = vmatmul.f32.gmra.mxu0 %v1871
    %v2474 = vpop.f32.mrf.mxu0
    %v2475 = vadd.f32 %v2455, %v2474
    %2476 = vdwg.mxu0
    %2477 = vmatpush.msra.mxu0 %v1964
    %2478 = vmatpush.msra.mxu0 %v1963
    %2479 = vmatpush.msra.mxu0 %v1962
    %2480 = vmatpush.msra.mxu0 %v1961
    %2481 = vmatpush.msra.mxu0 %v1960
    %2482 = vmatpush.msra.mxu0 %v1959
    %2483 = vmatpush.msra.mxu0 %v1958
    %2484 = vmatpush.msra.mxu0 %v1957
    %2485 = vmatpush.msra.mxu0 %v1956
    %2486 = vmatpush.msra.mxu0 %v1955
    %2487 = vmatpush.msra.mxu0 %v1954
    %2488 = vmatpush.msra.mxu0 %v1953
    %2489 = vmatpush.msra.mxu0 %v1952
    %2490 = vmatpush.msra.mxu0 %v1951
    %2491 = vmatpush.msra.mxu0 %v1950
    %2492 = vmatpush.msra.mxu0 %v1949
    %2493 = vmatmul.f32.gmra.mxu0 %v1872
    %v2494 = vpop.f32.mrf.mxu0
    %v2495 = vadd.f32 %v2475, %v2494
    %2496 = vdwg.mxu0
    %2497 = vmatpush.msra.mxu0 %v1980
    %2498 = vmatpush.msra.mxu0 %v1979
    %2499 = vmatpush.msra.mxu0 %v1978
    %2500 = vmatpush.msra.mxu0 %v1977
    %2501 = vmatpush.msra.mxu0 %v1976
    %2502 = vmatpush.msra.mxu0 %v1975
    %2503 = vmatpush.msra.mxu0 %v1974
    %2504 = vmatpush.msra.mxu0 %v1973
    %2505 = vmatpush.msra.mxu0 %v1972
    %2506 = vmatpush.msra.mxu0 %v1971
    %2507 = vmatpush.msra.mxu0 %v1970
    %2508 = vmatpush.msra.mxu0 %v1969
    %2509 = vmatpush.msra.mxu0 %v1968
    %2510 = vmatpush.msra.mxu0 %v1967
    %2511 = vmatpush.msra.mxu0 %v1966
    %2512 = vmatpush.msra.mxu0 %v1965
    %2513 = vmatmul.f32.gmra.mxu0 %v1873
    %v2514 = vpop.f32.mrf.mxu0
    %v2515 = vadd.f32 %v2495, %v2514
    %2516 = vdwg.mxu0
    %2517 = vmatpush.msra.mxu0 %v1996
    %2518 = vmatpush.msra.mxu0 %v1995
    %2519 = vmatpush.msra.mxu0 %v1994
    %2520 = vmatpush.msra.mxu0 %v1993
    %2521 = vmatpush.msra.mxu0 %v1992
    %2522 = vmatpush.msra.mxu0 %v1991
    %2523 = vmatpush.msra.mxu0 %v1990
    %2524 = vmatpush.msra.mxu0 %v1989
    %2525 = vmatpush.msra.mxu0 %v1988
    %2526 = vmatpush.msra.mxu0 %v1987
    %2527 = vmatpush.msra.mxu0 %v1986
    %2528 = vmatpush.msra.mxu0 %v1985
    %2529 = vmatpush.msra.mxu0 %v1984
    %2530 = vmatpush.msra.mxu0 %v1983
    %2531 = vmatpush.msra.mxu0 %v1982
    %2532 = vmatpush.msra.mxu0 %v1981
    %2533 = vmatmul.f32.gmra.mxu0 %v1874
    %v2534 = vpop.f32.mrf.mxu0
    %v2535 = vadd.f32 %v2515, %v2534
    %2536 = vdwg.mxu0
    %2537 = vmatpush.msra.mxu0 %v2012
    %2538 = vmatpush.msra.mxu0 %v2011
    %2539 = vmatpush.msra.mxu0 %v2010
    %2540 = vmatpush.msra.mxu0 %v2009
    %2541 = vmatpush.msra.mxu0 %v2008
    %2542 = vmatpush.msra.mxu0 %v2007
    %2543 = vmatpush.msra.mxu0 %v2006
    %2544 = vmatpush.msra.mxu0 %v2005
    %2545 = vmatpush.msra.mxu0 %v2004
    %2546 = vmatpush.msra.mxu0 %v2003
    %2547 = vmatpush.msra.mxu0 %v2002
    %2548 = vmatpush.msra.mxu0 %v2001
    %2549 = vmatpush.msra.mxu0 %v2000
    %2550 = vmatpush.msra.mxu0 %v1999
    %2551 = vmatpush.msra.mxu0 %v1998
    %2552 = vmatpush.msra.mxu0 %v1997
    %2553 = vmatmul.f32.gmra.mxu0 %v1875
    %v2554 = vpop.f32.mrf.mxu0
    %v2555 = vadd.f32 %v2535, %v2554
    %2556 = vdwg.mxu0
    %2557 = vmatpush.msra.mxu0 %v2028
    %2558 = vmatpush.msra.mxu0 %v2027
    %2559 = vmatpush.msra.mxu0 %v2026
    %2560 = vmatpush.msra.mxu0 %v2025
    %2561 = vmatpush.msra.mxu0 %v2024
    %2562 = vmatpush.msra.mxu0 %v2023
    %2563 = vmatpush.msra.mxu0 %v2022
    %2564 = vmatpush.msra.mxu0 %v2021
    %2565 = vmatpush.msra.mxu0 %v2020
    %2566 = vmatpush.msra.mxu0 %v2019
    %2567 = vmatpush.msra.mxu0 %v2018
    %2568 = vmatpush.msra.mxu0 %v2017
    %2569 = vmatpush.msra.mxu0 %v2016
    %2570 = vmatpush.msra.mxu0 %v2015
    %2571 = vmatpush.msra.mxu0 %v2014
    %2572 = vmatpush.msra.mxu0 %v2013
    %2573 = vmatmul.f32.gmra.mxu0 %v1876
    %v2574 = vpop.f32.mrf.mxu0
    %v2575 = vadd.f32 %v2555, %v2574
    %2576 = vdwg.mxu0
    %2577 = vmatpush.msra.mxu0 %v2044
    %2578 = vmatpush.msra.mxu0 %v2043
    %2579 = vmatpush.msra.mxu0 %v2042
    %2580 = vmatpush.msra.mxu0 %v2041
    %2581 = vmatpush.msra.mxu0 %v2040
    %2582 = vmatpush.msra.mxu0 %v2039
    %2583 = vmatpush.msra.mxu0 %v2038
    %2584 = vmatpush.msra.mxu0 %v2037
    %2585 = vmatpush.msra.mxu0 %v2036
    %2586 = vmatpush.msra.mxu0 %v2035
    %2587 = vmatpush.msra.mxu0 %v2034
    %2588 = vmatpush.msra.mxu0 %v2033
    %2589 = vmatpush.msra.mxu0 %v2032
    %2590 = vmatpush.msra.mxu0 %v2031
    %2591 = vmatpush.msra.mxu0 %v2030
    %2592 = vmatpush.msra.mxu0 %v2029
    %2593 = vmatmul.f32.gmra.mxu0 %v1877
    %v2594 = vpop.f32.mrf.mxu0
    %v2595 = vadd.f32 %v2575, %v2594
    %2596 = vdwg.mxu0
    %2597 = vmatpush.msra.mxu0 %v2060
    %2598 = vmatpush.msra.mxu0 %v2059
    %2599 = vmatpush.msra.mxu0 %v2058
    %2600 = vmatpush.msra.mxu0 %v2057
    %2601 = vmatpush.msra.mxu0 %v2056
    %2602 = vmatpush.msra.mxu0 %v2055
    %2603 = vmatpush.msra.mxu0 %v2054
    %2604 = vmatpush.msra.mxu0 %v2053
    %2605 = vmatpush.msra.mxu0 %v2052
    %2606 = vmatpush.msra.mxu0 %v2051
    %2607 = vmatpush.msra.mxu0 %v2050
    %2608 = vmatpush.msra.mxu0 %v2049
    %2609 = vmatpush.msra.mxu0 %v2048
    %2610 = vmatpush.msra.mxu0 %v2047
    %2611 = vmatpush.msra.mxu0 %v2046
    %2612 = vmatpush.msra.mxu0 %v2045
    %2613 = vmatmul.f32.gmra.mxu0 %v1878
    %v2614 = vpop.f32.mrf.mxu0
    %v2615 = vadd.f32 %v2595, %v2614
    %2616 = vdwg.mxu0
    %2617 = vmatpush.msra.mxu0 %v2076
    %2618 = vmatpush.msra.mxu0 %v2075
    %2619 = vmatpush.msra.mxu0 %v2074
    %2620 = vmatpush.msra.mxu0 %v2073
    %2621 = vmatpush.msra.mxu0 %v2072
    %2622 = vmatpush.msra.mxu0 %v2071
    %2623 = vmatpush.msra.mxu0 %v2070
    %2624 = vmatpush.msra.mxu0 %v2069
    %2625 = vmatpush.msra.mxu0 %v2068
    %2626 = vmatpush.msra.mxu0 %v2067
    %2627 = vmatpush.msra.mxu0 %v2066
    %2628 = vmatpush.msra.mxu0 %v2065
    %2629 = vmatpush.msra.mxu0 %v2064
    %2630 = vmatpush.msra.mxu0 %v2063
    %2631 = vmatpush.msra.mxu0 %v2062
    %2632 = vmatpush.msra.mxu0 %v2061
    %2633 = vmatmul.f32.gmra.mxu0 %v1879
    %v2634 = vpop.f32.mrf.mxu0
    %v2635 = vadd.f32 %v2615, %v2634
    %2636 = vdwg.mxu0
    %2637 = vmatpush.msra.mxu0 %v2092
    %2638 = vmatpush.msra.mxu0 %v2091
    %2639 = vmatpush.msra.mxu0 %v2090
    %2640 = vmatpush.msra.mxu0 %v2089
    %2641 = vmatpush.msra.mxu0 %v2088
    %2642 = vmatpush.msra.mxu0 %v2087
    %2643 = vmatpush.msra.mxu0 %v2086
    %2644 = vmatpush.msra.mxu0 %v2085
    %2645 = vmatpush.msra.mxu0 %v2084
    %2646 = vmatpush.msra.mxu0 %v2083
    %2647 = vmatpush.msra.mxu0 %v2082
    %2648 = vmatpush.msra.mxu0 %v2081
    %2649 = vmatpush.msra.mxu0 %v2080
    %2650 = vmatpush.msra.mxu0 %v2079
    %2651 = vmatpush.msra.mxu0 %v2078
    %2652 = vmatpush.msra.mxu0 %v2077
    %2653 = vmatmul.f32.gmra.mxu0 %v1880
    %v2654 = vpop.f32.mrf.mxu0
    %v2655 = vadd.f32 %v2635, %v2654
    %2656 = vdwg.mxu0
    %2657 = vmatpush.msra.mxu0 %v2108
    %2658 = vmatpush.msra.mxu0 %v2107
    %2659 = vmatpush.msra.mxu0 %v2106
    %2660 = vmatpush.msra.mxu0 %v2105
    %2661 = vmatpush.msra.mxu0 %v2104
    %2662 = vmatpush.msra.mxu0 %v2103
    %2663 = vmatpush.msra.mxu0 %v2102
    %2664 = vmatpush.msra.mxu0 %v2101
    %2665 = vmatpush.msra.mxu0 %v2100
    %2666 = vmatpush.msra.mxu0 %v2099
    %2667 = vmatpush.msra.mxu0 %v2098
    %2668 = vmatpush.msra.mxu0 %v2097
    %2669 = vmatpush.msra.mxu0 %v2096
    %2670 = vmatpush.msra.mxu0 %v2095
    %2671 = vmatpush.msra.mxu0 %v2094
    %2672 = vmatpush.msra.mxu0 %v2093
    %2673 = vmatmul.f32.gmra.mxu0 %v1881
    %v2674 = vpop.f32.mrf.mxu0
    %v2675 = vadd.f32 %v2655, %v2674
    %2676 = vdwg.mxu0
    %2677 = vmatpush.msra.mxu0 %v2124
    %2678 = vmatpush.msra.mxu0 %v2123
    %2679 = vmatpush.msra.mxu0 %v2122
    %2680 = vmatpush.msra.mxu0 %v2121
    %2681 = vmatpush.msra.mxu0 %v2120
    %2682 = vmatpush.msra.mxu0 %v2119
    %2683 = vmatpush.msra.mxu0 %v2118
    %2684 = vmatpush.msra.mxu0 %v2117
    %2685 = vmatpush.msra.mxu0 %v2116
    %2686 = vmatpush.msra.mxu0 %v2115
    %2687 = vmatpush.msra.mxu0 %v2114
    %2688 = vmatpush.msra.mxu0 %v2113
    %2689 = vmatpush.msra.mxu0 %v2112
    %2690 = vmatpush.msra.mxu0 %v2111
    %2691 = vmatpush.msra.mxu0 %v2110
    %2692 = vmatpush.msra.mxu0 %v2109
    %2693 = vmatmul.f32.gmra.mxu0 %v1882
    %v2694 = vpop.f32.mrf.mxu0
    %v2695 = vadd.f32 %v2675, %v2694
    %2696 = vdwg.mxu0
    %2697 = vmatpush.msra.mxu0 %v2140
    %2698 = vmatpush.msra.mxu0 %v2139
    %2699 = vmatpush.msra.mxu0 %v2138
    %2700 = vmatpush.msra.mxu0 %v2137
    %2701 = vmatpush.msra.mxu0 %v2136
    %2702 = vmatpush.msra.mxu0 %v2135
    %2703 = vmatpush.msra.mxu0 %v2134
    %2704 = vmatpush.msra.mxu0 %v2133
    %2705 = vmatpush.msra.mxu0 %v2132
    %2706 = vmatpush.msra.mxu0 %v2131
    %2707 = vmatpush.msra.mxu0 %v2130
    %2708 = vmatpush.msra.mxu0 %v2129
    %2709 = vmatpush.msra.mxu0 %v2128
    %2710 = vmatpush.msra.mxu0 %v2127
    %2711 = vmatpush.msra.mxu0 %v2126
    %2712 = vmatpush.msra.mxu0 %v2125
    %2713 = vmatmul.f32.gmra.mxu0 %v1883
    %v2714 = vpop.f32.mrf.mxu0
    %v2715 = vadd.f32 %v2695, %v2714
    %2716 = vdwg.mxu0
    %2717 = vmatpush.msra.mxu0 %v2156
    %2718 = vmatpush.msra.mxu0 %v2155
    %2719 = vmatpush.msra.mxu0 %v2154
    %2720 = vmatpush.msra.mxu0 %v2153
    %2721 = vmatpush.msra.mxu0 %v2152
    %2722 = vmatpush.msra.mxu0 %v2151
    %2723 = vmatpush.msra.mxu0 %v2150
    %2724 = vmatpush.msra.mxu0 %v2149
    %2725 = vmatpush.msra.mxu0 %v2148
    %2726 = vmatpush.msra.mxu0 %v2147
    %2727 = vmatpush.msra.mxu0 %v2146
    %2728 = vmatpush.msra.mxu0 %v2145
    %2729 = vmatpush.msra.mxu0 %v2144
    %2730 = vmatpush.msra.mxu0 %v2143
    %2731 = vmatpush.msra.mxu0 %v2142
    %2732 = vmatpush.msra.mxu0 %v2141
    %2733 = vmatmul.f32.gmra.mxu0 %v1884
    %v2734 = vpop.f32.mrf.mxu0
    %v2735 = vadd.f32 %v2715, %v2734
    %2736 = vdwg.mxu0
    %2737 = vmatpush.msra.mxu0 %v2172
    %2738 = vmatpush.msra.mxu0 %v2171
    %2739 = vmatpush.msra.mxu0 %v2170
    %2740 = vmatpush.msra.mxu0 %v2169
    %2741 = vmatpush.msra.mxu0 %v2168
    %2742 = vmatpush.msra.mxu0 %v2167
    %2743 = vmatpush.msra.mxu0 %v2166
    %2744 = vmatpush.msra.mxu0 %v2165
    %2745 = vmatpush.msra.mxu0 %v2164
    %2746 = vmatpush.msra.mxu0 %v2163
    %2747 = vmatpush.msra.mxu0 %v2162
    %2748 = vmatpush.msra.mxu0 %v2161
    %2749 = vmatpush.msra.mxu0 %v2160
    %2750 = vmatpush.msra.mxu0 %v2159
    %2751 = vmatpush.msra.mxu0 %v2158
    %2752 = vmatpush.msra.mxu0 %v2157
    %2753 = vmatmul.f32.gmra.mxu0 %v1885
    %v2754 = vpop.f32.mrf.mxu0
    %v2755 = vadd.f32 %v2735, %v2754
    %2756 = vdwg.mxu0
    %2757 = vmatpush.msra.mxu0 %v2188
    %2758 = vmatpush.msra.mxu0 %v2187
    %2759 = vmatpush.msra.mxu0 %v2186
    %2760 = vmatpush.msra.mxu0 %v2185
    %2761 = vmatpush.msra.mxu0 %v2184
    %2762 = vmatpush.msra.mxu0 %v2183
    %2763 = vmatpush.msra.mxu0 %v2182
    %2764 = vmatpush.msra.mxu0 %v2181
    %2765 = vmatpush.msra.mxu0 %v2180
    %2766 = vmatpush.msra.mxu0 %v2179
    %2767 = vmatpush.msra.mxu0 %v2178
    %2768 = vmatpush.msra.mxu0 %v2177
    %2769 = vmatpush.msra.mxu0 %v2176
    %2770 = vmatpush.msra.mxu0 %v2175
    %2771 = vmatpush.msra.mxu0 %v2174
    %2772 = vmatpush.msra.mxu0 %v2173
    %2773 = vmatmul.f32.gmra.mxu0 %v1886
    %v2774 = vpop.f32.mrf.mxu0
    %v2775 = vadd.f32 %v2755, %v2774
    %2776 = vdwg.mxu0
    %2777 = vmatpush.msra.mxu0 %v2204
    %2778 = vmatpush.msra.mxu0 %v2203
    %2779 = vmatpush.msra.mxu0 %v2202
    %2780 = vmatpush.msra.mxu0 %v2201
    %2781 = vmatpush.msra.mxu0 %v2200
    %2782 = vmatpush.msra.mxu0 %v2199
    %2783 = vmatpush.msra.mxu0 %v2198
    %2784 = vmatpush.msra.mxu0 %v2197
    %2785 = vmatpush.msra.mxu0 %v2196
    %2786 = vmatpush.msra.mxu0 %v2195
    %2787 = vmatpush.msra.mxu0 %v2194
    %2788 = vmatpush.msra.mxu0 %v2193
    %2789 = vmatpush.msra.mxu0 %v2192
    %2790 = vmatpush.msra.mxu0 %v2191
    %2791 = vmatpush.msra.mxu0 %v2190
    %2792 = vmatpush.msra.mxu0 %v2189
    %2793 = vmatmul.f32.gmra.mxu0 %v1887
    %v2794 = vpop.f32.mrf.mxu0
    %v2795 = vadd.f32 %v2775, %v2794
    %2796 = vdwg.mxu0
    %2797 = vmatpush.msra.mxu0 %v2220
    %2798 = vmatpush.msra.mxu0 %v2219
    %2799 = vmatpush.msra.mxu0 %v2218
    %2800 = vmatpush.msra.mxu0 %v2217
    %2801 = vmatpush.msra.mxu0 %v2216
    %2802 = vmatpush.msra.mxu0 %v2215
    %2803 = vmatpush.msra.mxu0 %v2214
    %2804 = vmatpush.msra.mxu0 %v2213
    %2805 = vmatpush.msra.mxu0 %v2212
    %2806 = vmatpush.msra.mxu0 %v2211
    %2807 = vmatpush.msra.mxu0 %v2210
    %2808 = vmatpush.msra.mxu0 %v2209
    %2809 = vmatpush.msra.mxu0 %v2208
    %2810 = vmatpush.msra.mxu0 %v2207
    %2811 = vmatpush.msra.mxu0 %v2206
    %2812 = vmatpush.msra.mxu0 %v2205
    %2813 = vmatmul.f32.gmra.mxu0 %v1888
    %v2814 = vpop.f32.mrf.mxu0
    %v2815 = vadd.f32 %v2795, %v2814
    %2816 = vdwg.mxu0
    %2817 = vmatpush.msra.mxu0 %v2236
    %2818 = vmatpush.msra.mxu0 %v2235
    %2819 = vmatpush.msra.mxu0 %v2234
    %2820 = vmatpush.msra.mxu0 %v2233
    %2821 = vmatpush.msra.mxu0 %v2232
    %2822 = vmatpush.msra.mxu0 %v2231
    %2823 = vmatpush.msra.mxu0 %v2230
    %2824 = vmatpush.msra.mxu0 %v2229
    %2825 = vmatpush.msra.mxu0 %v2228
    %2826 = vmatpush.msra.mxu0 %v2227
    %2827 = vmatpush.msra.mxu0 %v2226
    %2828 = vmatpush.msra.mxu0 %v2225
    %2829 = vmatpush.msra.mxu0 %v2224
    %2830 = vmatpush.msra.mxu0 %v2223
    %2831 = vmatpush.msra.mxu0 %v2222
    %2832 = vmatpush.msra.mxu0 %v2221
    %2833 = vmatmul.f32.gmra.mxu0 %v1889
    %v2834 = vpop.f32.mrf.mxu0
    %v2835 = vadd.f32 %v2815, %v2834
    %2836 = vdwg.mxu0
    %2837 = vmatpush.msra.mxu0 %v2252
    %2838 = vmatpush.msra.mxu0 %v2251
    %2839 = vmatpush.msra.mxu0 %v2250
    %2840 = vmatpush.msra.mxu0 %v2249
    %2841 = vmatpush.msra.mxu0 %v2248
    %2842 = vmatpush.msra.mxu0 %v2247
    %2843 = vmatpush.msra.mxu0 %v2246
    %2844 = vmatpush.msra.mxu0 %v2245
    %2845 = vmatpush.msra.mxu0 %v2244
    %2846 = vmatpush.msra.mxu0 %v2243
    %2847 = vmatpush.msra.mxu0 %v2242
    %2848 = vmatpush.msra.mxu0 %v2241
    %2849 = vmatpush.msra.mxu0 %v2240
    %2850 = vmatpush.msra.mxu0 %v2239
    %2851 = vmatpush.msra.mxu0 %v2238
    %2852 = vmatpush.msra.mxu0 %v2237
    %2853 = vmatmul.f32.gmra.mxu0 %v1890
    %v2854 = vpop.f32.mrf.mxu0
    %v2855 = vadd.f32 %v2835, %v2854
    %2856 = vdwg.mxu0
    %2857 = vmatpush.msra.mxu0 %v2268
    %2858 = vmatpush.msra.mxu0 %v2267
    %2859 = vmatpush.msra.mxu0 %v2266
    %2860 = vmatpush.msra.mxu0 %v2265
    %2861 = vmatpush.msra.mxu0 %v2264
    %2862 = vmatpush.msra.mxu0 %v2263
    %2863 = vmatpush.msra.mxu0 %v2262
    %2864 = vmatpush.msra.mxu0 %v2261
    %2865 = vmatpush.msra.mxu0 %v2260
    %2866 = vmatpush.msra.mxu0 %v2259
    %2867 = vmatpush.msra.mxu0 %v2258
    %2868 = vmatpush.msra.mxu0 %v2257
    %2869 = vmatpush.msra.mxu0 %v2256
    %2870 = vmatpush.msra.mxu0 %v2255
    %2871 = vmatpush.msra.mxu0 %v2254
    %2872 = vmatpush.msra.mxu0 %v2253
    %2873 = vmatmul.f32.gmra.mxu0 %v1891
    %v2874 = vpop.f32.mrf.mxu0
    %v2875 = vadd.f32 %v2855, %v2874
    %2876 = vdwg.mxu0
    %2877 = vmatpush.msra.mxu0 %v2284
    %2878 = vmatpush.msra.mxu0 %v2283
    %2879 = vmatpush.msra.mxu0 %v2282
    %2880 = vmatpush.msra.mxu0 %v2281
    %2881 = vmatpush.msra.mxu0 %v2280
    %2882 = vmatpush.msra.mxu0 %v2279
    %2883 = vmatpush.msra.mxu0 %v2278
    %2884 = vmatpush.msra.mxu0 %v2277
    %2885 = vmatpush.msra.mxu0 %v2276
    %2886 = vmatpush.msra.mxu0 %v2275
    %2887 = vmatpush.msra.mxu0 %v2274
    %2888 = vmatpush.msra.mxu0 %v2273
    %2889 = vmatpush.msra.mxu0 %v2272
    %2890 = vmatpush.msra.mxu0 %v2271
    %2891 = vmatpush.msra.mxu0 %v2270
    %2892 = vmatpush.msra.mxu0 %v2269
    %2893 = vmatmul.f32.gmra.mxu0 %v1892
    %v2894 = vpop.f32.mrf.mxu0
    %v2895 = vadd.f32 %v2875, %v2894
    %2896 = vdwg.mxu0
    %2897 = vmatpush.msra.mxu0 %v2300
    %2898 = vmatpush.msra.mxu0 %v2299
    %2899 = vmatpush.msra.mxu0 %v2298
    %2900 = vmatpush.msra.mxu0 %v2297
    %2901 = vmatpush.msra.mxu0 %v2296
    %2902 = vmatpush.msra.mxu0 %v2295
    %2903 = vmatpush.msra.mxu0 %v2294
    %2904 = vmatpush.msra.mxu0 %v2293
    %2905 = vmatpush.msra.mxu0 %v2292
    %2906 = vmatpush.msra.mxu0 %v2291
    %2907 = vmatpush.msra.mxu0 %v2290
    %2908 = vmatpush.msra.mxu0 %v2289
    %2909 = vmatpush.msra.mxu0 %v2288
    %2910 = vmatpush.msra.mxu0 %v2287
    %2911 = vmatpush.msra.mxu0 %v2286
    %2912 = vmatpush.msra.mxu0 %v2285
    %2913 = vmatmul.f32.gmra.mxu0 %v1893
    %v2914 = vpop.f32.mrf.mxu0
    %v2915 = vadd.f32 %v2895, %v2914
    %2916 = vdwg.mxu0
    %2917 = vmatpush.msra.mxu0 %v2316
    %2918 = vmatpush.msra.mxu0 %v2315
    %2919 = vmatpush.msra.mxu0 %v2314
    %2920 = vmatpush.msra.mxu0 %v2313
    %2921 = vmatpush.msra.mxu0 %v2312
    %2922 = vmatpush.msra.mxu0 %v2311
    %2923 = vmatpush.msra.mxu0 %v2310
    %2924 = vmatpush.msra.mxu0 %v2309
    %2925 = vmatpush.msra.mxu0 %v2308
    %2926 = vmatpush.msra.mxu0 %v2307
    %2927 = vmatpush.msra.mxu0 %v2306
    %2928 = vmatpush.msra.mxu0 %v2305
    %2929 = vmatpush.msra.mxu0 %v2304
    %2930 = vmatpush.msra.mxu0 %v2303
    %2931 = vmatpush.msra.mxu0 %v2302
    %2932 = vmatpush.msra.mxu0 %v2301
    %2933 = vmatmul.f32.gmra.mxu0 %v1894
    %v2934 = vpop.f32.mrf.mxu0
    %v2935 = vadd.f32 %v2915, %v2934
    %2936 = vdwg.mxu0
    %2937 = vmatpush.msra.mxu0 %v2332
    %2938 = vmatpush.msra.mxu0 %v2331
    %2939 = vmatpush.msra.mxu0 %v2330
    %2940 = vmatpush.msra.mxu0 %v2329
    %2941 = vmatpush.msra.mxu0 %v2328
    %2942 = vmatpush.msra.mxu0 %v2327
    %2943 = vmatpush.msra.mxu0 %v2326
    %2944 = vmatpush.msra.mxu0 %v2325
    %2945 = vmatpush.msra.mxu0 %v2324
    %2946 = vmatpush.msra.mxu0 %v2323
    %2947 = vmatpush.msra.mxu0 %v2322
    %2948 = vmatpush.msra.mxu0 %v2321
    %2949 = vmatpush.msra.mxu0 %v2320
    %2950 = vmatpush.msra.mxu0 %v2319
    %2951 = vmatpush.msra.mxu0 %v2318
    %2952 = vmatpush.msra.mxu0 %v2317
    %2953 = vmatmul.f32.gmra.mxu0 %v1895
    %v2954 = vpop.f32.mrf.mxu0
    %v2955 = vadd.f32 %v2935, %v2954
    %2956 = vdwg.mxu0
    %2957 = vmatpush.msra.mxu0 %v2348
    %2958 = vmatpush.msra.mxu0 %v2347
    %2959 = vmatpush.msra.mxu0 %v2346
    %2960 = vmatpush.msra.mxu0 %v2345
    %2961 = vmatpush.msra.mxu0 %v2344
    %2962 = vmatpush.msra.mxu0 %v2343
    %2963 = vmatpush.msra.mxu0 %v2342
    %2964 = vmatpush.msra.mxu0 %v2341
    %2965 = vmatpush.msra.mxu0 %v2340
    %2966 = vmatpush.msra.mxu0 %v2339
    %2967 = vmatpush.msra.mxu0 %v2338
    %2968 = vmatpush.msra.mxu0 %v2337
    %2969 = vmatpush.msra.mxu0 %v2336
    %2970 = vmatpush.msra.mxu0 %v2335
    %2971 = vmatpush.msra.mxu0 %v2334
    %2972 = vmatpush.msra.mxu0 %v2333
    %2973 = vmatmul.f32.gmra.mxu0 %v1896
    %v2974 = vpop.f32.mrf.mxu0
    %v2975 = vadd.f32 %v2955, %v2974
    %2976 = vdwg.mxu0
    %2977 = vmatpush.msra.mxu0 %v2364
    %2978 = vmatpush.msra.mxu0 %v2363
    %2979 = vmatpush.msra.mxu0 %v2362
    %2980 = vmatpush.msra.mxu0 %v2361
    %2981 = vmatpush.msra.mxu0 %v2360
    %2982 = vmatpush.msra.mxu0 %v2359
    %2983 = vmatpush.msra.mxu0 %v2358
    %2984 = vmatpush.msra.mxu0 %v2357
    %2985 = vmatpush.msra.mxu0 %v2356
    %2986 = vmatpush.msra.mxu0 %v2355
    %2987 = vmatpush.msra.mxu0 %v2354
    %2988 = vmatpush.msra.mxu0 %v2353
    %2989 = vmatpush.msra.mxu0 %v2352
    %2990 = vmatpush.msra.mxu0 %v2351
    %2991 = vmatpush.msra.mxu0 %v2350
    %2992 = vmatpush.msra.mxu0 %v2349
    %2993 = vmatmul.f32.gmra.mxu0 %v1897
    %v2994 = vpop.f32.mrf.mxu0
    %v2995 = vadd.f32 %v2975, %v2994
    %2996 = vdwg.mxu0
    %2997 = vmatpush.msra.mxu0 %v2380
    %2998 = vmatpush.msra.mxu0 %v2379
    %2999 = vmatpush.msra.mxu0 %v2378
    %3000 = vmatpush.msra.mxu0 %v2377
    %3001 = vmatpush.msra.mxu0 %v2376
    %3002 = vmatpush.msra.mxu0 %v2375
    %3003 = vmatpush.msra.mxu0 %v2374
    %3004 = vmatpush.msra.mxu0 %v2373
    %3005 = vmatpush.msra.mxu0 %v2372
    %3006 = vmatpush.msra.mxu0 %v2371
    %3007 = vmatpush.msra.mxu0 %v2370
    %3008 = vmatpush.msra.mxu0 %v2369
    %3009 = vmatpush.msra.mxu0 %v2368
    %3010 = vmatpush.msra.mxu0 %v2367
    %3011 = vmatpush.msra.mxu0 %v2366
    %3012 = vmatpush.msra.mxu0 %v2365
    %3013 = vmatmul.f32.gmra.mxu0 %v1898
    %v3014 = vpop.f32.mrf.mxu0
    %v3015 = vadd.f32 %v2995, %v3014
    %3016 = vdwg.mxu0
    %3017 = vmatpush.msra.mxu0 %v2396
    %3018 = vmatpush.msra.mxu0 %v2395
    %3019 = vmatpush.msra.mxu0 %v2394
    %3020 = vmatpush.msra.mxu0 %v2393
    %3021 = vmatpush.msra.mxu0 %v2392
    %3022 = vmatpush.msra.mxu0 %v2391
    %3023 = vmatpush.msra.mxu0 %v2390
    %3024 = vmatpush.msra.mxu0 %v2389
    %3025 = vmatpush.msra.mxu0 %v2388
    %3026 = vmatpush.msra.mxu0 %v2387
    %3027 = vmatpush.msra.mxu0 %v2386
    %3028 = vmatpush.msra.mxu0 %v2385
    %3029 = vmatpush.msra.mxu0 %v2384
    %3030 = vmatpush.msra.mxu0 %v2383
    %3031 = vmatpush.msra.mxu0 %v2382
    %3032 = vmatpush.msra.mxu0 %v2381
    %3033 = vmatmul.f32.gmra.mxu0 %v1899
    %v3034 = vpop.f32.mrf.mxu0
    %v3035 = vadd.f32 %v3015, %v3034
    %3036 = vdwg.mxu0
    %3037 = vmatpush.msra.mxu0 %v2412
    %3038 = vmatpush.msra.mxu0 %v2411
    %3039 = vmatpush.msra.mxu0 %v2410
    %3040 = vmatpush.msra.mxu0 %v2409
    %3041 = vmatpush.msra.mxu0 %v2408
    %3042 = vmatpush.msra.mxu0 %v2407
    %3043 = vmatpush.msra.mxu0 %v2406
    %3044 = vmatpush.msra.mxu0 %v2405
    %3045 = vmatpush.msra.mxu0 %v2404
    %3046 = vmatpush.msra.mxu0 %v2403
    %3047 = vmatpush.msra.mxu0 %v2402
    %3048 = vmatpush.msra.mxu0 %v2401
    %3049 = vmatpush.msra.mxu0 %v2400
    %3050 = vmatpush.msra.mxu0 %v2399
    %3051 = vmatpush.msra.mxu0 %v2398
    %3052 = vmatpush.msra.mxu0 %v2397
    %3053 = vmatmul.f32.gmra.mxu0 %v1900
    %v3054 = vpop.f32.mrf.mxu0
    %v3055 = vadd.f32 %v3035, %v3054
    %3056 = vdwg.mxu0
    %s3057 = sld [smem:[#allocation18]]
    %vm3058 = vcmp.ge.f32.partialorder %v3055, 0.0
    %v3059 = vstv %s3057
    %v3060 = vmul.f32 %v3059, %v3055
    %v3061 = vsel %vm3058, %v3055, %v3060
    %v3062 = vld [vmem:[#allocation9] sm:$0xff]
    %v3063 = vld [vmem:[#allocation9 + $0x8] sm:$0xff]
    %v3064 = vld [vmem:[#allocation9 + $0x10] sm:$0xff]
    %v3065 = vld [vmem:[#allocation9 + $0x18] sm:$0xff]
    %v3066 = vld [vmem:[#allocation9 + $0x20] sm:$0xff]
    %v3067 = vld [vmem:[#allocation9 + $0x28] sm:$0xff]
    %v3068 = vld [vmem:[#allocation9 + $0x30] sm:$0xff]
    %v3069 = vld [vmem:[#allocation9 + $0x38] sm:$0xff]
    %v3070 = vld [vmem:[#allocation9 + $0x40] sm:$0xff]
    %v3071 = vld [vmem:[#allocation9 + $0x48] sm:$0xff]
    %v3072 = vld [vmem:[#allocation9 + $0x50] sm:$0xff]
    %v3073 = vld [vmem:[#allocation9 + $0x58] sm:$0xff]
    %v3074 = vld [vmem:[#allocation9 + $0x60] sm:$0xff]
    %v3075 = vld [vmem:[#allocation9 + $0x68] sm:$0xff]
    %v3076 = vld [vmem:[#allocation9 + $0x70] sm:$0xff]
    %v3077 = vld [vmem:[#allocation9 + $0x78] sm:$0xff]
    %v3078 = vld [vmem:[#allocation11] sm:$0x1]
    %v3080 = vperm.slane %v3078, 0
    %3082 = vmatpush.msra.mxu0 %v3077
    %3083 = vmatpush.msra.mxu0 %v3076
    %3084 = vmatpush.msra.mxu0 %v3075
    %3085 = vmatpush.msra.mxu0 %v3074
    %3086 = vmatpush.msra.mxu0 %v3073
    %3087 = vmatpush.msra.mxu0 %v3072
    %3088 = vmatpush.msra.mxu0 %v3071
    %3089 = vmatpush.msra.mxu0 %v3070
    %3090 = vmatpush.msra.mxu0 %v3069
    %3091 = vmatpush.msra.mxu0 %v3068
    %3092 = vmatpush.msra.mxu0 %v3067
    %3093 = vmatpush.msra.mxu0 %v3066
    %3094 = vmatpush.msra.mxu0 %v3065
    %3095 = vmatpush.msra.mxu0 %v3064
    %3096 = vmatpush.msra.mxu0 %v3063
    %3097 = vmatpush.msra.mxu0 %v3062
    %3098 = vmatmul.f32.gmra.mxu0 %v3061
    %v3099 = vpop.f32.mrf.mxu0
    %v3100 = vadd.f32 %v3080, %v3099
    %3101 = vdwg.mxu0
    %s3102 = sld [smem:[#allocation18 + $0x1]]
    %vm3103 = vcmp.ge.f32.partialorder %v3100, 0.0
    %v3104 = vstv %s3102
    %v3105 = vmul.f32 %v3104, %v3100
    %v3106 = vsel %vm3103, %v3100, %v3105
    %v3107 = vld [vmem:[#allocation12] sm:$0xff]
    %v3108 = vld [vmem:[#allocation12 + $0x8] sm:$0xff]
    %v3109 = vld [vmem:[#allocation12 + $0x10] sm:$0xff]
    %v3110 = vld [vmem:[#allocation12 + $0x18] sm:$0xff]
    %v3111 = vld [vmem:[#allocation12 + $0x20] sm:$0xff]
    %v3112 = vld [vmem:[#allocation12 + $0x28] sm:$0xff]
    %v3113 = vld [vmem:[#allocation12 + $0x30] sm:$0xff]
    %v3114 = vld [vmem:[#allocation12 + $0x38] sm:$0xff]
    %v3115 = vld [vmem:[#allocation12 + $0x40] sm:$0xff]
    %v3116 = vld [vmem:[#allocation12 + $0x48] sm:$0xff]
    %v3117 = vld [vmem:[#allocation12 + $0x50] sm:$0xff]
    %v3118 = vld [vmem:[#allocation12 + $0x58] sm:$0xff]
    %v3119 = vld [vmem:[#allocation12 + $0x60] sm:$0xff]
    %v3120 = vld [vmem:[#allocation12 + $0x68] sm:$0xff]
    %v3121 = vld [vmem:[#allocation12 + $0x70] sm:$0xff]
    %v3122 = vld [vmem:[#allocation12 + $0x78] sm:$0xff]
    %v3123 = vld [vmem:[#allocation12 + $0x80] sm:$0xff]
    %v3124 = vld [vmem:[#allocation12 + $0x88] sm:$0xff]
    %v3125 = vld [vmem:[#allocation12 + $0x90] sm:$0xff]
    %v3126 = vld [vmem:[#allocation12 + $0x98] sm:$0xff]
    %v3127 = vld [vmem:[#allocation12 + $0xa0] sm:$0xff]
    %v3128 = vld [vmem:[#allocation12 + $0xa8] sm:$0xff]
    %v3129 = vld [vmem:[#allocation12 + $0xb0] sm:$0xff]
    %v3130 = vld [vmem:[#allocation12 + $0xb8] sm:$0xff]
    %v3131 = vld [vmem:[#allocation12 + $0xc0] sm:$0xff]
    %v3132 = vld [vmem:[#allocation12 + $0xc8] sm:$0xff]
    %v3133 = vld [vmem:[#allocation12 + $0xd0] sm:$0xff]
    %v3134 = vld [vmem:[#allocation12 + $0xd8] sm:$0xff]
    %v3135 = vld [vmem:[#allocation12 + $0xe0] sm:$0xff]
    %v3136 = vld [vmem:[#allocation12 + $0xe8] sm:$0xff]
    %v3137 = vld [vmem:[#allocation12 + $0xf0] sm:$0xff]
    %v3138 = vld [vmem:[#allocation12 + $0xf8] sm:$0xff]
    %v3139 = vld [vmem:[#allocation14] sm:$0x3]
    %v3141 = vperm.slane %v3139, 0
    %v3142 = vperm.slane %v3139, 1
    %3145 = vmatpush.msra.mxu0 %v3137
    %3146 = vmatpush.msra.mxu0 %v3135
    %3147 = vmatpush.msra.mxu0 %v3133
    %3148 = vmatpush.msra.mxu0 %v3131
    %3149 = vmatpush.msra.mxu0 %v3129
    %3150 = vmatpush.msra.mxu0 %v3127
    %3151 = vmatpush.msra.mxu0 %v3125
    %3152 = vmatpush.msra.mxu0 %v3123
    %3153 = vmatpush.msra.mxu0 %v3121
    %3154 = vmatpush.msra.mxu0 %v3119
    %3155 = vmatpush.msra.mxu0 %v3117
    %3156 = vmatpush.msra.mxu0 %v3115
    %3157 = vmatpush.msra.mxu0 %v3113
    %3158 = vmatpush.msra.mxu0 %v3111
    %3159 = vmatpush.msra.mxu0 %v3109
    %3160 = vmatpush.msra.mxu0 %v3107
    %3161 = vmatmul.f32.gmra.mxu0 %v3106
    %v3162 = vpop.f32.mrf.mxu0
    %v3163 = vadd.f32 %v3141, %v3162
    %3164 = vdwg.mxu0
    %3165 = vmatpush.msra.mxu0 %v3138
    %3166 = vmatpush.msra.mxu0 %v3136
    %3167 = vmatpush.msra.mxu0 %v3134
    %3168 = vmatpush.msra.mxu0 %v3132
    %3169 = vmatpush.msra.mxu0 %v3130
    %3170 = vmatpush.msra.mxu0 %v3128
    %3171 = vmatpush.msra.mxu0 %v3126
    %3172 = vmatpush.msra.mxu0 %v3124
    %3173 = vmatpush.msra.mxu0 %v3122
    %3174 = vmatpush.msra.mxu0 %v3120
    %3175 = vmatpush.msra.mxu0 %v3118
    %3176 = vmatpush.msra.mxu0 %v3116
    %3177 = vmatpush.msra.mxu0 %v3114
    %3178 = vmatpush.msra.mxu0 %v3112
    %3179 = vmatpush.msra.mxu0 %v3110
    %3180 = vmatpush.msra.mxu0 %v3108
    %3181 = vmatmul.f32.gmra.mxu0 %v3106
    %v3182 = vpop.f32.mrf.mxu0
    %v3183 = vadd.f32 %v3142, %v3182
    %3184 = vdwg.mxu0
    %s3185 = sld [smem:[#allocation18 + $0x2]]
    %vm3186 = vcmp.ge.f32.partialorder %v3163, 0.0
    %vm3187 = vcmp.ge.f32.partialorder %v3183, 0.0
    %v3188 = vstv %s3185
    %v3189 = vmul.f32 %v3188, %v3163
    %v3190 = vmul.f32 %v3188, %v3183
    %v3191 = vsel %vm3186, %v3163, %v3189
    %v3192 = vsel %vm3187, %v3183, %v3190
    %v3193 = vld [vmem:[#allocation15] sm:$0xff]
    %v3194 = vld [vmem:[#allocation15 + $0x8] sm:$0xff]
    %v3195 = vld [vmem:[#allocation15 + $0x10] sm:$0xff]
    %v3196 = vld [vmem:[#allocation15 + $0x18] sm:$0xff]
    %v3197 = vld [vmem:[#allocation15 + $0x20] sm:$0xff]
    %v3198 = vld [vmem:[#allocation15 + $0x28] sm:$0xff]
    %v3199 = vld [vmem:[#allocation15 + $0x30] sm:$0xff]
    %v3200 = vld [vmem:[#allocation15 + $0x38] sm:$0xff]
    %v3201 = vld [vmem:[#allocation15 + $0x40] sm:$0xff]
    %v3202 = vld [vmem:[#allocation15 + $0x48] sm:$0xff]
    %v3203 = vld [vmem:[#allocation15 + $0x50] sm:$0xff]
    %v3204 = vld [vmem:[#allocation15 + $0x58] sm:$0xff]
    %v3205 = vld [vmem:[#allocation15 + $0x60] sm:$0xff]
    %v3206 = vld [vmem:[#allocation15 + $0x68] sm:$0xff]
    %v3207 = vld [vmem:[#allocation15 + $0x70] sm:$0xff]
    %v3208 = vld [vmem:[#allocation15 + $0x78] sm:$0xff]
    %v3209 = vld [vmem:[#allocation15 + $0x80] sm:$0xff]
    %v3210 = vld [vmem:[#allocation15 + $0x88] sm:$0xff]
    %v3211 = vld [vmem:[#allocation15 + $0x90] sm:$0xff]
    %v3212 = vld [vmem:[#allocation15 + $0x98] sm:$0xff]
    %v3213 = vld [vmem:[#allocation15 + $0xa0] sm:$0xff]
    %v3214 = vld [vmem:[#allocation15 + $0xa8] sm:$0xff]
    %v3215 = vld [vmem:[#allocation15 + $0xb0] sm:$0xff]
    %v3216 = vld [vmem:[#allocation15 + $0xb8] sm:$0xff]
    %v3217 = vld [vmem:[#allocation15 + $0xc0] sm:$0xff]
    %v3218 = vld [vmem:[#allocation15 + $0xc8] sm:$0xff]
    %v3219 = vld [vmem:[#allocation15 + $0xd0] sm:$0xff]
    %v3220 = vld [vmem:[#allocation15 + $0xd8] sm:$0xff]
    %v3221 = vld [vmem:[#allocation15 + $0xe0] sm:$0xff]
    %v3222 = vld [vmem:[#allocation15 + $0xe8] sm:$0xff]
    %v3223 = vld [vmem:[#allocation15 + $0xf0] sm:$0xff]
    %v3224 = vld [vmem:[#allocation15 + $0xf8] sm:$0xff]
    %v3225 = vld [vmem:[#allocation17] sm:$0x1]
    %v3227 = vperm.slane %v3225, 0
    %3229 = vmatpush.msra.mxu0 %v3208
    %3230 = vmatpush.msra.mxu0 %v3207
    %3231 = vmatpush.msra.mxu0 %v3206
    %3232 = vmatpush.msra.mxu0 %v3205
    %3233 = vmatpush.msra.mxu0 %v3204
    %3234 = vmatpush.msra.mxu0 %v3203
    %3235 = vmatpush.msra.mxu0 %v3202
    %3236 = vmatpush.msra.mxu0 %v3201
    %3237 = vmatpush.msra.mxu0 %v3200
    %3238 = vmatpush.msra.mxu0 %v3199
    %3239 = vmatpush.msra.mxu0 %v3198
    %3240 = vmatpush.msra.mxu0 %v3197
    %3241 = vmatpush.msra.mxu0 %v3196
    %3242 = vmatpush.msra.mxu0 %v3195
    %3243 = vmatpush.msra.mxu0 %v3194
    %3244 = vmatpush.msra.mxu0 %v3193
    %3245 = vmatmul.f32.gmra.mxu0 %v3191
    %v3246 = vpop.f32.mrf.mxu0
    %v3247 = vadd.f32 %v3227, %v3246
    %3248 = vdwg.mxu0
    %3249 = vmatpush.msra.mxu0 %v3224
    %3250 = vmatpush.msra.mxu0 %v3223
    %3251 = vmatpush.msra.mxu0 %v3222
    %3252 = vmatpush.msra.mxu0 %v3221
    %3253 = vmatpush.msra.mxu0 %v3220
    %3254 = vmatpush.msra.mxu0 %v3219
    %3255 = vmatpush.msra.mxu0 %v3218
    %3256 = vmatpush.msra.mxu0 %v3217
    %3257 = vmatpush.msra.mxu0 %v3216
    %3258 = vmatpush.msra.mxu0 %v3215
    %3259 = vmatpush.msra.mxu0 %v3214
    %3260 = vmatpush.msra.mxu0 %v3213
    %3261 = vmatpush.msra.mxu0 %v3212
    %3262 = vmatpush.msra.mxu0 %v3211
    %3263 = vmatpush.msra.mxu0 %v3210
    %3264 = vmatpush.msra.mxu0 %v3209
    %3265 = vmatmul.f32.gmra.mxu0 %v3192
    %v3266 = vpop.f32.mrf.mxu0
    %v3267 = vadd.f32 %v3247, %v3266
    %3268 = vdwg.mxu0
    %v3269 = vmul.f32 %v3267, %v3267
    %3270 = vadd.xlane.f32.xlu0 %v3269
    %v3271 = vpop.xlane.xlu0 %3270
    %v3272 = vmax.f32 %v3271, 1e-24
    %v3273 = vrsqrt.pop %v3272
    %v3274 = vmul.f32 %v3273, %v3272
    %v3275 = vmul.f32 %v3274, %v3273
    %v3276 = vmul.f32 0.5, %v3275
    %v3277 = vsub.f32 1.5, %v3276
    %v3278 = vmul.f32 %v3273, %v3277
    %vm3279 = vweird.f32 %v3272
    %vm3280 = vweird.f32 %v3273
    %vm3281 = vmor %vm3279, %vm3280
    %v3282 = vsel %vm3281, %v3273, %v3278
    %v3283 = vmul.f32 %v3267, %v3282
    %3284 = vst [vmem:[%s12] sm:$0xff] %v3283
    // Predicated region
    $region90: #{shallow_embedd_net_pallas.1} parent=1 // pred_check
      _
    $region91: #{shallow_embedd_net_pallas.1} parent=1 // pred_check_branch
      %3286 = sbr.rel (0) target = $region93
    $region92: #{shallow_embedd_net_pallas.1} parent=1 // pred_region
      _
    $region93: #{shallow_embedd_net_pallas.1} parent=1 // pred_fallthru
      _
    // Predicated region
    $region94: #{shallow_embedd_net_pallas.1} parent=1 // pred_check
      _
    $region95: #{shallow_embedd_net_pallas.1} parent=1 // pred_check_branch
      %3288 = sbr.rel (0) target = $region97
    $region96: #{shallow_embedd_net_pallas.1} parent=1 // pred_region
      _
    $region97: #{shallow_embedd_net_pallas.1} parent=1 // pred_fallthru
      _
    %3289 = vsyncpa [#allocation4], 1
    %3290 = vsyncpa [#allocation7], 1
    %3291 = vsyncpa [#allocation10], 1
    %3292 = vsyncpa [#allocation13], 1
    %3293 = vsyncpa [#allocation16], 1
    %3294 = vsyncpa [#allocation5], 1

</llo_original>
